<compile_context>
chip_gen: v5e
topology: v5e:2x2
jax: 0.10.0
libtpu: 0.0.40
codegen_flags: <defaults>
</compile_context>

<pallas_src>
import functools

import jax
import jax.numpy as jnp
from jax.experimental import pallas as pl
from jax.experimental.pallas import tpu as pltpu

# ---------------- scaled-down BERT config ----------------
VOCAB = 64
HIDDEN = 128
N_LAYERS = 2
N_HEADS = 2
HEAD_DIM = HIDDEN // N_HEADS
INTERMEDIATE = 256
MAX_POS = 16
N_CLASSES = 5
CLS_PAD = 128          # classifier output padded to a full 128-lane slab
LN_EPS = 1e-12


# ---------------- in-kernel helpers ----------------
def _layernorm(h, g, b):
    mean = jnp.mean(h, axis=-1, keepdims=True)
    var = jnp.mean((h - mean) ** 2, axis=-1, keepdims=True)
    return (h - mean) * jax.lax.rsqrt(var + LN_EPS) * g + b


def _mm(x, w):
    # bf16 MXU operands, f32 accumulation.
    return jnp.dot(x.astype(jnp.bfloat16), w, preferred_element_type=jnp.float32)


def _gelu(y):
    # TODO(synk): HF BERT default is exact erf-GELU; tanh approximation kept for a
    # guaranteed Mosaic-supported lowering (EUP tanh).
    return 0.5 * y * (1.0 + jnp.tanh(0.7978845608028654 * (y + 0.044715 * y * y * y)))


# ---------------- fully fused forward kernel ----------------
def _fused_bert_kernel(
    emb_ref, mask_ref,
    emb_ln_g_ref, emb_ln_b_ref,
    qkv_w_ref, qkv_b_ref,
    ao_w_ref, ao_b_ref, ao_ln_g_ref, ao_ln_b_ref,
    i_w_ref, i_b_ref,
    o_w_ref, o_b_ref, o_ln_g_ref, o_ln_b_ref,
    pool_w_ref, pool_b_ref,
    cls_w_ref, cls_b_ref,
    out_ref,
    *, batch, seq,
):
    scale = 1.0 / float(HEAD_DIM) ** 0.5
    lane = jax.lax.broadcasted_iota(jnp.int32, (1, HIDDEN), 1)   # [1, H] lane index

    # --- embedding LayerNorm (no residual tensor) ---
    x = _layernorm(emb_ref[...], emb_ln_g_ref[...], emb_ln_b_ref[...])   # [B*S, H] f32

    # --- transformer encoder layers (statically unrolled, all weights in VMEM) ---
    for li in range(N_LAYERS):
        # fused QKV projection: one MXU matmul, N = 3*HIDDEN
        qkv = _mm(x, qkv_w_ref[li]) + qkv_b_ref[li]                      # [B*S, 3H] f32

        ctx_rows = []
        for b in range(batch):
            r0 = b * seq
            q_b = qkv[r0:r0 + seq, 0:HIDDEN]                             # [S, H]
            k_b = qkv[r0:r0 + seq, HIDDEN:2 * HIDDEN]
            v_b = qkv[r0:r0 + seq, 2 * HIDDEN:3 * HIDDEN]
            k_bf = k_b.astype(jnp.bfloat16)
            v_bf = v_b.astype(jnp.bfloat16)
            mask_b = mask_ref[b]                                         # [S, S] additive

            ctx_b = jnp.zeros((seq, HIDDEN), jnp.float32)
            for h in range(N_HEADS):
                # head selection via lane mask -> no 64-lane slicing, 128-lane dots
                hmask = ((lane >= h * HEAD_DIM) &
                         (lane < (h + 1) * HEAD_DIM)).astype(jnp.float32)  # [1, H]
                s_bh = jax.lax.dot_general(
                    (q_b * hmask).astype(jnp.bfloat16), k_bf,
                    (((1,), (1,)), ((), ())),
                    preferred_element_type=jnp.float32) * scale + mask_b   # [S, S]
                s_max = jnp.max(s_bh, axis=-1, keepdims=True)
                p = jnp.exp(s_bh - s_max)
                p = p * pl.reciprocal(jnp.sum(p, axis=-1, keepdims=True), approx=True)
                ctx_b = ctx_b + jnp.dot(p.astype(jnp.bfloat16), v_bf,
                                        preferred_element_type=jnp.float32) * hmask
            ctx_rows.append(ctx_b)                                       # [S, H]
        ctx = jnp.concatenate(ctx_rows, axis=0)                          # [B*S, H]

        # attention output projection + residual + LayerNorm (fused)
        attn_out = _mm(ctx, ao_w_ref[li]) + ao_b_ref[li]
        x = _layernorm(attn_out + x, ao_ln_g_ref[li], ao_ln_b_ref[li])

        # feed-forward: dense -> GELU -> dense + residual + LayerNorm (fused)
        inter = _gelu(_mm(x, i_w_ref[li]) + i_b_ref[li])
        ffn = _mm(inter, o_w_ref[li]) + o_b_ref[li]
        x = _layernorm(ffn + x, o_ln_g_ref[li], o_ln_b_ref[li])

    # --- pooler ([CLS] token of each sequence) + classifier, fused ---
    cls_rows = jnp.concatenate(
        [x[b * seq:b * seq + 1, :] for b in range(batch)], axis=0)       # [B, H]
    pooled = jnp.tanh(_mm(cls_rows, pool_w_ref[...]) + pool_b_ref[...])  # [B, H]
    out_ref[...] = _mm(pooled, cls_w_ref[...]) + cls_b_ref[...]          # [B, 128] lane-dense


# ---------------- parameter init (deterministic, synthetic) ----------------
def init_params(key):
    k_word, k_pos, k_type, k_pool, k_cls, k_layers = jax.random.split(key, 6)

    def w(k, shape, dtype=jnp.bfloat16):
        return (0.02 * jax.random.normal(k, shape)).astype(dtype)

    zeros = lambda s: jnp.zeros(s, jnp.float32)
    ones = lambda s: jnp.ones(s, jnp.float32)

    qkv_w, qkv_b = [], []
    ao_w, ao_b, ao_ln_g, ao_ln_b = [], [], [], []
    i_w, i_b = [], []
    o_w, o_b, o_ln_g, o_ln_b = [], [], [], []
    lkeys = jax.random.split(k_layers, N_LAYERS)
    for li in range(N_LAYERS):
        lk = jax.random.split(lkeys[li], 6)
        # fused QKV weight: [HIDDEN, 3*HIDDEN] laid out as [Q | K | V] along lanes
        qkv_w.append(jnp.concatenate(
            [w(lk[0], (HIDDEN, HIDDEN)),
             w(lk[1], (HIDDEN, HIDDEN)),
             w(lk[2], (HIDDEN, HIDDEN))], axis=1))
        qkv_b.append(zeros((1, 3 * HIDDEN)))
        ao_w.append(w(lk[3], (HIDDEN, HIDDEN)))
        ao_b.append(zeros((1, HIDDEN)))
        ao_ln_g.append(ones((1, HIDDEN)))
        ao_ln_b.append(zeros((1, HIDDEN)))
        i_w.append(w(lk[4], (HIDDEN, INTERMEDIATE)))
        i_b.append(zeros((1, INTERMEDIATE)))
        o_w.append(w(lk[5], (INTERMEDIATE, HIDDEN)))
        o_b.append(zeros((1, HIDDEN)))
        o_ln_g.append(ones((1, HIDDEN)))
        o_ln_b.append(zeros((1, HIDDEN)))

    # classifier weight padded to 128 output lanes (host slices back to 5)
    cls_w_pad = jnp.zeros((HIDDEN, CLS_PAD), jnp.bfloat16)
    cls_w_pad = cls_w_pad.at[:, :N_CLASSES].set(w(k_cls, (HIDDEN, N_CLASSES)))

    return {
        "word_emb": w(k_word, (VOCAB, HIDDEN), dtype=jnp.float32),
        "pos_emb": w(k_pos, (MAX_POS, HIDDEN), dtype=jnp.float32),
        "type_emb": w(k_type, (2, HIDDEN), dtype=jnp.float32),
        "emb_ln_g": ones((1, HIDDEN)), "emb_ln_b": zeros((1, HIDDEN)),
        "qkv_w": jnp.stack(qkv_w), "qkv_b": jnp.stack(qkv_b),
        "ao_w": jnp.stack(ao_w), "ao_b": jnp.stack(ao_b),
        "ao_ln_g": jnp.stack(ao_ln_g), "ao_ln_b": jnp.stack(ao_ln_b),
        "i_w": jnp.stack(i_w), "i_b": jnp.stack(i_b),
        "o_w": jnp.stack(o_w), "o_b": jnp.stack(o_b),
        "o_ln_g": jnp.stack(o_ln_g), "o_ln_b": jnp.stack(o_ln_b),
        "pool_w": w(k_pool, (HIDDEN, HIDDEN)), "pool_b": zeros((1, HIDDEN)),
        "cls_w": cls_w_pad, "cls_b": zeros((1, CLS_PAD)),
    }


# ---------------- DANetwork.forward equivalent ----------------
def da_network_forward(params, input_ids, input_mask):
    """input_ids: int32 [B, S], input_mask: int32 [B, S] -> logits float32 [B, 5]."""
    B, S = input_ids.shape

    # --- embeddings (gather = glue, plain JAX) ---
    we = params["word_emb"][input_ids]                       # [B, S, H]
    pe = params["pos_emb"][jnp.arange(S)]                    # [S, H]
    te = params["type_emb"][0]                               # [H]  (token_type_ids = 0)
    emb = (we + pe[None, :, :] + te[None, None, :]).reshape(B * S, HIDDEN)

    # --- HF extended attention mask, pre-broadcast to additive [B, S, S] bias ---
    ext = (1.0 - input_mask.astype(jnp.float32)) * -10000.0  # [B, S]
    mask_add = jnp.broadcast_to(ext[:, None, :], (B, S, S))

    operands = (
        emb, mask_add,
        params["emb_ln_g"], params["emb_ln_b"],
        params["qkv_w"], params["qkv_b"],
        params["ao_w"], params["ao_b"], params["ao_ln_g"], params["ao_ln_b"],
        params["i_w"], params["i_b"],
        params["o_w"], params["o_b"], params["o_ln_g"], params["o_ln_b"],
        params["pool_w"], params["pool_b"],
        params["cls_w"], params["cls_b"],
    )

    def _full_spec(a):
        nd = a.ndim
        return pl.BlockSpec(a.shape, lambda i, _nd=nd: (0,) * _nd)

    # Single fused call: everything fits in VMEM (<1 MB weights + KB activations),
    # well under v7x's 64 MiB VMEM / 32 MiB default scoped limit — no tiling needed.
    out = pl.pallas_call(
        functools.partial(_fused_bert_kernel, batch=B, seq=S),
        out_shape=jax.ShapeDtypeStruct((B, CLS_PAD), jnp.float32),
        grid=(1,),
        in_specs=[_full_spec(a) for a in operands],
        out_specs=pl.BlockSpec((B, CLS_PAD), lambda i: (0, 0)),
        compiler_params=pltpu.CompilerParams(dimension_semantics=("arbitrary",)),
    )(*operands)

    return out[:, :N_CLASSES]


if __name__ == "__main__":
    key = jax.random.PRNGKey(0)
    pkey, ikey = jax.random.split(key)
    params = init_params(pkey)

    B, S = 2, 8
    input_ids = jax.random.randint(ikey, (B, S), 0, VOCAB, dtype=jnp.int32)
    input_mask = jnp.array(
        [[1, 1, 1, 1, 1, 1, 1, 1],
         [1, 1, 1, 1, 1, 1, 0, 0]], dtype=jnp.int32)

    logits = jax.jit(da_network_forward)(params, input_ids, input_mask)
    jax.block_until_ready(logits)
    assert logits.shape == (B, N_CLASSES) and logits.dtype == jnp.float32
    print("KERNEL_OK")
</pallas_src>

<mosaic_0001>
module attributes {stable_mosaic.version = 11 : i64} {
  func.func @_fused_bert_kernel(%arg0: i32, %arg1: memref<16x128xf32, #tpu.memory_space<vmem>>, %arg2: memref<2x8x8xf32, #tpu.memory_space<vmem>>, %arg3: memref<1x128xf32, #tpu.memory_space<vmem>>, %arg4: memref<1x128xf32, #tpu.memory_space<vmem>>, %arg5: memref<2x128x384xbf16, #tpu.memory_space<vmem>>, %arg6: memref<2x1x384xf32, #tpu.memory_space<vmem>>, %arg7: memref<2x128x128xbf16, #tpu.memory_space<vmem>>, %arg8: memref<2x1x128xf32, #tpu.memory_space<vmem>>, %arg9: memref<2x1x128xf32, #tpu.memory_space<vmem>>, %arg10: memref<2x1x128xf32, #tpu.memory_space<vmem>>, %arg11: memref<2x128x256xbf16, #tpu.memory_space<vmem>>, %arg12: memref<2x1x256xf32, #tpu.memory_space<vmem>>, %arg13: memref<2x256x128xbf16, #tpu.memory_space<vmem>>, %arg14: memref<2x1x128xf32, #tpu.memory_space<vmem>>, %arg15: memref<2x1x128xf32, #tpu.memory_space<vmem>>, %arg16: memref<2x1x128xf32, #tpu.memory_space<vmem>>, %arg17: memref<128x128xbf16, #tpu.memory_space<vmem>>, %arg18: memref<1x128xf32, #tpu.memory_space<vmem>>, %arg19: memref<128x128xbf16, #tpu.memory_space<vmem>>, %arg20: memref<1x128xf32, #tpu.memory_space<vmem>>, %arg21: memref<2x128xf32, #tpu.memory_space<vmem>>) attributes {dimension_semantics = [#tpu.dimension_semantics<arbitrary>], iteration_bounds = array<i64: 1>, scalar_prefetch = 0 : i64, scratch_operands = 0 : i64, tpu.core_type = #tpu.core_type<tc>, window_params = [{pipeline_mode = #tpu.pipeline_mode<synchronous>, transform_indices = @transform_0, window_bounds = array<i64: 16, 128>}, {pipeline_mode = #tpu.pipeline_mode<synchronous>, transform_indices = @transform_1, window_bounds = array<i64: 2, 8, 8>}, {pipeline_mode = #tpu.pipeline_mode<synchronous>, transform_indices = @transform_2, window_bounds = array<i64: 1, 128>}, {pipeline_mode = #tpu.pipeline_mode<synchronous>, transform_indices = @transform_3, window_bounds = array<i64: 1, 128>}, {pipeline_mode = #tpu.pipeline_mode<synchronous>, transform_indices = @transform_4, window_bounds = array<i64: 2, 128, 384>}, {pipeline_mode = #tpu.pipeline_mode<synchronous>, transform_indices = @transform_5, window_bounds = array<i64: 2, 1, 384>}, {pipeline_mode = #tpu.pipeline_mode<synchronous>, transform_indices = @transform_6, window_bounds = array<i64: 2, 128, 128>}, {pipeline_mode = #tpu.pipeline_mode<synchronous>, transform_indices = @transform_7, window_bounds = array<i64: 2, 1, 128>}, {pipeline_mode = #tpu.pipeline_mode<synchronous>, transform_indices = @transform_8, window_bounds = array<i64: 2, 1, 128>}, {pipeline_mode = #tpu.pipeline_mode<synchronous>, transform_indices = @transform_9, window_bounds = array<i64: 2, 1, 128>}, {pipeline_mode = #tpu.pipeline_mode<synchronous>, transform_indices = @transform_10, window_bounds = array<i64: 2, 128, 256>}, {pipeline_mode = #tpu.pipeline_mode<synchronous>, transform_indices = @transform_11, window_bounds = array<i64: 2, 1, 256>}, {pipeline_mode = #tpu.pipeline_mode<synchronous>, transform_indices = @transform_12, window_bounds = array<i64: 2, 256, 128>}, {pipeline_mode = #tpu.pipeline_mode<synchronous>, transform_indices = @transform_13, window_bounds = array<i64: 2, 1, 128>}, {pipeline_mode = #tpu.pipeline_mode<synchronous>, transform_indices = @transform_14, window_bounds = array<i64: 2, 1, 128>}, {pipeline_mode = #tpu.pipeline_mode<synchronous>, transform_indices = @transform_15, window_bounds = array<i64: 2, 1, 128>}, {pipeline_mode = #tpu.pipeline_mode<synchronous>, transform_indices = @transform_16, window_bounds = array<i64: 128, 128>}, {pipeline_mode = #tpu.pipeline_mode<synchronous>, transform_indices = @transform_17, window_bounds = array<i64: 1, 128>}, {pipeline_mode = #tpu.pipeline_mode<synchronous>, transform_indices = @transform_18, window_bounds = array<i64: 128, 128>}, {pipeline_mode = #tpu.pipeline_mode<synchronous>, transform_indices = @transform_19, window_bounds = array<i64: 1, 128>}, {pipeline_mode = #tpu.pipeline_mode<synchronous>, transform_indices = @transform_20, window_bounds = array<i64: 2, 128>}]} {
    %0 = tpu.iota {dimensions = array<i32: 1>} : vector<1x128xi32>
    %c0 = arith.constant 0 : index
    %c0_0 = arith.constant 0 : index
    %1 = vector.load %arg1[%c0, %c0_0] : memref<16x128xf32, #tpu.memory_space<vmem>>, vector<16x128xf32>
    %c0_1 = arith.constant 0 : index
    %c0_2 = arith.constant 0 : index
    %2 = vector.load %arg3[%c0_1, %c0_2] : memref<1x128xf32, #tpu.memory_space<vmem>>, vector<1x128xf32>
    %c0_3 = arith.constant 0 : index
    %c0_4 = arith.constant 0 : index
    %3 = vector.load %arg4[%c0_3, %c0_4] : memref<1x128xf32, #tpu.memory_space<vmem>>, vector<1x128xf32>
    %cst = arith.constant dense<0.000000e+00> : vector<16xf32>
    %4 = vector.multi_reduction <add>, %1, %cst [1] : vector<16x128xf32> to vector<16xf32>
    %5 = vector.shape_cast %4 : vector<16xf32> to vector<16x1xf32>
    %cst_5 = arith.constant 1.280000e+02 : f32
    %6 = vector.broadcast %cst_5 : f32 to vector<16x1xf32>
    %7 = arith.divf %5, %6 : vector<16x1xf32>
    %8 = vector.broadcast %7 : vector<16x1xf32> to vector<16x128xf32>
    %9 = arith.subf %1, %8 : vector<16x128xf32>
    %10 = arith.mulf %9, %9 : vector<16x128xf32>
    %cst_6 = arith.constant dense<0.000000e+00> : vector<16xf32>
    %11 = vector.multi_reduction <add>, %10, %cst_6 [1] : vector<16x128xf32> to vector<16xf32>
    %12 = vector.shape_cast %11 : vector<16xf32> to vector<16x1xf32>
    %cst_7 = arith.constant 1.280000e+02 : f32
    %13 = vector.broadcast %cst_7 : f32 to vector<16x1xf32>
    %14 = arith.divf %12, %13 : vector<16x1xf32>
    %15 = vector.broadcast %7 : vector<16x1xf32> to vector<16x128xf32>
    %16 = arith.subf %1, %15 : vector<16x128xf32>
    %cst_8 = arith.constant 9.99999996E-13 : f32
    %17 = vector.broadcast %cst_8 : f32 to vector<16x1xf32>
    %18 = arith.addf %14, %17 : vector<16x1xf32>
    %19 = math.rsqrt %18 : vector<16x1xf32>
    %20 = vector.broadcast %19 : vector<16x1xf32> to vector<16x128xf32>
    %21 = arith.mulf %16, %20 : vector<16x128xf32>
    %22 = vector.broadcast %2 : vector<1x128xf32> to vector<16x128xf32>
    %23 = arith.mulf %21, %22 : vector<16x128xf32>
    %24 = vector.broadcast %3 : vector<1x128xf32> to vector<16x128xf32>
    %25 = arith.addf %23, %24 : vector<16x128xf32>
    %c0_9 = arith.constant 0 : index
    %c0_10 = arith.constant 0 : index
    %c0_11 = arith.constant 0 : index
    %26 = vector.load %arg5[%c0_9, %c0_10, %c0_11] : memref<2x128x384xbf16, #tpu.memory_space<vmem>>, vector<1x128x384xbf16>
    %27 = vector.shape_cast %26 : vector<1x128x384xbf16> to vector<128x384xbf16>
    %28 = arith.truncf %25 : vector<16x128xf32> to vector<16x128xbf16>
    %cst_12 = arith.constant dense<0.000000e+00> : vector<16x384xf32>
    %29 = tpu.matmul %28, %27, %cst_12 {dimension_numbers = #tpu.dot_dimension_numbers<[1], [0], [0], [1], [0, 0, 1, 1], [], []>} : vector<16x128xbf16>, vector<128x384xbf16>, vector<16x384xf32> -> vector<16x384xf32>
    %c0_13 = arith.constant 0 : index
    %c0_14 = arith.constant 0 : index
    %c0_15 = arith.constant 0 : index
    %30 = vector.load %arg6[%c0_13, %c0_14, %c0_15] : memref<2x1x384xf32, #tpu.memory_space<vmem>>, vector<1x1x384xf32>
    %31 = vector.shape_cast %30 : vector<1x1x384xf32> to vector<1x384xf32>
    %32 = vector.broadcast %31 : vector<1x384xf32> to vector<16x384xf32>
    %33 = arith.addf %29, %32 : vector<16x384xf32>
    %34 = vector.extract_strided_slice %33 {offsets = [0, 0], sizes = [8, 128], strides = [1, 1]} : vector<16x384xf32> to vector<8x128xf32>
    %35 = vector.extract_strided_slice %33 {offsets = [0, 128], sizes = [8, 128], strides = [1, 1]} : vector<16x384xf32> to vector<8x128xf32>
    %36 = vector.extract_strided_slice %33 {offsets = [0, 256], sizes = [8, 128], strides = [1, 1]} : vector<16x384xf32> to vector<8x128xf32>
    %37 = arith.truncf %35 : vector<8x128xf32> to vector<8x128xbf16>
    %38 = arith.truncf %36 : vector<8x128xf32> to vector<8x128xbf16>
    %c0_16 = arith.constant 0 : index
    %c0_17 = arith.constant 0 : index
    %c0_18 = arith.constant 0 : index
    %39 = vector.load %arg2[%c0_16, %c0_17, %c0_18] : memref<2x8x8xf32, #tpu.memory_space<vmem>>, vector<1x8x8xf32>
    %40 = vector.shape_cast %39 : vector<1x8x8xf32> to vector<8x8xf32>
    %cst_19 = arith.constant 0.000000e+00 : f32
    %41 = vector.broadcast %cst_19 : f32 to vector<8x128xf32>
    %c0_i32 = arith.constant 0 : i32
    %42 = vector.broadcast %c0_i32 : i32 to vector<1x128xi32>
    %43 = arith.cmpi sge, %0, %42 : vector<1x128xi32>
    %c64_i32 = arith.constant 64 : i32
    %44 = vector.broadcast %c64_i32 : i32 to vector<1x128xi32>
    %45 = arith.cmpi slt, %0, %44 : vector<1x128xi32>
    %46 = arith.andi %43, %45 : vector<1x128xi1>
    %47 = arith.extui %46 : vector<1x128xi1> to vector<1x128xi32>
    %48 = arith.sitofp %47 : vector<1x128xi32> to vector<1x128xf32>
    %49 = vector.broadcast %48 : vector<1x128xf32> to vector<8x128xf32>
    %50 = arith.mulf %34, %49 : vector<8x128xf32>
    %51 = arith.truncf %50 : vector<8x128xf32> to vector<8x128xbf16>
    %cst_20 = arith.constant dense<0.000000e+00> : vector<8x8xf32>
    %52 = tpu.matmul %51, %37, %cst_20 {dimension_numbers = #tpu.dot_dimension_numbers<[1], [1], [0], [0], [0, 0, 1, 0], [], []>} : vector<8x128xbf16>, vector<8x128xbf16>, vector<8x8xf32> -> vector<8x8xf32>
    %cst_21 = arith.constant 1.250000e-01 : f32
    %53 = vector.broadcast %cst_21 : f32 to vector<8x8xf32>
    %54 = arith.mulf %52, %53 : vector<8x8xf32>
    %55 = arith.addf %54, %40 : vector<8x8xf32>
    %cst_22 = arith.constant dense<0xFF800000> : vector<8xf32>
    %56 = vector.multi_reduction <maximumf>, %55, %cst_22 [1] : vector<8x8xf32> to vector<8xf32>
    %57 = vector.shape_cast %56 : vector<8xf32> to vector<8x1xf32>
    %58 = vector.broadcast %57 : vector<8x1xf32> to vector<8x8xf32>
    %59 = arith.subf %55, %58 : vector<8x8xf32>
    %60 = math.exp %59 : vector<8x8xf32>
    %cst_23 = arith.constant dense<0.000000e+00> : vector<8xf32>
    %61 = vector.multi_reduction <add>, %60, %cst_23 [1] : vector<8x8xf32> to vector<8xf32>
    %62 = vector.shape_cast %61 : vector<8xf32> to vector<8x1xf32>
    %63 = tpu.reciprocal %62 {approx = true} : vector<8x1xf32> -> vector<8x1xf32>
    %64 = vector.broadcast %63 : vector<8x1xf32> to vector<8x8xf32>
    %65 = arith.mulf %60, %64 : vector<8x8xf32>
    %66 = arith.truncf %65 : vector<8x8xf32> to vector<8x8xbf16>
    %cst_24 = arith.constant dense<0.000000e+00> : vector<8x128xf32>
    %67 = tpu.matmul %66, %38, %cst_24 {dimension_numbers = #tpu.dot_dimension_numbers<[1], [0], [0], [1], [0, 0, 1, 1], [], []>} : vector<8x8xbf16>, vector<8x128xbf16>, vector<8x128xf32> -> vector<8x128xf32>
    %68 = vector.broadcast %48 : vector<1x128xf32> to vector<8x128xf32>
    %69 = arith.mulf %67, %68 : vector<8x128xf32>
    %70 = arith.addf %41, %69 : vector<8x128xf32>
    %c64_i32_25 = arith.constant 64 : i32
    %71 = vector.broadcast %c64_i32_25 : i32 to vector<1x128xi32>
    %72 = arith.cmpi sge, %0, %71 : vector<1x128xi32>
    %c128_i32 = arith.constant 128 : i32
    %73 = vector.broadcast %c128_i32 : i32 to vector<1x128xi32>
    %74 = arith.cmpi slt, %0, %73 : vector<1x128xi32>
    %75 = arith.andi %72, %74 : vector<1x128xi1>
    %76 = arith.extui %75 : vector<1x128xi1> to vector<1x128xi32>
    %77 = arith.sitofp %76 : vector<1x128xi32> to vector<1x128xf32>
    %78 = vector.broadcast %77 : vector<1x128xf32> to vector<8x128xf32>
    %79 = arith.mulf %34, %78 : vector<8x128xf32>
    %80 = arith.truncf %79 : vector<8x128xf32> to vector<8x128xbf16>
    %cst_26 = arith.constant dense<0.000000e+00> : vector<8x8xf32>
    %81 = tpu.matmul %80, %37, %cst_26 {dimension_numbers = #tpu.dot_dimension_numbers<[1], [1], [0], [0], [0, 0, 1, 0], [], []>} : vector<8x128xbf16>, vector<8x128xbf16>, vector<8x8xf32> -> vector<8x8xf32>
    %cst_27 = arith.constant 1.250000e-01 : f32
    %82 = vector.broadcast %cst_27 : f32 to vector<8x8xf32>
    %83 = arith.mulf %81, %82 : vector<8x8xf32>
    %84 = arith.addf %83, %40 : vector<8x8xf32>
    %cst_28 = arith.constant dense<0xFF800000> : vector<8xf32>
    %85 = vector.multi_reduction <maximumf>, %84, %cst_28 [1] : vector<8x8xf32> to vector<8xf32>
    %86 = vector.shape_cast %85 : vector<8xf32> to vector<8x1xf32>
    %87 = vector.broadcast %86 : vector<8x1xf32> to vector<8x8xf32>
    %88 = arith.subf %84, %87 : vector<8x8xf32>
    %89 = math.exp %88 : vector<8x8xf32>
    %cst_29 = arith.constant dense<0.000000e+00> : vector<8xf32>
    %90 = vector.multi_reduction <add>, %89, %cst_29 [1] : vector<8x8xf32> to vector<8xf32>
    %91 = vector.shape_cast %90 : vector<8xf32> to vector<8x1xf32>
    %92 = tpu.reciprocal %91 {approx = true} : vector<8x1xf32> -> vector<8x1xf32>
    %93 = vector.broadcast %92 : vector<8x1xf32> to vector<8x8xf32>
    %94 = arith.mulf %89, %93 : vector<8x8xf32>
    %95 = arith.truncf %94 : vector<8x8xf32> to vector<8x8xbf16>
    %cst_30 = arith.constant dense<0.000000e+00> : vector<8x128xf32>
    %96 = tpu.matmul %95, %38, %cst_30 {dimension_numbers = #tpu.dot_dimension_numbers<[1], [0], [0], [1], [0, 0, 1, 1], [], []>} : vector<8x8xbf16>, vector<8x128xbf16>, vector<8x128xf32> -> vector<8x128xf32>
    %97 = vector.broadcast %77 : vector<1x128xf32> to vector<8x128xf32>
    %98 = arith.mulf %96, %97 : vector<8x128xf32>
    %99 = arith.addf %70, %98 : vector<8x128xf32>
    %100 = vector.extract_strided_slice %33 {offsets = [8, 0], sizes = [8, 128], strides = [1, 1]} : vector<16x384xf32> to vector<8x128xf32>
    %101 = vector.extract_strided_slice %33 {offsets = [8, 128], sizes = [8, 128], strides = [1, 1]} : vector<16x384xf32> to vector<8x128xf32>
    %102 = vector.extract_strided_slice %33 {offsets = [8, 256], sizes = [8, 128], strides = [1, 1]} : vector<16x384xf32> to vector<8x128xf32>
    %103 = arith.truncf %101 : vector<8x128xf32> to vector<8x128xbf16>
    %104 = arith.truncf %102 : vector<8x128xf32> to vector<8x128xbf16>
    %c1 = arith.constant 1 : index
    %c0_31 = arith.constant 0 : index
    %c0_32 = arith.constant 0 : index
    %105 = vector.load %arg2[%c1, %c0_31, %c0_32] : memref<2x8x8xf32, #tpu.memory_space<vmem>>, vector<1x8x8xf32>
    %106 = vector.shape_cast %105 : vector<1x8x8xf32> to vector<8x8xf32>
    %cst_33 = arith.constant 0.000000e+00 : f32
    %107 = vector.broadcast %cst_33 : f32 to vector<8x128xf32>
    %c0_i32_34 = arith.constant 0 : i32
    %108 = vector.broadcast %c0_i32_34 : i32 to vector<1x128xi32>
    %109 = arith.cmpi sge, %0, %108 : vector<1x128xi32>
    %c64_i32_35 = arith.constant 64 : i32
    %110 = vector.broadcast %c64_i32_35 : i32 to vector<1x128xi32>
    %111 = arith.cmpi slt, %0, %110 : vector<1x128xi32>
    %112 = arith.andi %109, %111 : vector<1x128xi1>
    %113 = arith.extui %112 : vector<1x128xi1> to vector<1x128xi32>
    %114 = arith.sitofp %113 : vector<1x128xi32> to vector<1x128xf32>
    %115 = vector.broadcast %114 : vector<1x128xf32> to vector<8x128xf32>
    %116 = arith.mulf %100, %115 : vector<8x128xf32>
    %117 = arith.truncf %116 : vector<8x128xf32> to vector<8x128xbf16>
    %cst_36 = arith.constant dense<0.000000e+00> : vector<8x8xf32>
    %118 = tpu.matmul %117, %103, %cst_36 {dimension_numbers = #tpu.dot_dimension_numbers<[1], [1], [0], [0], [0, 0, 1, 0], [], []>} : vector<8x128xbf16>, vector<8x128xbf16>, vector<8x8xf32> -> vector<8x8xf32>
    %cst_37 = arith.constant 1.250000e-01 : f32
    %119 = vector.broadcast %cst_37 : f32 to vector<8x8xf32>
    %120 = arith.mulf %118, %119 : vector<8x8xf32>
    %121 = arith.addf %120, %106 : vector<8x8xf32>
    %cst_38 = arith.constant dense<0xFF800000> : vector<8xf32>
    %122 = vector.multi_reduction <maximumf>, %121, %cst_38 [1] : vector<8x8xf32> to vector<8xf32>
    %123 = vector.shape_cast %122 : vector<8xf32> to vector<8x1xf32>
    %124 = vector.broadcast %123 : vector<8x1xf32> to vector<8x8xf32>
    %125 = arith.subf %121, %124 : vector<8x8xf32>
    %126 = math.exp %125 : vector<8x8xf32>
    %cst_39 = arith.constant dense<0.000000e+00> : vector<8xf32>
    %127 = vector.multi_reduction <add>, %126, %cst_39 [1] : vector<8x8xf32> to vector<8xf32>
    %128 = vector.shape_cast %127 : vector<8xf32> to vector<8x1xf32>
    %129 = tpu.reciprocal %128 {approx = true} : vector<8x1xf32> -> vector<8x1xf32>
    %130 = vector.broadcast %129 : vector<8x1xf32> to vector<8x8xf32>
    %131 = arith.mulf %126, %130 : vector<8x8xf32>
    %132 = arith.truncf %131 : vector<8x8xf32> to vector<8x8xbf16>
    %cst_40 = arith.constant dense<0.000000e+00> : vector<8x128xf32>
    %133 = tpu.matmul %132, %104, %cst_40 {dimension_numbers = #tpu.dot_dimension_numbers<[1], [0], [0], [1], [0, 0, 1, 1], [], []>} : vector<8x8xbf16>, vector<8x128xbf16>, vector<8x128xf32> -> vector<8x128xf32>
    %134 = vector.broadcast %114 : vector<1x128xf32> to vector<8x128xf32>
    %135 = arith.mulf %133, %134 : vector<8x128xf32>
    %136 = arith.addf %107, %135 : vector<8x128xf32>
    %c64_i32_41 = arith.constant 64 : i32
    %137 = vector.broadcast %c64_i32_41 : i32 to vector<1x128xi32>
    %138 = arith.cmpi sge, %0, %137 : vector<1x128xi32>
    %c128_i32_42 = arith.constant 128 : i32
    %139 = vector.broadcast %c128_i32_42 : i32 to vector<1x128xi32>
    %140 = arith.cmpi slt, %0, %139 : vector<1x128xi32>
    %141 = arith.andi %138, %140 : vector<1x128xi1>
    %142 = arith.extui %141 : vector<1x128xi1> to vector<1x128xi32>
    %143 = arith.sitofp %142 : vector<1x128xi32> to vector<1x128xf32>
    %144 = vector.broadcast %143 : vector<1x128xf32> to vector<8x128xf32>
    %145 = arith.mulf %100, %144 : vector<8x128xf32>
    %146 = arith.truncf %145 : vector<8x128xf32> to vector<8x128xbf16>
    %cst_43 = arith.constant dense<0.000000e+00> : vector<8x8xf32>
    %147 = tpu.matmul %146, %103, %cst_43 {dimension_numbers = #tpu.dot_dimension_numbers<[1], [1], [0], [0], [0, 0, 1, 0], [], []>} : vector<8x128xbf16>, vector<8x128xbf16>, vector<8x8xf32> -> vector<8x8xf32>
    %cst_44 = arith.constant 1.250000e-01 : f32
    %148 = vector.broadcast %cst_44 : f32 to vector<8x8xf32>
    %149 = arith.mulf %147, %148 : vector<8x8xf32>
    %150 = arith.addf %149, %106 : vector<8x8xf32>
    %cst_45 = arith.constant dense<0xFF800000> : vector<8xf32>
    %151 = vector.multi_reduction <maximumf>, %150, %cst_45 [1] : vector<8x8xf32> to vector<8xf32>
    %152 = vector.shape_cast %151 : vector<8xf32> to vector<8x1xf32>
    %153 = vector.broadcast %152 : vector<8x1xf32> to vector<8x8xf32>
    %154 = arith.subf %150, %153 : vector<8x8xf32>
    %155 = math.exp %154 : vector<8x8xf32>
    %cst_46 = arith.constant dense<0.000000e+00> : vector<8xf32>
    %156 = vector.multi_reduction <add>, %155, %cst_46 [1] : vector<8x8xf32> to vector<8xf32>
    %157 = vector.shape_cast %156 : vector<8xf32> to vector<8x1xf32>
    %158 = tpu.reciprocal %157 {approx = true} : vector<8x1xf32> -> vector<8x1xf32>
    %159 = vector.broadcast %158 : vector<8x1xf32> to vector<8x8xf32>
    %160 = arith.mulf %155, %159 : vector<8x8xf32>
    %161 = arith.truncf %160 : vector<8x8xf32> to vector<8x8xbf16>
    %cst_47 = arith.constant dense<0.000000e+00> : vector<8x128xf32>
    %162 = tpu.matmul %161, %104, %cst_47 {dimension_numbers = #tpu.dot_dimension_numbers<[1], [0], [0], [1], [0, 0, 1, 1], [], []>} : vector<8x8xbf16>, vector<8x128xbf16>, vector<8x128xf32> -> vector<8x128xf32>
    %163 = vector.broadcast %143 : vector<1x128xf32> to vector<8x128xf32>
    %164 = arith.mulf %162, %163 : vector<8x128xf32>
    %165 = arith.addf %136, %164 : vector<8x128xf32>
    %166 = tpu.concatenate %99, %165 in 0 : vector<8x128xf32>, vector<8x128xf32> -> vector<16x128xf32>
    %c0_48 = arith.constant 0 : index
    %c0_49 = arith.constant 0 : index
    %c0_50 = arith.constant 0 : index
    %167 = vector.load %arg7[%c0_48, %c0_49, %c0_50] : memref<2x128x128xbf16, #tpu.memory_space<vmem>>, vector<1x128x128xbf16>
    %168 = vector.shape_cast %167 : vector<1x128x128xbf16> to vector<128x128xbf16>
    %169 = arith.truncf %166 : vector<16x128xf32> to vector<16x128xbf16>
    %cst_51 = arith.constant dense<0.000000e+00> : vector<16x128xf32>
    %170 = tpu.matmul %169, %168, %cst_51 {dimension_numbers = #tpu.dot_dimension_numbers<[1], [0], [0], [1], [0, 0, 1, 1], [], []>} : vector<16x128xbf16>, vector<128x128xbf16>, vector<16x128xf32> -> vector<16x128xf32>
    %c0_52 = arith.constant 0 : index
    %c0_53 = arith.constant 0 : index
    %c0_54 = arith.constant 0 : index
    %171 = vector.load %arg8[%c0_52, %c0_53, %c0_54] : memref<2x1x128xf32, #tpu.memory_space<vmem>>, vector<1x1x128xf32>
    %172 = vector.shape_cast %171 : vector<1x1x128xf32> to vector<1x128xf32>
    %173 = vector.broadcast %172 : vector<1x128xf32> to vector<16x128xf32>
    %174 = arith.addf %170, %173 : vector<16x128xf32>
    %175 = arith.addf %174, %25 : vector<16x128xf32>
    %c0_55 = arith.constant 0 : index
    %c0_56 = arith.constant 0 : index
    %c0_57 = arith.constant 0 : index
    %176 = vector.load %arg9[%c0_55, %c0_56, %c0_57] : memref<2x1x128xf32, #tpu.memory_space<vmem>>, vector<1x1x128xf32>
    %177 = vector.shape_cast %176 : vector<1x1x128xf32> to vector<1x128xf32>
    %c0_58 = arith.constant 0 : index
    %c0_59 = arith.constant 0 : index
    %c0_60 = arith.constant 0 : index
    %178 = vector.load %arg10[%c0_58, %c0_59, %c0_60] : memref<2x1x128xf32, #tpu.memory_space<vmem>>, vector<1x1x128xf32>
    %179 = vector.shape_cast %178 : vector<1x1x128xf32> to vector<1x128xf32>
    %cst_61 = arith.constant dense<0.000000e+00> : vector<16xf32>
    %180 = vector.multi_reduction <add>, %175, %cst_61 [1] : vector<16x128xf32> to vector<16xf32>
    %181 = vector.shape_cast %180 : vector<16xf32> to vector<16x1xf32>
    %cst_62 = arith.constant 1.280000e+02 : f32
    %182 = vector.broadcast %cst_62 : f32 to vector<16x1xf32>
    %183 = arith.divf %181, %182 : vector<16x1xf32>
    %184 = vector.broadcast %183 : vector<16x1xf32> to vector<16x128xf32>
    %185 = arith.subf %175, %184 : vector<16x128xf32>
    %186 = arith.mulf %185, %185 : vector<16x128xf32>
    %cst_63 = arith.constant dense<0.000000e+00> : vector<16xf32>
    %187 = vector.multi_reduction <add>, %186, %cst_63 [1] : vector<16x128xf32> to vector<16xf32>
    %188 = vector.shape_cast %187 : vector<16xf32> to vector<16x1xf32>
    %cst_64 = arith.constant 1.280000e+02 : f32
    %189 = vector.broadcast %cst_64 : f32 to vector<16x1xf32>
    %190 = arith.divf %188, %189 : vector<16x1xf32>
    %191 = vector.broadcast %183 : vector<16x1xf32> to vector<16x128xf32>
    %192 = arith.subf %175, %191 : vector<16x128xf32>
    %cst_65 = arith.constant 9.99999996E-13 : f32
    %193 = vector.broadcast %cst_65 : f32 to vector<16x1xf32>
    %194 = arith.addf %190, %193 : vector<16x1xf32>
    %195 = math.rsqrt %194 : vector<16x1xf32>
    %196 = vector.broadcast %195 : vector<16x1xf32> to vector<16x128xf32>
    %197 = arith.mulf %192, %196 : vector<16x128xf32>
    %198 = vector.broadcast %177 : vector<1x128xf32> to vector<16x128xf32>
    %199 = arith.mulf %197, %198 : vector<16x128xf32>
    %200 = vector.broadcast %179 : vector<1x128xf32> to vector<16x128xf32>
    %201 = arith.addf %199, %200 : vector<16x128xf32>
    %c0_66 = arith.constant 0 : index
    %c0_67 = arith.constant 0 : index
    %c0_68 = arith.constant 0 : index
    %202 = vector.load %arg11[%c0_66, %c0_67, %c0_68] : memref<2x128x256xbf16, #tpu.memory_space<vmem>>, vector<1x128x256xbf16>
    %203 = vector.shape_cast %202 : vector<1x128x256xbf16> to vector<128x256xbf16>
    %204 = arith.truncf %201 : vector<16x128xf32> to vector<16x128xbf16>
    %cst_69 = arith.constant dense<0.000000e+00> : vector<16x256xf32>
    %205 = tpu.matmul %204, %203, %cst_69 {dimension_numbers = #tpu.dot_dimension_numbers<[1], [0], [0], [1], [0, 0, 1, 1], [], []>} : vector<16x128xbf16>, vector<128x256xbf16>, vector<16x256xf32> -> vector<16x256xf32>
    %c0_70 = arith.constant 0 : index
    %c0_71 = arith.constant 0 : index
    %c0_72 = arith.constant 0 : index
    %206 = vector.load %arg12[%c0_70, %c0_71, %c0_72] : memref<2x1x256xf32, #tpu.memory_space<vmem>>, vector<1x1x256xf32>
    %207 = vector.shape_cast %206 : vector<1x1x256xf32> to vector<1x256xf32>
    %208 = vector.broadcast %207 : vector<1x256xf32> to vector<16x256xf32>
    %209 = arith.addf %205, %208 : vector<16x256xf32>
    %cst_73 = arith.constant 5.000000e-01 : f32
    %210 = vector.broadcast %cst_73 : f32 to vector<16x256xf32>
    %211 = arith.mulf %210, %209 : vector<16x256xf32>
    %cst_74 = arith.constant 4.471500e-02 : f32
    %212 = vector.broadcast %cst_74 : f32 to vector<16x256xf32>
    %213 = arith.mulf %212, %209 : vector<16x256xf32>
    %214 = arith.mulf %213, %209 : vector<16x256xf32>
    %215 = arith.mulf %214, %209 : vector<16x256xf32>
    %216 = arith.addf %209, %215 : vector<16x256xf32>
    %cst_75 = arith.constant 0.797884583 : f32
    %217 = vector.broadcast %cst_75 : f32 to vector<16x256xf32>
    %218 = arith.mulf %217, %216 : vector<16x256xf32>
    %219 = math.tanh %218 : vector<16x256xf32>
    %cst_76 = arith.constant 1.000000e+00 : f32
    %220 = vector.broadcast %cst_76 : f32 to vector<16x256xf32>
    %221 = arith.addf %220, %219 : vector<16x256xf32>
    %222 = arith.mulf %211, %221 : vector<16x256xf32>
    %c0_77 = arith.constant 0 : index
    %c0_78 = arith.constant 0 : index
    %c0_79 = arith.constant 0 : index
    %223 = vector.load %arg13[%c0_77, %c0_78, %c0_79] : memref<2x256x128xbf16, #tpu.memory_space<vmem>>, vector<1x256x128xbf16>
    %224 = vector.shape_cast %223 : vector<1x256x128xbf16> to vector<256x128xbf16>
    %225 = arith.truncf %222 : vector<16x256xf32> to vector<16x256xbf16>
    %cst_80 = arith.constant dense<0.000000e+00> : vector<16x128xf32>
    %226 = tpu.matmul %225, %224, %cst_80 {dimension_numbers = #tpu.dot_dimension_numbers<[1], [0], [0], [1], [0, 0, 1, 1], [], []>} : vector<16x256xbf16>, vector<256x128xbf16>, vector<16x128xf32> -> vector<16x128xf32>
    %c0_81 = arith.constant 0 : index
    %c0_82 = arith.constant 0 : index
    %c0_83 = arith.constant 0 : index
    %227 = vector.load %arg14[%c0_81, %c0_82, %c0_83] : memref<2x1x128xf32, #tpu.memory_space<vmem>>, vector<1x1x128xf32>
    %228 = vector.shape_cast %227 : vector<1x1x128xf32> to vector<1x128xf32>
    %229 = vector.broadcast %228 : vector<1x128xf32> to vector<16x128xf32>
    %230 = arith.addf %226, %229 : vector<16x128xf32>
    %231 = arith.addf %230, %201 : vector<16x128xf32>
    %c0_84 = arith.constant 0 : index
    %c0_85 = arith.constant 0 : index
    %c0_86 = arith.constant 0 : index
    %232 = vector.load %arg15[%c0_84, %c0_85, %c0_86] : memref<2x1x128xf32, #tpu.memory_space<vmem>>, vector<1x1x128xf32>
    %233 = vector.shape_cast %232 : vector<1x1x128xf32> to vector<1x128xf32>
    %c0_87 = arith.constant 0 : index
    %c0_88 = arith.constant 0 : index
    %c0_89 = arith.constant 0 : index
    %234 = vector.load %arg16[%c0_87, %c0_88, %c0_89] : memref<2x1x128xf32, #tpu.memory_space<vmem>>, vector<1x1x128xf32>
    %235 = vector.shape_cast %234 : vector<1x1x128xf32> to vector<1x128xf32>
    %cst_90 = arith.constant dense<0.000000e+00> : vector<16xf32>
    %236 = vector.multi_reduction <add>, %231, %cst_90 [1] : vector<16x128xf32> to vector<16xf32>
    %237 = vector.shape_cast %236 : vector<16xf32> to vector<16x1xf32>
    %cst_91 = arith.constant 1.280000e+02 : f32
    %238 = vector.broadcast %cst_91 : f32 to vector<16x1xf32>
    %239 = arith.divf %237, %238 : vector<16x1xf32>
    %240 = vector.broadcast %239 : vector<16x1xf32> to vector<16x128xf32>
    %241 = arith.subf %231, %240 : vector<16x128xf32>
    %242 = arith.mulf %241, %241 : vector<16x128xf32>
    %cst_92 = arith.constant dense<0.000000e+00> : vector<16xf32>
    %243 = vector.multi_reduction <add>, %242, %cst_92 [1] : vector<16x128xf32> to vector<16xf32>
    %244 = vector.shape_cast %243 : vector<16xf32> to vector<16x1xf32>
    %cst_93 = arith.constant 1.280000e+02 : f32
    %245 = vector.broadcast %cst_93 : f32 to vector<16x1xf32>
    %246 = arith.divf %244, %245 : vector<16x1xf32>
    %247 = vector.broadcast %239 : vector<16x1xf32> to vector<16x128xf32>
    %248 = arith.subf %231, %247 : vector<16x128xf32>
    %cst_94 = arith.constant 9.99999996E-13 : f32
    %249 = vector.broadcast %cst_94 : f32 to vector<16x1xf32>
    %250 = arith.addf %246, %249 : vector<16x1xf32>
    %251 = math.rsqrt %250 : vector<16x1xf32>
    %252 = vector.broadcast %251 : vector<16x1xf32> to vector<16x128xf32>
    %253 = arith.mulf %248, %252 : vector<16x128xf32>
    %254 = vector.broadcast %233 : vector<1x128xf32> to vector<16x128xf32>
    %255 = arith.mulf %253, %254 : vector<16x128xf32>
    %256 = vector.broadcast %235 : vector<1x128xf32> to vector<16x128xf32>
    %257 = arith.addf %255, %256 : vector<16x128xf32>
    %c1_95 = arith.constant 1 : index
    %c0_96 = arith.constant 0 : index
    %c0_97 = arith.constant 0 : index
    %258 = vector.load %arg5[%c1_95, %c0_96, %c0_97] : memref<2x128x384xbf16, #tpu.memory_space<vmem>>, vector<1x128x384xbf16>
    %259 = vector.shape_cast %258 : vector<1x128x384xbf16> to vector<128x384xbf16>
    %260 = arith.truncf %257 : vector<16x128xf32> to vector<16x128xbf16>
    %cst_98 = arith.constant dense<0.000000e+00> : vector<16x384xf32>
    %261 = tpu.matmul %260, %259, %cst_98 {dimension_numbers = #tpu.dot_dimension_numbers<[1], [0], [0], [1], [0, 0, 1, 1], [], []>} : vector<16x128xbf16>, vector<128x384xbf16>, vector<16x384xf32> -> vector<16x384xf32>
    %c1_99 = arith.constant 1 : index
    %c0_100 = arith.constant 0 : index
    %c0_101 = arith.constant 0 : index
    %262 = vector.load %arg6[%c1_99, %c0_100, %c0_101] : memref<2x1x384xf32, #tpu.memory_space<vmem>>, vector<1x1x384xf32>
    %263 = vector.shape_cast %262 : vector<1x1x384xf32> to vector<1x384xf32>
    %264 = vector.broadcast %263 : vector<1x384xf32> to vector<16x384xf32>
    %265 = arith.addf %261, %264 : vector<16x384xf32>
    %266 = vector.extract_strided_slice %265 {offsets = [0, 0], sizes = [8, 128], strides = [1, 1]} : vector<16x384xf32> to vector<8x128xf32>
    %267 = vector.extract_strided_slice %265 {offsets = [0, 128], sizes = [8, 128], strides = [1, 1]} : vector<16x384xf32> to vector<8x128xf32>
    %268 = vector.extract_strided_slice %265 {offsets = [0, 256], sizes = [8, 128], strides = [1, 1]} : vector<16x384xf32> to vector<8x128xf32>
    %269 = arith.truncf %267 : vector<8x128xf32> to vector<8x128xbf16>
    %270 = arith.truncf %268 : vector<8x128xf32> to vector<8x128xbf16>
    %c0_102 = arith.constant 0 : index
    %c0_103 = arith.constant 0 : index
    %c0_104 = arith.constant 0 : index
    %271 = vector.load %arg2[%c0_102, %c0_103, %c0_104] : memref<2x8x8xf32, #tpu.memory_space<vmem>>, vector<1x8x8xf32>
    %272 = vector.shape_cast %271 : vector<1x8x8xf32> to vector<8x8xf32>
    %cst_105 = arith.constant 0.000000e+00 : f32
    %273 = vector.broadcast %cst_105 : f32 to vector<8x128xf32>
    %c0_i32_106 = arith.constant 0 : i32
    %274 = vector.broadcast %c0_i32_106 : i32 to vector<1x128xi32>
    %275 = arith.cmpi sge, %0, %274 : vector<1x128xi32>
    %c64_i32_107 = arith.constant 64 : i32
    %276 = vector.broadcast %c64_i32_107 : i32 to vector<1x128xi32>
    %277 = arith.cmpi slt, %0, %276 : vector<1x128xi32>
    %278 = arith.andi %275, %277 : vector<1x128xi1>
    %279 = arith.extui %278 : vector<1x128xi1> to vector<1x128xi32>
    %280 = arith.sitofp %279 : vector<1x128xi32> to vector<1x128xf32>
    %281 = vector.broadcast %280 : vector<1x128xf32> to vector<8x128xf32>
    %282 = arith.mulf %266, %281 : vector<8x128xf32>
    %283 = arith.truncf %282 : vector<8x128xf32> to vector<8x128xbf16>
    %cst_108 = arith.constant dense<0.000000e+00> : vector<8x8xf32>
    %284 = tpu.matmul %283, %269, %cst_108 {dimension_numbers = #tpu.dot_dimension_numbers<[1], [1], [0], [0], [0, 0, 1, 0], [], []>} : vector<8x128xbf16>, vector<8x128xbf16>, vector<8x8xf32> -> vector<8x8xf32>
    %cst_109 = arith.constant 1.250000e-01 : f32
    %285 = vector.broadcast %cst_109 : f32 to vector<8x8xf32>
    %286 = arith.mulf %284, %285 : vector<8x8xf32>
    %287 = arith.addf %286, %272 : vector<8x8xf32>
    %cst_110 = arith.constant dense<0xFF800000> : vector<8xf32>
    %288 = vector.multi_reduction <maximumf>, %287, %cst_110 [1] : vector<8x8xf32> to vector<8xf32>
    %289 = vector.shape_cast %288 : vector<8xf32> to vector<8x1xf32>
    %290 = vector.broadcast %289 : vector<8x1xf32> to vector<8x8xf32>
    %291 = arith.subf %287, %290 : vector<8x8xf32>
    %292 = math.exp %291 : vector<8x8xf32>
    %cst_111 = arith.constant dense<0.000000e+00> : vector<8xf32>
    %293 = vector.multi_reduction <add>, %292, %cst_111 [1] : vector<8x8xf32> to vector<8xf32>
    %294 = vector.shape_cast %293 : vector<8xf32> to vector<8x1xf32>
    %295 = tpu.reciprocal %294 {approx = true} : vector<8x1xf32> -> vector<8x1xf32>
    %296 = vector.broadcast %295 : vector<8x1xf32> to vector<8x8xf32>
    %297 = arith.mulf %292, %296 : vector<8x8xf32>
    %298 = arith.truncf %297 : vector<8x8xf32> to vector<8x8xbf16>
    %cst_112 = arith.constant dense<0.000000e+00> : vector<8x128xf32>
    %299 = tpu.matmul %298, %270, %cst_112 {dimension_numbers = #tpu.dot_dimension_numbers<[1], [0], [0], [1], [0, 0, 1, 1], [], []>} : vector<8x8xbf16>, vector<8x128xbf16>, vector<8x128xf32> -> vector<8x128xf32>
    %300 = vector.broadcast %280 : vector<1x128xf32> to vector<8x128xf32>
    %301 = arith.mulf %299, %300 : vector<8x128xf32>
    %302 = arith.addf %273, %301 : vector<8x128xf32>
    %c64_i32_113 = arith.constant 64 : i32
    %303 = vector.broadcast %c64_i32_113 : i32 to vector<1x128xi32>
    %304 = arith.cmpi sge, %0, %303 : vector<1x128xi32>
    %c128_i32_114 = arith.constant 128 : i32
    %305 = vector.broadcast %c128_i32_114 : i32 to vector<1x128xi32>
    %306 = arith.cmpi slt, %0, %305 : vector<1x128xi32>
    %307 = arith.andi %304, %306 : vector<1x128xi1>
    %308 = arith.extui %307 : vector<1x128xi1> to vector<1x128xi32>
    %309 = arith.sitofp %308 : vector<1x128xi32> to vector<1x128xf32>
    %310 = vector.broadcast %309 : vector<1x128xf32> to vector<8x128xf32>
    %311 = arith.mulf %266, %310 : vector<8x128xf32>
    %312 = arith.truncf %311 : vector<8x128xf32> to vector<8x128xbf16>
    %cst_115 = arith.constant dense<0.000000e+00> : vector<8x8xf32>
    %313 = tpu.matmul %312, %269, %cst_115 {dimension_numbers = #tpu.dot_dimension_numbers<[1], [1], [0], [0], [0, 0, 1, 0], [], []>} : vector<8x128xbf16>, vector<8x128xbf16>, vector<8x8xf32> -> vector<8x8xf32>
    %cst_116 = arith.constant 1.250000e-01 : f32
    %314 = vector.broadcast %cst_116 : f32 to vector<8x8xf32>
    %315 = arith.mulf %313, %314 : vector<8x8xf32>
    %316 = arith.addf %315, %272 : vector<8x8xf32>
    %cst_117 = arith.constant dense<0xFF800000> : vector<8xf32>
    %317 = vector.multi_reduction <maximumf>, %316, %cst_117 [1] : vector<8x8xf32> to vector<8xf32>
    %318 = vector.shape_cast %317 : vector<8xf32> to vector<8x1xf32>
    %319 = vector.broadcast %318 : vector<8x1xf32> to vector<8x8xf32>
    %320 = arith.subf %316, %319 : vector<8x8xf32>
    %321 = math.exp %320 : vector<8x8xf32>
    %cst_118 = arith.constant dense<0.000000e+00> : vector<8xf32>
    %322 = vector.multi_reduction <add>, %321, %cst_118 [1] : vector<8x8xf32> to vector<8xf32>
    %323 = vector.shape_cast %322 : vector<8xf32> to vector<8x1xf32>
    %324 = tpu.reciprocal %323 {approx = true} : vector<8x1xf32> -> vector<8x1xf32>
    %325 = vector.broadcast %324 : vector<8x1xf32> to vector<8x8xf32>
    %326 = arith.mulf %321, %325 : vector<8x8xf32>
    %327 = arith.truncf %326 : vector<8x8xf32> to vector<8x8xbf16>
    %cst_119 = arith.constant dense<0.000000e+00> : vector<8x128xf32>
    %328 = tpu.matmul %327, %270, %cst_119 {dimension_numbers = #tpu.dot_dimension_numbers<[1], [0], [0], [1], [0, 0, 1, 1], [], []>} : vector<8x8xbf16>, vector<8x128xbf16>, vector<8x128xf32> -> vector<8x128xf32>
    %329 = vector.broadcast %309 : vector<1x128xf32> to vector<8x128xf32>
    %330 = arith.mulf %328, %329 : vector<8x128xf32>
    %331 = arith.addf %302, %330 : vector<8x128xf32>
    %332 = vector.extract_strided_slice %265 {offsets = [8, 0], sizes = [8, 128], strides = [1, 1]} : vector<16x384xf32> to vector<8x128xf32>
    %333 = vector.extract_strided_slice %265 {offsets = [8, 128], sizes = [8, 128], strides = [1, 1]} : vector<16x384xf32> to vector<8x128xf32>
    %334 = vector.extract_strided_slice %265 {offsets = [8, 256], sizes = [8, 128], strides = [1, 1]} : vector<16x384xf32> to vector<8x128xf32>
    %335 = arith.truncf %333 : vector<8x128xf32> to vector<8x128xbf16>
    %336 = arith.truncf %334 : vector<8x128xf32> to vector<8x128xbf16>
    %c1_120 = arith.constant 1 : index
    %c0_121 = arith.constant 0 : index
    %c0_122 = arith.constant 0 : index
    %337 = vector.load %arg2[%c1_120, %c0_121, %c0_122] : memref<2x8x8xf32, #tpu.memory_space<vmem>>, vector<1x8x8xf32>
    %338 = vector.shape_cast %337 : vector<1x8x8xf32> to vector<8x8xf32>
    %cst_123 = arith.constant 0.000000e+00 : f32
    %339 = vector.broadcast %cst_123 : f32 to vector<8x128xf32>
    %c0_i32_124 = arith.constant 0 : i32
    %340 = vector.broadcast %c0_i32_124 : i32 to vector<1x128xi32>
    %341 = arith.cmpi sge, %0, %340 : vector<1x128xi32>
    %c64_i32_125 = arith.constant 64 : i32
    %342 = vector.broadcast %c64_i32_125 : i32 to vector<1x128xi32>
    %343 = arith.cmpi slt, %0, %342 : vector<1x128xi32>
    %344 = arith.andi %341, %343 : vector<1x128xi1>
    %345 = arith.extui %344 : vector<1x128xi1> to vector<1x128xi32>
    %346 = arith.sitofp %345 : vector<1x128xi32> to vector<1x128xf32>
    %347 = vector.broadcast %346 : vector<1x128xf32> to vector<8x128xf32>
    %348 = arith.mulf %332, %347 : vector<8x128xf32>
    %349 = arith.truncf %348 : vector<8x128xf32> to vector<8x128xbf16>
    %cst_126 = arith.constant dense<0.000000e+00> : vector<8x8xf32>
    %350 = tpu.matmul %349, %335, %cst_126 {dimension_numbers = #tpu.dot_dimension_numbers<[1], [1], [0], [0], [0, 0, 1, 0], [], []>} : vector<8x128xbf16>, vector<8x128xbf16>, vector<8x8xf32> -> vector<8x8xf32>
    %cst_127 = arith.constant 1.250000e-01 : f32
    %351 = vector.broadcast %cst_127 : f32 to vector<8x8xf32>
    %352 = arith.mulf %350, %351 : vector<8x8xf32>
    %353 = arith.addf %352, %338 : vector<8x8xf32>
    %cst_128 = arith.constant dense<0xFF800000> : vector<8xf32>
    %354 = vector.multi_reduction <maximumf>, %353, %cst_128 [1] : vector<8x8xf32> to vector<8xf32>
    %355 = vector.shape_cast %354 : vector<8xf32> to vector<8x1xf32>
    %356 = vector.broadcast %355 : vector<8x1xf32> to vector<8x8xf32>
    %357 = arith.subf %353, %356 : vector<8x8xf32>
    %358 = math.exp %357 : vector<8x8xf32>
    %cst_129 = arith.constant dense<0.000000e+00> : vector<8xf32>
    %359 = vector.multi_reduction <add>, %358, %cst_129 [1] : vector<8x8xf32> to vector<8xf32>
    %360 = vector.shape_cast %359 : vector<8xf32> to vector<8x1xf32>
    %361 = tpu.reciprocal %360 {approx = true} : vector<8x1xf32> -> vector<8x1xf32>
    %362 = vector.broadcast %361 : vector<8x1xf32> to vector<8x8xf32>
    %363 = arith.mulf %358, %362 : vector<8x8xf32>
    %364 = arith.truncf %363 : vector<8x8xf32> to vector<8x8xbf16>
    %cst_130 = arith.constant dense<0.000000e+00> : vector<8x128xf32>
    %365 = tpu.matmul %364, %336, %cst_130 {dimension_numbers = #tpu.dot_dimension_numbers<[1], [0], [0], [1], [0, 0, 1, 1], [], []>} : vector<8x8xbf16>, vector<8x128xbf16>, vector<8x128xf32> -> vector<8x128xf32>
    %366 = vector.broadcast %346 : vector<1x128xf32> to vector<8x128xf32>
    %367 = arith.mulf %365, %366 : vector<8x128xf32>
    %368 = arith.addf %339, %367 : vector<8x128xf32>
    %c64_i32_131 = arith.constant 64 : i32
    %369 = vector.broadcast %c64_i32_131 : i32 to vector<1x128xi32>
    %370 = arith.cmpi sge, %0, %369 : vector<1x128xi32>
    %c128_i32_132 = arith.constant 128 : i32
    %371 = vector.broadcast %c128_i32_132 : i32 to vector<1x128xi32>
    %372 = arith.cmpi slt, %0, %371 : vector<1x128xi32>
    %373 = arith.andi %370, %372 : vector<1x128xi1>
    %374 = arith.extui %373 : vector<1x128xi1> to vector<1x128xi32>
    %375 = arith.sitofp %374 : vector<1x128xi32> to vector<1x128xf32>
    %376 = vector.broadcast %375 : vector<1x128xf32> to vector<8x128xf32>
    %377 = arith.mulf %332, %376 : vector<8x128xf32>
    %378 = arith.truncf %377 : vector<8x128xf32> to vector<8x128xbf16>
    %cst_133 = arith.constant dense<0.000000e+00> : vector<8x8xf32>
    %379 = tpu.matmul %378, %335, %cst_133 {dimension_numbers = #tpu.dot_dimension_numbers<[1], [1], [0], [0], [0, 0, 1, 0], [], []>} : vector<8x128xbf16>, vector<8x128xbf16>, vector<8x8xf32> -> vector<8x8xf32>
    %cst_134 = arith.constant 1.250000e-01 : f32
    %380 = vector.broadcast %cst_134 : f32 to vector<8x8xf32>
    %381 = arith.mulf %379, %380 : vector<8x8xf32>
    %382 = arith.addf %381, %338 : vector<8x8xf32>
    %cst_135 = arith.constant dense<0xFF800000> : vector<8xf32>
    %383 = vector.multi_reduction <maximumf>, %382, %cst_135 [1] : vector<8x8xf32> to vector<8xf32>
    %384 = vector.shape_cast %383 : vector<8xf32> to vector<8x1xf32>
    %385 = vector.broadcast %384 : vector<8x1xf32> to vector<8x8xf32>
    %386 = arith.subf %382, %385 : vector<8x8xf32>
    %387 = math.exp %386 : vector<8x8xf32>
    %cst_136 = arith.constant dense<0.000000e+00> : vector<8xf32>
    %388 = vector.multi_reduction <add>, %387, %cst_136 [1] : vector<8x8xf32> to vector<8xf32>
    %389 = vector.shape_cast %388 : vector<8xf32> to vector<8x1xf32>
    %390 = tpu.reciprocal %389 {approx = true} : vector<8x1xf32> -> vector<8x1xf32>
    %391 = vector.broadcast %390 : vector<8x1xf32> to vector<8x8xf32>
    %392 = arith.mulf %387, %391 : vector<8x8xf32>
    %393 = arith.truncf %392 : vector<8x8xf32> to vector<8x8xbf16>
    %cst_137 = arith.constant dense<0.000000e+00> : vector<8x128xf32>
    %394 = tpu.matmul %393, %336, %cst_137 {dimension_numbers = #tpu.dot_dimension_numbers<[1], [0], [0], [1], [0, 0, 1, 1], [], []>} : vector<8x8xbf16>, vector<8x128xbf16>, vector<8x128xf32> -> vector<8x128xf32>
    %395 = vector.broadcast %375 : vector<1x128xf32> to vector<8x128xf32>
    %396 = arith.mulf %394, %395 : vector<8x128xf32>
    %397 = arith.addf %368, %396 : vector<8x128xf32>
    %398 = tpu.concatenate %331, %397 in 0 : vector<8x128xf32>, vector<8x128xf32> -> vector<16x128xf32>
    %c1_138 = arith.constant 1 : index
    %c0_139 = arith.constant 0 : index
    %c0_140 = arith.constant 0 : index
    %399 = vector.load %arg7[%c1_138, %c0_139, %c0_140] : memref<2x128x128xbf16, #tpu.memory_space<vmem>>, vector<1x128x128xbf16>
    %400 = vector.shape_cast %399 : vector<1x128x128xbf16> to vector<128x128xbf16>
    %401 = arith.truncf %398 : vector<16x128xf32> to vector<16x128xbf16>
    %cst_141 = arith.constant dense<0.000000e+00> : vector<16x128xf32>
    %402 = tpu.matmul %401, %400, %cst_141 {dimension_numbers = #tpu.dot_dimension_numbers<[1], [0], [0], [1], [0, 0, 1, 1], [], []>} : vector<16x128xbf16>, vector<128x128xbf16>, vector<16x128xf32> -> vector<16x128xf32>
    %c1_142 = arith.constant 1 : index
    %c0_143 = arith.constant 0 : index
    %c0_144 = arith.constant 0 : index
    %403 = vector.load %arg8[%c1_142, %c0_143, %c0_144] : memref<2x1x128xf32, #tpu.memory_space<vmem>>, vector<1x1x128xf32>
    %404 = vector.shape_cast %403 : vector<1x1x128xf32> to vector<1x128xf32>
    %405 = vector.broadcast %404 : vector<1x128xf32> to vector<16x128xf32>
    %406 = arith.addf %402, %405 : vector<16x128xf32>
    %407 = arith.addf %406, %257 : vector<16x128xf32>
    %c1_145 = arith.constant 1 : index
    %c0_146 = arith.constant 0 : index
    %c0_147 = arith.constant 0 : index
    %408 = vector.load %arg9[%c1_145, %c0_146, %c0_147] : memref<2x1x128xf32, #tpu.memory_space<vmem>>, vector<1x1x128xf32>
    %409 = vector.shape_cast %408 : vector<1x1x128xf32> to vector<1x128xf32>
    %c1_148 = arith.constant 1 : index
    %c0_149 = arith.constant 0 : index
    %c0_150 = arith.constant 0 : index
    %410 = vector.load %arg10[%c1_148, %c0_149, %c0_150] : memref<2x1x128xf32, #tpu.memory_space<vmem>>, vector<1x1x128xf32>
    %411 = vector.shape_cast %410 : vector<1x1x128xf32> to vector<1x128xf32>
    %cst_151 = arith.constant dense<0.000000e+00> : vector<16xf32>
    %412 = vector.multi_reduction <add>, %407, %cst_151 [1] : vector<16x128xf32> to vector<16xf32>
    %413 = vector.shape_cast %412 : vector<16xf32> to vector<16x1xf32>
    %cst_152 = arith.constant 1.280000e+02 : f32
    %414 = vector.broadcast %cst_152 : f32 to vector<16x1xf32>
    %415 = arith.divf %413, %414 : vector<16x1xf32>
    %416 = vector.broadcast %415 : vector<16x1xf32> to vector<16x128xf32>
    %417 = arith.subf %407, %416 : vector<16x128xf32>
    %418 = arith.mulf %417, %417 : vector<16x128xf32>
    %cst_153 = arith.constant dense<0.000000e+00> : vector<16xf32>
    %419 = vector.multi_reduction <add>, %418, %cst_153 [1] : vector<16x128xf32> to vector<16xf32>
    %420 = vector.shape_cast %419 : vector<16xf32> to vector<16x1xf32>
    %cst_154 = arith.constant 1.280000e+02 : f32
    %421 = vector.broadcast %cst_154 : f32 to vector<16x1xf32>
    %422 = arith.divf %420, %421 : vector<16x1xf32>
    %423 = vector.broadcast %415 : vector<16x1xf32> to vector<16x128xf32>
    %424 = arith.subf %407, %423 : vector<16x128xf32>
    %cst_155 = arith.constant 9.99999996E-13 : f32
    %425 = vector.broadcast %cst_155 : f32 to vector<16x1xf32>
    %426 = arith.addf %422, %425 : vector<16x1xf32>
    %427 = math.rsqrt %426 : vector<16x1xf32>
    %428 = vector.broadcast %427 : vector<16x1xf32> to vector<16x128xf32>
    %429 = arith.mulf %424, %428 : vector<16x128xf32>
    %430 = vector.broadcast %409 : vector<1x128xf32> to vector<16x128xf32>
    %431 = arith.mulf %429, %430 : vector<16x128xf32>
    %432 = vector.broadcast %411 : vector<1x128xf32> to vector<16x128xf32>
    %433 = arith.addf %431, %432 : vector<16x128xf32>
    %c1_156 = arith.constant 1 : index
    %c0_157 = arith.constant 0 : index
    %c0_158 = arith.constant 0 : index
    %434 = vector.load %arg11[%c1_156, %c0_157, %c0_158] : memref<2x128x256xbf16, #tpu.memory_space<vmem>>, vector<1x128x256xbf16>
    %435 = vector.shape_cast %434 : vector<1x128x256xbf16> to vector<128x256xbf16>
    %436 = arith.truncf %433 : vector<16x128xf32> to vector<16x128xbf16>
    %cst_159 = arith.constant dense<0.000000e+00> : vector<16x256xf32>
    %437 = tpu.matmul %436, %435, %cst_159 {dimension_numbers = #tpu.dot_dimension_numbers<[1], [0], [0], [1], [0, 0, 1, 1], [], []>} : vector<16x128xbf16>, vector<128x256xbf16>, vector<16x256xf32> -> vector<16x256xf32>
    %c1_160 = arith.constant 1 : index
    %c0_161 = arith.constant 0 : index
    %c0_162 = arith.constant 0 : index
    %438 = vector.load %arg12[%c1_160, %c0_161, %c0_162] : memref<2x1x256xf32, #tpu.memory_space<vmem>>, vector<1x1x256xf32>
    %439 = vector.shape_cast %438 : vector<1x1x256xf32> to vector<1x256xf32>
    %440 = vector.broadcast %439 : vector<1x256xf32> to vector<16x256xf32>
    %441 = arith.addf %437, %440 : vector<16x256xf32>
    %cst_163 = arith.constant 5.000000e-01 : f32
    %442 = vector.broadcast %cst_163 : f32 to vector<16x256xf32>
    %443 = arith.mulf %442, %441 : vector<16x256xf32>
    %cst_164 = arith.constant 4.471500e-02 : f32
    %444 = vector.broadcast %cst_164 : f32 to vector<16x256xf32>
    %445 = arith.mulf %444, %441 : vector<16x256xf32>
    %446 = arith.mulf %445, %441 : vector<16x256xf32>
    %447 = arith.mulf %446, %441 : vector<16x256xf32>
    %448 = arith.addf %441, %447 : vector<16x256xf32>
    %cst_165 = arith.constant 0.797884583 : f32
    %449 = vector.broadcast %cst_165 : f32 to vector<16x256xf32>
    %450 = arith.mulf %449, %448 : vector<16x256xf32>
    %451 = math.tanh %450 : vector<16x256xf32>
    %cst_166 = arith.constant 1.000000e+00 : f32
    %452 = vector.broadcast %cst_166 : f32 to vector<16x256xf32>
    %453 = arith.addf %452, %451 : vector<16x256xf32>
    %454 = arith.mulf %443, %453 : vector<16x256xf32>
    %c1_167 = arith.constant 1 : index
    %c0_168 = arith.constant 0 : index
    %c0_169 = arith.constant 0 : index
    %455 = vector.load %arg13[%c1_167, %c0_168, %c0_169] : memref<2x256x128xbf16, #tpu.memory_space<vmem>>, vector<1x256x128xbf16>
    %456 = vector.shape_cast %455 : vector<1x256x128xbf16> to vector<256x128xbf16>
    %457 = arith.truncf %454 : vector<16x256xf32> to vector<16x256xbf16>
    %cst_170 = arith.constant dense<0.000000e+00> : vector<16x128xf32>
    %458 = tpu.matmul %457, %456, %cst_170 {dimension_numbers = #tpu.dot_dimension_numbers<[1], [0], [0], [1], [0, 0, 1, 1], [], []>} : vector<16x256xbf16>, vector<256x128xbf16>, vector<16x128xf32> -> vector<16x128xf32>
    %c1_171 = arith.constant 1 : index
    %c0_172 = arith.constant 0 : index
    %c0_173 = arith.constant 0 : index
    %459 = vector.load %arg14[%c1_171, %c0_172, %c0_173] : memref<2x1x128xf32, #tpu.memory_space<vmem>>, vector<1x1x128xf32>
    %460 = vector.shape_cast %459 : vector<1x1x128xf32> to vector<1x128xf32>
    %461 = vector.broadcast %460 : vector<1x128xf32> to vector<16x128xf32>
    %462 = arith.addf %458, %461 : vector<16x128xf32>
    %463 = arith.addf %462, %433 : vector<16x128xf32>
    %c1_174 = arith.constant 1 : index
    %c0_175 = arith.constant 0 : index
    %c0_176 = arith.constant 0 : index
    %464 = vector.load %arg15[%c1_174, %c0_175, %c0_176] : memref<2x1x128xf32, #tpu.memory_space<vmem>>, vector<1x1x128xf32>
    %465 = vector.shape_cast %464 : vector<1x1x128xf32> to vector<1x128xf32>
    %c1_177 = arith.constant 1 : index
    %c0_178 = arith.constant 0 : index
    %c0_179 = arith.constant 0 : index
    %466 = vector.load %arg16[%c1_177, %c0_178, %c0_179] : memref<2x1x128xf32, #tpu.memory_space<vmem>>, vector<1x1x128xf32>
    %467 = vector.shape_cast %466 : vector<1x1x128xf32> to vector<1x128xf32>
    %cst_180 = arith.constant dense<0.000000e+00> : vector<16xf32>
    %468 = vector.multi_reduction <add>, %463, %cst_180 [1] : vector<16x128xf32> to vector<16xf32>
    %469 = vector.shape_cast %468 : vector<16xf32> to vector<16x1xf32>
    %cst_181 = arith.constant 1.280000e+02 : f32
    %470 = vector.broadcast %cst_181 : f32 to vector<16x1xf32>
    %471 = arith.divf %469, %470 : vector<16x1xf32>
    %472 = vector.broadcast %471 : vector<16x1xf32> to vector<16x128xf32>
    %473 = arith.subf %463, %472 : vector<16x128xf32>
    %474 = arith.mulf %473, %473 : vector<16x128xf32>
    %cst_182 = arith.constant dense<0.000000e+00> : vector<16xf32>
    %475 = vector.multi_reduction <add>, %474, %cst_182 [1] : vector<16x128xf32> to vector<16xf32>
    %476 = vector.shape_cast %475 : vector<16xf32> to vector<16x1xf32>
    %cst_183 = arith.constant 1.280000e+02 : f32
    %477 = vector.broadcast %cst_183 : f32 to vector<16x1xf32>
    %478 = arith.divf %476, %477 : vector<16x1xf32>
    %479 = vector.broadcast %471 : vector<16x1xf32> to vector<16x128xf32>
    %480 = arith.subf %463, %479 : vector<16x128xf32>
    %cst_184 = arith.constant 9.99999996E-13 : f32
    %481 = vector.broadcast %cst_184 : f32 to vector<16x1xf32>
    %482 = arith.addf %478, %481 : vector<16x1xf32>
    %483 = math.rsqrt %482 : vector<16x1xf32>
    %484 = vector.broadcast %483 : vector<16x1xf32> to vector<16x128xf32>
    %485 = arith.mulf %480, %484 : vector<16x128xf32>
    %486 = vector.broadcast %465 : vector<1x128xf32> to vector<16x128xf32>
    %487 = arith.mulf %485, %486 : vector<16x128xf32>
    %488 = vector.broadcast %467 : vector<1x128xf32> to vector<16x128xf32>
    %489 = arith.addf %487, %488 : vector<16x128xf32>
    %490 = vector.extract_strided_slice %489 {offsets = [0, 0], sizes = [1, 128], strides = [1, 1]} : vector<16x128xf32> to vector<1x128xf32>
    %491 = vector.extract_strided_slice %489 {offsets = [8, 0], sizes = [1, 128], strides = [1, 1]} : vector<16x128xf32> to vector<1x128xf32>
    %492 = tpu.concatenate %490, %491 in 0 : vector<1x128xf32>, vector<1x128xf32> -> vector<2x128xf32>
    %c0_185 = arith.constant 0 : index
    %c0_186 = arith.constant 0 : index
    %493 = vector.load %arg17[%c0_185, %c0_186] : memref<128x128xbf16, #tpu.memory_space<vmem>>, vector<128x128xbf16>
    %494 = arith.truncf %492 : vector<2x128xf32> to vector<2x128xbf16>
    %cst_187 = arith.constant dense<0.000000e+00> : vector<2x128xf32>
    %495 = tpu.matmul %494, %493, %cst_187 {dimension_numbers = #tpu.dot_dimension_numbers<[1], [0], [0], [1], [0, 0, 1, 1], [], []>} : vector<2x128xbf16>, vector<128x128xbf16>, vector<2x128xf32> -> vector<2x128xf32>
    %c0_188 = arith.constant 0 : index
    %c0_189 = arith.constant 0 : index
    %496 = vector.load %arg18[%c0_188, %c0_189] : memref<1x128xf32, #tpu.memory_space<vmem>>, vector<1x128xf32>
    %497 = vector.broadcast %496 : vector<1x128xf32> to vector<2x128xf32>
    %498 = arith.addf %495, %497 : vector<2x128xf32>
    %499 = math.tanh %498 : vector<2x128xf32>
    %c0_190 = arith.constant 0 : index
    %c0_191 = arith.constant 0 : index
    %500 = vector.load %arg19[%c0_190, %c0_191] : memref<128x128xbf16, #tpu.memory_space<vmem>>, vector<128x128xbf16>
    %501 = arith.truncf %499 : vector<2x128xf32> to vector<2x128xbf16>
    %cst_192 = arith.constant dense<0.000000e+00> : vector<2x128xf32>
    %502 = tpu.matmul %501, %500, %cst_192 {dimension_numbers = #tpu.dot_dimension_numbers<[1], [0], [0], [1], [0, 0, 1, 1], [], []>} : vector<2x128xbf16>, vector<128x128xbf16>, vector<2x128xf32> -> vector<2x128xf32>
    %c0_193 = arith.constant 0 : index
    %c0_194 = arith.constant 0 : index
    %503 = vector.load %arg20[%c0_193, %c0_194] : memref<1x128xf32, #tpu.memory_space<vmem>>, vector<1x128xf32>
    %504 = vector.broadcast %503 : vector<1x128xf32> to vector<2x128xf32>
    %505 = arith.addf %502, %504 : vector<2x128xf32>
    %c0_195 = arith.constant 0 : index
    %c0_196 = arith.constant 0 : index
    %506 = vector.load %arg21[%c0_195, %c0_196] : memref<2x128xf32, #tpu.memory_space<vmem>>, vector<2x128xf32>
    tpu.vector_store %arg21[%c0_195, %c0_196], %505 {strides = array<i32>} : memref<2x128xf32, #tpu.memory_space<vmem>>, vector<2x128xf32>,
    return
  }
  func.func @transform_0(%arg0: i32) -> (i32, i32) {
    %c0_i32 = arith.constant 0 : i32
    %c0_i32_0 = arith.constant 0 : i32
    %c0_i32_1 = arith.constant 0 : i32
    return %c0_i32, %c0_i32_0 : i32, i32
  }
  func.func @transform_1(%arg0: i32) -> (i32, i32, i32) {
    %c0_i32 = arith.constant 0 : i32
    %c0_i32_0 = arith.constant 0 : i32
    %c0_i32_1 = arith.constant 0 : i32
    %c0_i32_2 = arith.constant 0 : i32
    return %c0_i32, %c0_i32_0, %c0_i32_1 : i32, i32, i32
  }
  func.func @transform_2(%arg0: i32) -> (i32, i32) {
    %c0_i32 = arith.constant 0 : i32
    %c0_i32_0 = arith.constant 0 : i32
    %c0_i32_1 = arith.constant 0 : i32
    return %c0_i32, %c0_i32_0 : i32, i32
  }
  func.func @transform_3(%arg0: i32) -> (i32, i32) {
    %c0_i32 = arith.constant 0 : i32
    %c0_i32_0 = arith.constant 0 : i32
    %c0_i32_1 = arith.constant 0 : i32
    return %c0_i32, %c0_i32_0 : i32, i32
  }
  func.func @transform_4(%arg0: i32) -> (i32, i32, i32) {
    %c0_i32 = arith.constant 0 : i32
    %c0_i32_0 = arith.constant 0 : i32
    %c0_i32_1 = arith.constant 0 : i32
    %c0_i32_2 = arith.constant 0 : i32
    return %c0_i32, %c0_i32_0, %c0_i32_1 : i32, i32, i32
  }
  func.func @transform_5(%arg0: i32) -> (i32, i32, i32) {
    %c0_i32 = arith.constant 0 : i32
    %c0_i32_0 = arith.constant 0 : i32
    %c0_i32_1 = arith.constant 0 : i32
    %c0_i32_2 = arith.constant 0 : i32
    return %c0_i32, %c0_i32_0, %c0_i32_1 : i32, i32, i32
  }
  func.func @transform_6(%arg0: i32) -> (i32, i32, i32) {
    %c0_i32 = arith.constant 0 : i32
    %c0_i32_0 = arith.constant 0 : i32
    %c0_i32_1 = arith.constant 0 : i32
    %c0_i32_2 = arith.constant 0 : i32
    return %c0_i32, %c0_i32_0, %c0_i32_1 : i32, i32, i32
  }
  func.func @transform_7(%arg0: i32) -> (i32, i32, i32) {
    %c0_i32 = arith.constant 0 : i32
    %c0_i32_0 = arith.constant 0 : i32
    %c0_i32_1 = arith.constant 0 : i32
    %c0_i32_2 = arith.constant 0 : i32
    return %c0_i32, %c0_i32_0, %c0_i32_1 : i32, i32, i32
  }
  func.func @transform_8(%arg0: i32) -> (i32, i32, i32) {
    %c0_i32 = arith.constant 0 : i32
    %c0_i32_0 = arith.constant 0 : i32
    %c0_i32_1 = arith.constant 0 : i32
    %c0_i32_2 = arith.constant 0 : i32
    return %c0_i32, %c0_i32_0, %c0_i32_1 : i32, i32, i32
  }
  func.func @transform_9(%arg0: i32) -> (i32, i32, i32) {
    %c0_i32 = arith.constant 0 : i32
    %c0_i32_0 = arith.constant 0 : i32
    %c0_i32_1 = arith.constant 0 : i32
    %c0_i32_2 = arith.constant 0 : i32
    return %c0_i32, %c0_i32_0, %c0_i32_1 : i32, i32, i32
  }
  func.func @transform_10(%arg0: i32) -> (i32, i32, i32) {
    %c0_i32 = arith.constant 0 : i32
    %c0_i32_0 = arith.constant 0 : i32
    %c0_i32_1 = arith.constant 0 : i32
    %c0_i32_2 = arith.constant 0 : i32
    return %c0_i32, %c0_i32_0, %c0_i32_1 : i32, i32, i32
  }
  func.func @transform_11(%arg0: i32) -> (i32, i32, i32) {
    %c0_i32 = arith.constant 0 : i32
    %c0_i32_0 = arith.constant 0 : i32
    %c0_i32_1 = arith.constant 0 : i32
    %c0_i32_2 = arith.constant 0 : i32
    return %c0_i32, %c0_i32_0, %c0_i32_1 : i32, i32, i32
  }
  func.func @transform_12(%arg0: i32) -> (i32, i32, i32) {
    %c0_i32 = arith.constant 0 : i32
    %c0_i32_0 = arith.constant 0 : i32
    %c0_i32_1 = arith.constant 0 : i32
    %c0_i32_2 = arith.constant 0 : i32
    return %c0_i32, %c0_i32_0, %c0_i32_1 : i32, i32, i32
  }
  func.func @transform_13(%arg0: i32) -> (i32, i32, i32) {
    %c0_i32 = arith.constant 0 : i32
    %c0_i32_0 = arith.constant 0 : i32
    %c0_i32_1 = arith.constant 0 : i32
    %c0_i32_2 = arith.constant 0 : i32
    return %c0_i32, %c0_i32_0, %c0_i32_1 : i32, i32, i32
  }
  func.func @transform_14(%arg0: i32) -> (i32, i32, i32) {
    %c0_i32 = arith.constant 0 : i32
    %c0_i32_0 = arith.constant 0 : i32
    %c0_i32_1 = arith.constant 0 : i32
    %c0_i32_2 = arith.constant 0 : i32
    return %c0_i32, %c0_i32_0, %c0_i32_1 : i32, i32, i32
  }
  func.func @transform_15(%arg0: i32) -> (i32, i32, i32) {
    %c0_i32 = arith.constant 0 : i32
    %c0_i32_0 = arith.constant 0 : i32
    %c0_i32_1 = arith.constant 0 : i32
    %c0_i32_2 = arith.constant 0 : i32
    return %c0_i32, %c0_i32_0, %c0_i32_1 : i32, i32, i32
  }
  func.func @transform_16(%arg0: i32) -> (i32, i32) {
    %c0_i32 = arith.constant 0 : i32
    %c0_i32_0 = arith.constant 0 : i32
    %c0_i32_1 = arith.constant 0 : i32
    return %c0_i32, %c0_i32_0 : i32, i32
  }
  func.func @transform_17(%arg0: i32) -> (i32, i32) {
    %c0_i32 = arith.constant 0 : i32
    %c0_i32_0 = arith.constant 0 : i32
    %c0_i32_1 = arith.constant 0 : i32
    return %c0_i32, %c0_i32_0 : i32, i32
  }
  func.func @transform_18(%arg0: i32) -> (i32, i32) {
    %c0_i32 = arith.constant 0 : i32
    %c0_i32_0 = arith.constant 0 : i32
    %c0_i32_1 = arith.constant 0 : i32
    return %c0_i32, %c0_i32_0 : i32, i32
  }
  func.func @transform_19(%arg0: i32) -> (i32, i32) {
    %c0_i32 = arith.constant 0 : i32
    %c0_i32_0 = arith.constant 0 : i32
    %c0_i32_1 = arith.constant 0 : i32
    return %c0_i32, %c0_i32_0 : i32, i32
  }
  func.func @transform_20(%arg0: i32) -> (i32, i32) {
    %c0_i32 = arith.constant 0 : i32
    %c0_i32_0 = arith.constant 0 : i32
    %c0_i32_1 = arith.constant 0 : i32
    return %c0_i32, %c0_i32_0 : i32, i32
  }
}

</mosaic_0001>

<llo_original>
// kernel: da_network_forward.1
$region0: #{da_network_forward.1}
  #allocation0 [shape = 'u32[]', space=smem, size = 0x4, offset = 0x4, fixed_abs, tag = 'smem constant byte address 0x4 - core index']
  #allocation1 [shape = 'u32[72,128]{1,0:T(1,128)}', space=vmem, size = 0x9000, scoped, tag = 'internal scratch']
  %s0 = inlined_call_operand.vmem [shape: f32[16,128], index: 0, kind: input, shape index: {}]
  %s1 = inlined_call_operand.vmem [shape: f32[2,8,8], index: 1, kind: input, shape index: {}]
  %s2 = inlined_call_operand.vmem [shape: f32[1,128], index: 2, kind: input, shape index: {}]
  %s3 = inlined_call_operand.vmem [shape: f32[1,128], index: 3, kind: input, shape index: {}]
  %s4 = inlined_call_operand.hbm [shape: bf16[2,128,384], index: 4, kind: input, shape index: {}]
  %s5 = inlined_call_operand.vmem [shape: f32[2,1,384], index: 5, kind: input, shape index: {}]
  %s6 = inlined_call_operand.vmem [shape: bf16[2,128,128], index: 6, kind: input, shape index: {}]
  %s7 = inlined_call_operand.vmem [shape: f32[2,1,128], index: 7, kind: input, shape index: {}]
  %s8 = inlined_call_operand.vmem [shape: f32[2,1,128], index: 8, kind: input, shape index: {}]
  %s9 = inlined_call_operand.vmem [shape: f32[2,1,128], index: 9, kind: input, shape index: {}]
  %s10 = inlined_call_operand.hbm [shape: bf16[2,128,256], index: 10, kind: input, shape index: {}]
  %s11 = inlined_call_operand.vmem [shape: f32[2,1,256], index: 11, kind: input, shape index: {}]
  %s12 = inlined_call_operand.hbm [shape: bf16[2,256,128], index: 12, kind: input, shape index: {}]
  %s13 = inlined_call_operand.vmem [shape: f32[2,1,128], index: 13, kind: input, shape index: {}]
  %s14 = inlined_call_operand.vmem [shape: f32[2,1,128], index: 14, kind: input, shape index: {}]
  %s15 = inlined_call_operand.vmem [shape: f32[2,1,128], index: 15, kind: input, shape index: {}]
  %s16 = inlined_call_operand.vmem [shape: bf16[128,128], index: 16, kind: input, shape index: {}]
  %s17 = inlined_call_operand.vmem [shape: f32[1,128], index: 17, kind: input, shape index: {}]
  %s18 = inlined_call_operand.vmem [shape: bf16[128,128], index: 18, kind: input, shape index: {}]
  %s19 = inlined_call_operand.vmem [shape: f32[1,128], index: 19, kind: input, shape index: {}]
  %s20 = inlined_call_operand.hbm [shape: f32[2,128], index: 20, kind: output, shape index: {}]
  %s21 = sld [smem:[#allocation0]]
  $region102: #{da_network_forward.1} parent=0
    _
  %s23 = ssub.s32 1, %s21
  %s24 = scalar_select 0, %s23, %s21
  $region1: #{da_network_forward.1} parent=0
    #allocation2 [shape = 'u8[196608]{0}', space=vmem, size = 0x30000, scoped, tag = 'input window, operand 4, single buffered']
    #allocation3 [shape = 's32[1]{0}', space=sflag, size = 0x4, scoped, tag = 'scoped memory for da_network_forward.1']
    #allocation4 [shape = 's32[1]{0}', space=sflag, size = 0x4, scoped, tag = 'scoped memory for da_network_forward.1']
    #allocation5 [shape = 'u8[131072]{0}', space=vmem, size = 0x20000, scoped, tag = 'input window, operand 10, single buffered']
    #allocation6 [shape = 's32[1]{0}', space=sflag, size = 0x4, scoped, tag = 'scoped memory for da_network_forward.1']
    #allocation7 [shape = 'u8[131072]{0}', space=vmem, size = 0x20000, scoped, tag = 'input window, operand 12, single buffered']
    #allocation8 [shape = 'u8[1024]{0}', space=vmem, size = 0x400, scoped, tag = 'output window, operand 0, single buffered']
    %25 = vsyncpa [#allocation3], 0
    %26 = vsyncpa [#allocation6], 0
    %27 = vsyncpa [#allocation4], 0
    // Predicated region
    $region2: #{da_network_forward.1} parent=1 // pred_check
      _
    $region3: #{da_network_forward.1} parent=1 // pred_check_branch
      %29 = sbr.rel (0) target = $region5
    $region4: #{da_network_forward.1} parent=1 // pred_region
      _
    $region5: #{da_network_forward.1} parent=1 // pred_fallthru
      _
    // Predicated region
    $region6: #{da_network_forward.1} parent=1 // pred_check
      _
    $region7: #{da_network_forward.1} parent=1 // pred_check_branch
      %31 = sbr.rel (0) target = $region9
    $region8: #{da_network_forward.1} parent=1 // pred_region
      _
    $region9: #{da_network_forward.1} parent=1 // pred_fallthru
      _
    // Predicated region
    $region10: #{da_network_forward.1} parent=1 // pred_check
      _
    $region11: #{da_network_forward.1} parent=1 // pred_check_branch
      %33 = sbr.rel (0) target = $region13
    $region12: #{da_network_forward.1} parent=1 // pred_region
      _
    $region13: #{da_network_forward.1} parent=1 // pred_fallthru
      _
    // Predicated region
    $region14: #{da_network_forward.1} parent=1 // pred_check
      _
    $region15: #{da_network_forward.1} parent=1 // pred_check_branch
      %35 = sbr.rel (0) target = $region17
    $region16: #{da_network_forward.1} parent=1 // pred_region
      _
    $region17: #{da_network_forward.1} parent=1 // pred_fallthru
      _
    // Predicated region
    $region18: #{da_network_forward.1} parent=1 // pred_check
      _
    $region19: #{da_network_forward.1} parent=1 // pred_check_branch
      %37 = sbr.rel (0) target = $region21
    $region20: #{da_network_forward.1} parent=1 // pred_region
      %39 = vsyncadd [#allocation3], 0
      %s40 = sshll.u32 %s4, 4
      %s41 = int_to_ptr.hbm [resolvable:$true] %s40
      %s42 = sshll.u32 [#allocation2], 4
      %s43 = int_to_ptr.vmem [resolvable:$true] %s42
      %48 = dma.hbm_to_vmem [thread:$0]  %s41, 6144, %s43, [#allocation3], 192, 192, 12
    $region21: #{da_network_forward.1} parent=1 // pred_fallthru
      _
    // Predicated region
    $region22: #{da_network_forward.1} parent=1 // pred_check
      _
    $region23: #{da_network_forward.1} parent=1 // pred_check_branch
      %50 = sbr.rel (0) target = $region25
    $region24: #{da_network_forward.1} parent=1 // pred_region
      _
    $region25: #{da_network_forward.1} parent=1 // pred_fallthru
      _
    // Predicated region
    $region26: #{da_network_forward.1} parent=1 // pred_check
      _
    $region27: #{da_network_forward.1} parent=1 // pred_check_branch
      %52 = sbr.rel (0) target = $region29
    $region28: #{da_network_forward.1} parent=1 // pred_region
      _
    $region29: #{da_network_forward.1} parent=1 // pred_fallthru
      _
    // Predicated region
    $region30: #{da_network_forward.1} parent=1 // pred_check
      _
    $region31: #{da_network_forward.1} parent=1 // pred_check_branch
      %54 = sbr.rel (0) target = $region33
    $region32: #{da_network_forward.1} parent=1 // pred_region
      _
    $region33: #{da_network_forward.1} parent=1 // pred_fallthru
      _
    // Predicated region
    $region34: #{da_network_forward.1} parent=1 // pred_check
      _
    $region35: #{da_network_forward.1} parent=1 // pred_check_branch
      %56 = sbr.rel (0) target = $region37
    $region36: #{da_network_forward.1} parent=1 // pred_region
      _
    $region37: #{da_network_forward.1} parent=1 // pred_fallthru
      _
    // Predicated region
    $region38: #{da_network_forward.1} parent=1 // pred_check
      _
    $region39: #{da_network_forward.1} parent=1 // pred_check_branch
      %58 = sbr.rel (0) target = $region41
    $region40: #{da_network_forward.1} parent=1 // pred_region
      _
    $region41: #{da_network_forward.1} parent=1 // pred_fallthru
      _
    // Predicated region
    $region42: #{da_network_forward.1} parent=1 // pred_check
      _
    $region43: #{da_network_forward.1} parent=1 // pred_check_branch
      %60 = sbr.rel (0) target = $region45
    $region44: #{da_network_forward.1} parent=1 // pred_region
      %62 = vsyncadd [#allocation6], 0
      %s63 = sshll.u32 %s10, 4
      %s64 = int_to_ptr.hbm [resolvable:$true] %s63
      %s65 = sshll.u32 [#allocation5], 4
      %s66 = int_to_ptr.vmem [resolvable:$true] %s65
      %71 = dma.hbm_to_vmem [thread:$0]  %s64, 4096, %s66, [#allocation6], 128, 128, 8
    $region45: #{da_network_forward.1} parent=1 // pred_fallthru
      _
    // Predicated region
    $region46: #{da_network_forward.1} parent=1 // pred_check
      _
    $region47: #{da_network_forward.1} parent=1 // pred_check_branch
      %73 = sbr.rel (0) target = $region49
    $region48: #{da_network_forward.1} parent=1 // pred_region
      _
    $region49: #{da_network_forward.1} parent=1 // pred_fallthru
      _
    // Predicated region
    $region50: #{da_network_forward.1} parent=1 // pred_check
      _
    $region51: #{da_network_forward.1} parent=1 // pred_check_branch
      %75 = sbr.rel (0) target = $region53
    $region52: #{da_network_forward.1} parent=1 // pred_region
      %77 = vsyncadd [#allocation6], 0
      %s78 = sshll.u32 %s12, 4
      %s79 = int_to_ptr.hbm [resolvable:$true] %s78
      %s80 = sshll.u32 [#allocation7], 4
      %s81 = int_to_ptr.vmem [resolvable:$true] %s80
      %86 = dma.hbm_to_vmem [thread:$0]  %s79, 4096, %s81, [#allocation6], 64, 64, 4
    $region53: #{da_network_forward.1} parent=1 // pred_fallthru
      _
    // Predicated region
    $region54: #{da_network_forward.1} parent=1 // pred_check
      _
    $region55: #{da_network_forward.1} parent=1 // pred_check_branch
      %88 = sbr.rel (0) target = $region57
    $region56: #{da_network_forward.1} parent=1 // pred_region
      _
    $region57: #{da_network_forward.1} parent=1 // pred_fallthru
      _
    // Predicated region
    $region58: #{da_network_forward.1} parent=1 // pred_check
      _
    $region59: #{da_network_forward.1} parent=1 // pred_check_branch
      %90 = sbr.rel (0) target = $region61
    $region60: #{da_network_forward.1} parent=1 // pred_region
      _
    $region61: #{da_network_forward.1} parent=1 // pred_fallthru
      _
    // Predicated region
    $region62: #{da_network_forward.1} parent=1 // pred_check
      _
    $region63: #{da_network_forward.1} parent=1 // pred_check_branch
      %92 = sbr.rel (0) target = $region65
    $region64: #{da_network_forward.1} parent=1 // pred_region
      _
    $region65: #{da_network_forward.1} parent=1 // pred_fallthru
      _
    // Predicated region
    $region66: #{da_network_forward.1} parent=1 // pred_check
      _
    $region67: #{da_network_forward.1} parent=1 // pred_check_branch
      %94 = sbr.rel (0) target = $region69
    $region68: #{da_network_forward.1} parent=1 // pred_region
      _
    $region69: #{da_network_forward.1} parent=1 // pred_fallthru
      _
    // Predicated region
    $region70: #{da_network_forward.1} parent=1 // pred_check
      _
    $region71: #{da_network_forward.1} parent=1 // pred_check_branch
      %96 = sbr.rel (0) target = $region73
    $region72: #{da_network_forward.1} parent=1 // pred_region
      _
    $region73: #{da_network_forward.1} parent=1 // pred_fallthru
      _
    // Predicated region
    $region74: #{da_network_forward.1} parent=1 // pred_check
      _
    $region75: #{da_network_forward.1} parent=1 // pred_check_branch
      %98 = sbr.rel (0) target = $region77
    $region76: #{da_network_forward.1} parent=1 // pred_region
      _
    $region77: #{da_network_forward.1} parent=1 // pred_fallthru
      _
    // Predicated region
    $region78: #{da_network_forward.1} parent=1 // pred_check
      _
    $region79: #{da_network_forward.1} parent=1 // pred_check_branch
      %100 = sbr.rel (0) target = $region81
    $region80: #{da_network_forward.1} parent=1 // pred_region
      _
    $region81: #{da_network_forward.1} parent=1 // pred_fallthru
      _
    // Predicated region
    $region82: #{da_network_forward.1} parent=1 // pred_check
      _
    $region83: #{da_network_forward.1} parent=1 // pred_check_branch
      %102 = sbr.rel (0) target = $region85
    $region84: #{da_network_forward.1} parent=1 // pred_region
      %104 = dma.done [#allocation3], 6144
    $region85: #{da_network_forward.1} parent=1 // pred_fallthru
      _
    // Predicated region
    $region86: #{da_network_forward.1} parent=1 // pred_check
      _
    $region87: #{da_network_forward.1} parent=1 // pred_check_branch
      %106 = sbr.rel (0) target = $region89
    $region88: #{da_network_forward.1} parent=1 // pred_region
      %108 = dma.done [#allocation6], 4096
    $region89: #{da_network_forward.1} parent=1 // pred_fallthru
      _
    // Predicated region
    $region90: #{da_network_forward.1} parent=1 // pred_check
      _
    $region91: #{da_network_forward.1} parent=1 // pred_check_branch
      %110 = sbr.rel (0) target = $region93
    $region92: #{da_network_forward.1} parent=1 // pred_region
      %112 = dma.done [#allocation6], 4096
    $region93: #{da_network_forward.1} parent=1 // pred_fallthru
      _
    %v114 = vlaneseq
    %v115 = vand.u32 %v114, 127
    %v116 = vld [vmem:[%s0] sm:$0xff]
    %v117 = vld [vmem:[%s0 + $0x8] sm:$0xff]
    %v118 = vld [vmem:[%s2] sm:$0x1]
    %v119 = vld [vmem:[%s3] sm:$0x1]
    %120 = vadd.xlane.f32.xlu0 %v116
    %v121 = vpop.xlane.xlu0 %120
    %122 = vadd.xlane.f32.xlu0 %v117
    %v123 = vpop.xlane.xlu0 %122
    %v124 = vrcp.pop 128.0
    %v125 = vmul.f32 128.0, %v124
    %v126 = vsub.f32 1.0, %v125
    %v127 = vmul.f32 %v124, %v126
    %v128 = vadd.f32 %v124, %v127
    %vm129 = vweird.f32 %v124
    %v130 = vsel %vm129, %v124, %v128
    %v131 = vmul.f32 %v121, %v130
    %v132 = vmul.f32 %v123, %v130
    %v133 = vsub.f32 %v116, %v131
    %v134 = vsub.f32 %v117, %v132
    %v135 = vmul.f32 %v133, %v133
    %v136 = vmul.f32 %v134, %v134
    %137 = vadd.xlane.f32.xlu0 %v135
    %v138 = vpop.xlane.xlu0 %137
    %139 = vadd.xlane.f32.xlu0 %v136
    %v140 = vpop.xlane.xlu0 %139
    %v141 = vmul.f32 %v138, %v130
    %v142 = vmul.f32 %v140, %v130
    %v143 = vadd.f32 %v141, 1e-12
    %v144 = vadd.f32 %v142, 1e-12
    %v145 = vrsqrt.pop %v143
    %v146 = vmul.f32 %v145, %v143
    %v147 = vmul.f32 %v146, %v145
    %v148 = vmul.f32 0.5, %v147
    %v149 = vsub.f32 1.5, %v148
    %v150 = vmul.f32 %v145, %v149
    %vm151 = vweird.f32 %v143
    %vm152 = vweird.f32 %v145
    %vm153 = vmor %vm151, %vm152
    %v154 = vsel %vm153, %v145, %v150
    %v155 = vrsqrt.pop %v144
    %v156 = vmul.f32 %v155, %v144
    %v157 = vmul.f32 %v156, %v155
    %v158 = vmul.f32 0.5, %v157
    %v159 = vsub.f32 1.5, %v158
    %v160 = vmul.f32 %v155, %v159
    %vm161 = vweird.f32 %v144
    %vm162 = vweird.f32 %v155
    %vm163 = vmor %vm161, %vm162
    %v164 = vsel %vm163, %v155, %v160
    %v165 = vmul.f32 %v133, %v154
    %v166 = vmul.f32 %v134, %v164
    %v168 = vperm.slane %v118, 0
    %v170 = vmul.f32 %v165, %v168
    %v171 = vmul.f32 %v166, %v168
    %v173 = vperm.slane %v119, 0
    %v175 = vadd.f32 %v170, %v173
    %v176 = vadd.f32 %v171, %v173
    %v177 = vld [vmem:[#allocation2] sm:$0xff]
    %v178 = vld [vmem:[#allocation2 + $0x8] sm:$0xf]
    %v179 = vld [vmem:[#allocation2 + $0xc] sm:$0xff]
    %v180 = vld [vmem:[#allocation2 + $0x14] sm:$0xf]
    %v181 = vld [vmem:[#allocation2 + $0x18] sm:$0xff]
    %v182 = vld [vmem:[#allocation2 + $0x20] sm:$0xf]
    %v183 = vld [vmem:[#allocation2 + $0x24] sm:$0xff]
    %v184 = vld [vmem:[#allocation2 + $0x2c] sm:$0xf]
    %v185 = vld [vmem:[#allocation2 + $0x30] sm:$0xff]
    %v186 = vld [vmem:[#allocation2 + $0x38] sm:$0xf]
    %v187 = vld [vmem:[#allocation2 + $0x3c] sm:$0xff]
    %v188 = vld [vmem:[#allocation2 + $0x44] sm:$0xf]
    %v189 = vld [vmem:[#allocation2 + $0x48] sm:$0xff]
    %v190 = vld [vmem:[#allocation2 + $0x50] sm:$0xf]
    %v191 = vld [vmem:[#allocation2 + $0x54] sm:$0xff]
    %v192 = vld [vmem:[#allocation2 + $0x5c] sm:$0xf]
    %v193 = vld [vmem:[#allocation2 + $0x60] sm:$0xff]
    %v194 = vld [vmem:[#allocation2 + $0x68] sm:$0xf]
    %v195 = vld [vmem:[#allocation2 + $0x6c] sm:$0xff]
    %v196 = vld [vmem:[#allocation2 + $0x74] sm:$0xf]
    %v197 = vld [vmem:[#allocation2 + $0x78] sm:$0xff]
    %v198 = vld [vmem:[#allocation2 + $0x80] sm:$0xf]
    %v199 = vld [vmem:[#allocation2 + $0x84] sm:$0xff]
    %v200 = vld [vmem:[#allocation2 + $0x8c] sm:$0xf]
    %v201 = vld [vmem:[#allocation2 + $0x90] sm:$0xff]
    %v202 = vld [vmem:[#allocation2 + $0x98] sm:$0xf]
    %v203 = vld [vmem:[#allocation2 + $0x9c] sm:$0xff]
    %v204 = vld [vmem:[#allocation2 + $0xa4] sm:$0xf]
    %v205 = vld [vmem:[#allocation2 + $0xa8] sm:$0xff]
    %v206 = vld [vmem:[#allocation2 + $0xb0] sm:$0xf]
    %v207 = vld [vmem:[#allocation2 + $0xb4] sm:$0xff]
    %v208 = vld [vmem:[#allocation2 + $0xbc] sm:$0xf]
    %v209 = vpack.c.bf16 %v176, %v175
    %v210 = vld [vmem:[%s5] sm:$0x7]
    %v212 = vperm.slane %v210, 0
    %v213 = vperm.slane %v210, 1
    %v214 = vperm.slane %v210, 2
    %v250 = vunpack.c.l.b16 %v177
    %v251 = vunpack.c.h.b16 %v177
    %v252 = vunpack.c.l.b16 %v178
    %v253 = vunpack.c.l.b16 %v179
    %v254 = vunpack.c.h.b16 %v179
    %v255 = vunpack.c.l.b16 %v180
    %v256 = vunpack.c.l.b16 %v181
    %v257 = vunpack.c.h.b16 %v181
    %v258 = vunpack.c.l.b16 %v182
    %v259 = vunpack.c.l.b16 %v183
    %v260 = vunpack.c.h.b16 %v183
    %v261 = vunpack.c.l.b16 %v184
    %v262 = vunpack.c.l.b16 %v185
    %v263 = vunpack.c.h.b16 %v185
    %v264 = vunpack.c.l.b16 %v186
    %v265 = vunpack.c.l.b16 %v187
    %v266 = vunpack.c.h.b16 %v187
    %v267 = vunpack.c.l.b16 %v188
    %v268 = vunpack.c.l.b16 %v189
    %v269 = vunpack.c.h.b16 %v189
    %v270 = vunpack.c.l.b16 %v190
    %v271 = vunpack.c.l.b16 %v191
    %v272 = vunpack.c.h.b16 %v191
    %v273 = vunpack.c.l.b16 %v192
    %v274 = vunpack.c.l.b16 %v193
    %v275 = vunpack.c.h.b16 %v193
    %v276 = vunpack.c.l.b16 %v194
    %v277 = vunpack.c.l.b16 %v195
    %v278 = vunpack.c.h.b16 %v195
    %v279 = vunpack.c.l.b16 %v196
    %v280 = vunpack.c.l.b16 %v197
    %v281 = vunpack.c.h.b16 %v197
    %v282 = vunpack.c.l.b16 %v198
    %v283 = vunpack.c.l.b16 %v199
    %v284 = vunpack.c.h.b16 %v199
    %v285 = vunpack.c.l.b16 %v200
    %v286 = vunpack.c.l.b16 %v201
    %v287 = vunpack.c.h.b16 %v201
    %v288 = vunpack.c.l.b16 %v202
    %v289 = vunpack.c.l.b16 %v203
    %v290 = vunpack.c.h.b16 %v203
    %v291 = vunpack.c.l.b16 %v204
    %v292 = vunpack.c.l.b16 %v205
    %v293 = vunpack.c.h.b16 %v205
    %v294 = vunpack.c.l.b16 %v206
    %v295 = vunpack.c.l.b16 %v207
    %v296 = vunpack.c.h.b16 %v207
    %v297 = vunpack.c.l.b16 %v208
    %v298 = vpack.c.b16 %v253, %v250
    %v299 = vpack.c.b16 %v254, %v251
    %v300 = vpack.c.b16 %v255, %v252
    %v301 = vpack.c.b16 %v259, %v256
    %v302 = vpack.c.b16 %v260, %v257
    %v303 = vpack.c.b16 %v261, %v258
    %v304 = vpack.c.b16 %v265, %v262
    %v305 = vpack.c.b16 %v266, %v263
    %v306 = vpack.c.b16 %v267, %v264
    %v307 = vpack.c.b16 %v271, %v268
    %v308 = vpack.c.b16 %v272, %v269
    %v309 = vpack.c.b16 %v273, %v270
    %v310 = vpack.c.b16 %v277, %v274
    %v311 = vpack.c.b16 %v278, %v275
    %v312 = vpack.c.b16 %v279, %v276
    %v313 = vpack.c.b16 %v283, %v280
    %v314 = vpack.c.b16 %v284, %v281
    %v315 = vpack.c.b16 %v285, %v282
    %v316 = vpack.c.b16 %v289, %v286
    %v317 = vpack.c.b16 %v290, %v287
    %v318 = vpack.c.b16 %v291, %v288
    %v319 = vpack.c.b16 %v295, %v292
    %v320 = vpack.c.b16 %v296, %v293
    %v321 = vpack.c.b16 %v297, %v294
    %346 = vmatpush.bf16.msra.mxu0 %v319
    %347 = vmatpush.bf16.msra.mxu0 %v316
    %348 = vmatpush.bf16.msra.mxu0 %v313
    %349 = vmatpush.bf16.msra.mxu0 %v310
    %350 = vmatpush.bf16.msra.mxu0 %v307
    %351 = vmatpush.bf16.msra.mxu0 %v304
    %352 = vmatpush.bf16.msra.mxu0 %v301
    %353 = vmatpush.bf16.msra.mxu0 %v298
    %354 = vmatmul.bf16.gmra.mxu0 %v209
    %v355 = vpop.f32.mrf.mxu0
    %v356 = vadd.f32 %v212, %v355
    %v357 = vpop.f32.mrf.mxu0
    %v358 = vadd.f32 %v212, %v357
    %359 = vdwg.mxu0
    %360 = vmatpush.bf16.msra.mxu0 %v320
    %361 = vmatpush.bf16.msra.mxu0 %v317
    %362 = vmatpush.bf16.msra.mxu0 %v314
    %363 = vmatpush.bf16.msra.mxu0 %v311
    %364 = vmatpush.bf16.msra.mxu0 %v308
    %365 = vmatpush.bf16.msra.mxu0 %v305
    %366 = vmatpush.bf16.msra.mxu0 %v302
    %367 = vmatpush.bf16.msra.mxu0 %v299
    %368 = vmatmul.bf16.gmra.mxu0 %v209
    %v369 = vpop.f32.mrf.mxu0
    %v370 = vadd.f32 %v213, %v369
    %v371 = vpop.f32.mrf.mxu0
    %v372 = vadd.f32 %v213, %v371
    %373 = vdwg.mxu0
    %374 = vmatpush.bf16.msra.mxu0 %v321
    %375 = vmatpush.bf16.msra.mxu0 %v318
    %376 = vmatpush.bf16.msra.mxu0 %v315
    %377 = vmatpush.bf16.msra.mxu0 %v312
    %378 = vmatpush.bf16.msra.mxu0 %v309
    %379 = vmatpush.bf16.msra.mxu0 %v306
    %380 = vmatpush.bf16.msra.mxu0 %v303
    %381 = vmatpush.bf16.msra.mxu0 %v300
    %382 = vmatmul.bf16.gmra.mxu0 %v209
    %v383 = vpop.f32.mrf.mxu0
    %v384 = vadd.f32 %v214, %v383
    %v385 = vpop.f32.mrf.mxu0
    %v386 = vadd.f32 %v214, %v385
    %387 = vdwg.mxu0
    %v388 = vpack.c.bf16 %v370, %v370
    %v389 = vpack.c.bf16 %v384, %v384
    %v390 = vld [vmem:[%s1] sm:$0xff]
    %vm391 = vcmp.ge.s32.totalorder %v115, 0
    %vm392 = vcmp.lt.s32.totalorder %v115, 64
    %vm393 = vmand %vm391, %vm392
    %v394 = vsel %vm393, 1, 0
    %v395 = vcvt.s32.f32 %v394
    %v396 = vmul.f32 %v356, %v395
    %v397 = vpack.c.bf16 %v396, %v396
    %398 = vmatpush.bf16.xpose.msra.mxu0 0
    %399 = vmatpush.bf16.xpose.msra.mxu0 0
    %400 = vmatpush.bf16.xpose.msra.mxu0 0
    %401 = vmatpush.bf16.xpose.msra.mxu0 0
    %402 = vmatpush.bf16.xpose.msra.mxu0 0
    %403 = vmatpush.bf16.xpose.msra.mxu0 0
    %404 = vmatpush.bf16.xpose.msra.mxu0 0
    %405 = vmatpush.bf16.xpose.msra.mxu0 %v388
    %406 = vmatmul.bf16.gmra.mxu0 %v397
    %v407 = vpop.f32.mrf.mxu0
    %v408 = vadd.f32 0.0, %v407
    %v409 = vpop.f32.mrf.mxu0
    %410 = vdwg.mxu0
    %v411 = vmul.f32 %v408, 0.125
    %v412 = vadd.f32 %v411, %v390
    %vm413 = vcmask 64512
    %v414 = vsel %vm413, %v412, -inf
    %415 = vmax.xlane.f32.xlu0 %v414
    %v416 = vpop.xlane.xlu0 %415
    %v417 = vsub.f32 %v412, %v416
    %v418 = vmul.f32 %v417, 1.442695
    %v419 = vpow.pop %v418
    %v420 = vsel %vm413, %v419, 0.0
    %421 = vadd.xlane.f32.xlu0 %v420
    %v422 = vpop.xlane.xlu0 %421
    %v423 = vrcp.pop %v422
    %v424 = vmul.f32 %v419, %v423
    %v425 = vpack.c.bf16 %v424, %v424
    %v427 = vsel %vm413, %v425, 0
    %vm429 = vcmask 1043456
    %v431 = vsel %vm429, %v389, 0
    %433 = vmatpush.bf16.msra.mxu0 0
    %434 = vmatpush.bf16.msra.mxu0 0
    %435 = vmatpush.bf16.msra.mxu0 0
    %436 = vmatpush.bf16.msra.mxu0 0
    %437 = vmatpush.bf16.msra.mxu0 0
    %438 = vmatpush.bf16.msra.mxu0 0
    %439 = vmatpush.bf16.msra.mxu0 0
    %440 = vmatpush.bf16.msra.mxu0 %v431
    %441 = vmatmul.bf16.gmra.mxu0 %v427
    %v442 = vpop.f32.mrf.mxu0
    %v443 = vadd.f32 0.0, %v442
    %v444 = vpop.f32.mrf.mxu0
    %445 = vdwg.mxu0
    %v446 = vmul.f32 %v443, %v395
    %v447 = vadd.f32 %v446, 0.0
    %vm448 = vcmp.ge.s32.totalorder %v115, 64
    %vm449 = vcmp.lt.s32.totalorder %v115, 128
    %vm450 = vmand %vm448, %vm449
    %v451 = vsel %vm450, 1, 0
    %v452 = vcvt.s32.f32 %v451
    %v453 = vmul.f32 %v356, %v452
    %v454 = vpack.c.bf16 %v453, %v453
    %455 = vmatpush.bf16.xpose.msra.mxu0 0
    %456 = vmatpush.bf16.xpose.msra.mxu0 0
    %457 = vmatpush.bf16.xpose.msra.mxu0 0
    %458 = vmatpush.bf16.xpose.msra.mxu0 0
    %459 = vmatpush.bf16.xpose.msra.mxu0 0
    %460 = vmatpush.bf16.xpose.msra.mxu0 0
    %461 = vmatpush.bf16.xpose.msra.mxu0 0
    %462 = vmatpush.bf16.xpose.msra.mxu0 %v388
    %463 = vmatmul.bf16.gmra.mxu0 %v454
    %v464 = vpop.f32.mrf.mxu0
    %v465 = vadd.f32 0.0, %v464
    %v466 = vpop.f32.mrf.mxu0
    %467 = vdwg.mxu0
    %v468 = vmul.f32 %v465, 0.125
    %v469 = vadd.f32 %v468, %v390
    %v470 = vsel %vm413, %v469, -inf
    %471 = vmax.xlane.f32.xlu0 %v470
    %v472 = vpop.xlane.xlu0 %471
    %v473 = vsub.f32 %v469, %v472
    %v474 = vmul.f32 %v473, 1.442695
    %v475 = vpow.pop %v474
    %v476 = vsel %vm413, %v475, 0.0
    %477 = vadd.xlane.f32.xlu0 %v476
    %v478 = vpop.xlane.xlu0 %477
    %v479 = vrcp.pop %v478
    %v480 = vmul.f32 %v475, %v479
    %v481 = vpack.c.bf16 %v480, %v480
    %v483 = vsel %vm413, %v481, 0
    %485 = vmatpush.bf16.msra.mxu0 0
    %486 = vmatpush.bf16.msra.mxu0 0
    %487 = vmatpush.bf16.msra.mxu0 0
    %488 = vmatpush.bf16.msra.mxu0 0
    %489 = vmatpush.bf16.msra.mxu0 0
    %490 = vmatpush.bf16.msra.mxu0 0
    %491 = vmatpush.bf16.msra.mxu0 0
    %492 = vmatpush.bf16.msra.mxu0 %v431
    %493 = vmatmul.bf16.gmra.mxu0 %v483
    %v494 = vpop.f32.mrf.mxu0
    %v495 = vadd.f32 0.0, %v494
    %v496 = vpop.f32.mrf.mxu0
    %497 = vdwg.mxu0
    %v498 = vmul.f32 %v495, %v452
    %v499 = vadd.f32 %v447, %v498
    %v500 = vpack.c.bf16 %v372, %v372
    %v501 = vpack.c.bf16 %v386, %v386
    %s502 = scalar_lea.vmem %s1, 8
    %v503 = vld [vmem:[%s502] sm:$0xff]
    %v504 = vmul.f32 %v358, %v395
    %v505 = vpack.c.bf16 %v504, %v504
    %506 = vmatpush.bf16.xpose.msra.mxu0 0
    %507 = vmatpush.bf16.xpose.msra.mxu0 0
    %508 = vmatpush.bf16.xpose.msra.mxu0 0
    %509 = vmatpush.bf16.xpose.msra.mxu0 0
    %510 = vmatpush.bf16.xpose.msra.mxu0 0
    %511 = vmatpush.bf16.xpose.msra.mxu0 0
    %512 = vmatpush.bf16.xpose.msra.mxu0 0
    %513 = vmatpush.bf16.xpose.msra.mxu0 %v500
    %514 = vmatmul.bf16.gmra.mxu0 %v505
    %v515 = vpop.f32.mrf.mxu0
    %v516 = vadd.f32 0.0, %v515
    %v517 = vpop.f32.mrf.mxu0
    %518 = vdwg.mxu0
    %v519 = vmul.f32 %v516, 0.125
    %v520 = vadd.f32 %v519, %v503
    %v521 = vsel %vm413, %v520, -inf
    %522 = vmax.xlane.f32.xlu0 %v521
    %v523 = vpop.xlane.xlu0 %522
    %v524 = vsub.f32 %v520, %v523
    %v525 = vmul.f32 %v524, 1.442695
    %v526 = vpow.pop %v525
    %v527 = vsel %vm413, %v526, 0.0
    %528 = vadd.xlane.f32.xlu0 %v527
    %v529 = vpop.xlane.xlu0 %528
    %v530 = vrcp.pop %v529
    %v531 = vmul.f32 %v526, %v530
    %v532 = vpack.c.bf16 %v531, %v531
    %v534 = vsel %vm413, %v532, 0
    %v537 = vsel %vm429, %v501, 0
    %539 = vmatpush.bf16.msra.mxu0 0
    %540 = vmatpush.bf16.msra.mxu0 0
    %541 = vmatpush.bf16.msra.mxu0 0
    %542 = vmatpush.bf16.msra.mxu0 0
    %543 = vmatpush.bf16.msra.mxu0 0
    %544 = vmatpush.bf16.msra.mxu0 0
    %545 = vmatpush.bf16.msra.mxu0 0
    %546 = vmatpush.bf16.msra.mxu0 %v537
    %547 = vmatmul.bf16.gmra.mxu0 %v534
    %v548 = vpop.f32.mrf.mxu0
    %v549 = vadd.f32 0.0, %v548
    %v550 = vpop.f32.mrf.mxu0
    %551 = vdwg.mxu0
    %v552 = vmul.f32 %v549, %v395
    %v553 = vadd.f32 %v552, 0.0
    %v554 = vmul.f32 %v358, %v452
    %v555 = vpack.c.bf16 %v554, %v554
    %556 = vmatpush.bf16.xpose.msra.mxu0 0
    %557 = vmatpush.bf16.xpose.msra.mxu0 0
    %558 = vmatpush.bf16.xpose.msra.mxu0 0
    %559 = vmatpush.bf16.xpose.msra.mxu0 0
    %560 = vmatpush.bf16.xpose.msra.mxu0 0
    %561 = vmatpush.bf16.xpose.msra.mxu0 0
    %562 = vmatpush.bf16.xpose.msra.mxu0 0
    %563 = vmatpush.bf16.xpose.msra.mxu0 %v500
    %564 = vmatmul.bf16.gmra.mxu0 %v555
    %v565 = vpop.f32.mrf.mxu0
    %v566 = vadd.f32 0.0, %v565
    %v567 = vpop.f32.mrf.mxu0
    %568 = vdwg.mxu0
    %v569 = vmul.f32 %v566, 0.125
    %v570 = vadd.f32 %v569, %v503
    %v571 = vsel %vm413, %v570, -inf
    %572 = vmax.xlane.f32.xlu0 %v571
    %v573 = vpop.xlane.xlu0 %572
    %v574 = vsub.f32 %v570, %v573
    %v575 = vmul.f32 %v574, 1.442695
    %v576 = vpow.pop %v575
    %v577 = vsel %vm413, %v576, 0.0
    %578 = vadd.xlane.f32.xlu0 %v577
    %v579 = vpop.xlane.xlu0 %578
    %v580 = vrcp.pop %v579
    %v581 = vmul.f32 %v576, %v580
    %v582 = vpack.c.bf16 %v581, %v581
    %v584 = vsel %vm413, %v582, 0
    %586 = vmatpush.bf16.msra.mxu0 0
    %587 = vmatpush.bf16.msra.mxu0 0
    %588 = vmatpush.bf16.msra.mxu0 0
    %589 = vmatpush.bf16.msra.mxu0 0
    %590 = vmatpush.bf16.msra.mxu0 0
    %591 = vmatpush.bf16.msra.mxu0 0
    %592 = vmatpush.bf16.msra.mxu0 0
    %593 = vmatpush.bf16.msra.mxu0 %v537
    %594 = vmatmul.bf16.gmra.mxu0 %v584
    %v595 = vpop.f32.mrf.mxu0
    %v596 = vadd.f32 0.0, %v595
    %v597 = vpop.f32.mrf.mxu0
    %598 = vdwg.mxu0
    %v599 = vmul.f32 %v596, %v452
    %v600 = vadd.f32 %v553, %v599
    %v601 = vld [vmem:[%s6] sm:$0xf]
    %v602 = vld [vmem:[%s6 + $0x4] sm:$0xf]
    %v603 = vld [vmem:[%s6 + $0x8] sm:$0xf]
    %v604 = vld [vmem:[%s6 + $0xc] sm:$0xf]
    %v605 = vld [vmem:[%s6 + $0x10] sm:$0xf]
    %v606 = vld [vmem:[%s6 + $0x14] sm:$0xf]
    %v607 = vld [vmem:[%s6 + $0x18] sm:$0xf]
    %v608 = vld [vmem:[%s6 + $0x1c] sm:$0xf]
    %v609 = vld [vmem:[%s6 + $0x20] sm:$0xf]
    %v610 = vld [vmem:[%s6 + $0x24] sm:$0xf]
    %v611 = vld [vmem:[%s6 + $0x28] sm:$0xf]
    %v612 = vld [vmem:[%s6 + $0x2c] sm:$0xf]
    %v613 = vld [vmem:[%s6 + $0x30] sm:$0xf]
    %v614 = vld [vmem:[%s6 + $0x34] sm:$0xf]
    %v615 = vld [vmem:[%s6 + $0x38] sm:$0xf]
    %v616 = vld [vmem:[%s6 + $0x3c] sm:$0xf]
    %v617 = vpack.c.bf16 %v600, %v499
    %v618 = vld [vmem:[%s7] sm:$0x1]
    %v620 = vperm.slane %v618, 0
    %v638 = vunpack.c.l.b16 %v601
    %v639 = vunpack.c.l.b16 %v602
    %v640 = vunpack.c.l.b16 %v603
    %v641 = vunpack.c.l.b16 %v604
    %v642 = vunpack.c.l.b16 %v605
    %v643 = vunpack.c.l.b16 %v606
    %v644 = vunpack.c.l.b16 %v607
    %v645 = vunpack.c.l.b16 %v608
    %v646 = vunpack.c.l.b16 %v609
    %v647 = vunpack.c.l.b16 %v610
    %v648 = vunpack.c.l.b16 %v611
    %v649 = vunpack.c.l.b16 %v612
    %v650 = vunpack.c.l.b16 %v613
    %v651 = vunpack.c.l.b16 %v614
    %v652 = vunpack.c.l.b16 %v615
    %v653 = vunpack.c.l.b16 %v616
    %v654 = vpack.c.b16 %v639, %v638
    %v655 = vpack.c.b16 %v641, %v640
    %v656 = vpack.c.b16 %v643, %v642
    %v657 = vpack.c.b16 %v645, %v644
    %v658 = vpack.c.b16 %v647, %v646
    %v659 = vpack.c.b16 %v649, %v648
    %v660 = vpack.c.b16 %v651, %v650
    %v661 = vpack.c.b16 %v653, %v652
    %670 = vmatpush.bf16.msra.mxu0 %v661
    %671 = vmatpush.bf16.msra.mxu0 %v660
    %672 = vmatpush.bf16.msra.mxu0 %v659
    %673 = vmatpush.bf16.msra.mxu0 %v658
    %674 = vmatpush.bf16.msra.mxu0 %v657
    %675 = vmatpush.bf16.msra.mxu0 %v656
    %676 = vmatpush.bf16.msra.mxu0 %v655
    %677 = vmatpush.bf16.msra.mxu0 %v654
    %678 = vmatmul.bf16.gmra.mxu0 %v617
    %v679 = vpop.f32.mrf.mxu0
    %v680 = vadd.f32 %v620, %v679
    %v681 = vpop.f32.mrf.mxu0
    %v682 = vadd.f32 %v620, %v681
    %683 = vdwg.mxu0
    %v684 = vadd.f32 %v680, %v175
    %v685 = vadd.f32 %v682, %v176
    %v686 = vld [vmem:[%s8] sm:$0x1]
    %v687 = vld [vmem:[%s9] sm:$0x1]
    %688 = vadd.xlane.f32.xlu0 %v684
    %v689 = vpop.xlane.xlu0 %688
    %690 = vadd.xlane.f32.xlu0 %v685
    %v691 = vpop.xlane.xlu0 %690
    %v692 = vmul.f32 %v689, %v130
    %v693 = vmul.f32 %v691, %v130
    %v694 = vsub.f32 %v684, %v692
    %v695 = vsub.f32 %v685, %v693
    %v696 = vmul.f32 %v694, %v694
    %v697 = vmul.f32 %v695, %v695
    %698 = vadd.xlane.f32.xlu0 %v696
    %v699 = vpop.xlane.xlu0 %698
    %700 = vadd.xlane.f32.xlu0 %v697
    %v701 = vpop.xlane.xlu0 %700
    %v702 = vmul.f32 %v699, %v130
    %v703 = vmul.f32 %v701, %v130
    %v704 = vadd.f32 %v702, 1e-12
    %v705 = vadd.f32 %v703, 1e-12
    %v706 = vrsqrt.pop %v704
    %v707 = vmul.f32 %v706, %v704
    %v708 = vmul.f32 %v707, %v706
    %v709 = vmul.f32 0.5, %v708
    %v710 = vsub.f32 1.5, %v709
    %v711 = vmul.f32 %v706, %v710
    %vm712 = vweird.f32 %v704
    %vm713 = vweird.f32 %v706
    %vm714 = vmor %vm712, %vm713
    %v715 = vsel %vm714, %v706, %v711
    %v716 = vrsqrt.pop %v705
    %v717 = vmul.f32 %v716, %v705
    %v718 = vmul.f32 %v717, %v716
    %v719 = vmul.f32 0.5, %v718
    %v720 = vsub.f32 1.5, %v719
    %v721 = vmul.f32 %v716, %v720
    %vm722 = vweird.f32 %v705
    %vm723 = vweird.f32 %v716
    %vm724 = vmor %vm722, %vm723
    %v725 = vsel %vm724, %v716, %v721
    %v726 = vmul.f32 %v694, %v715
    %v727 = vmul.f32 %v695, %v725
    %v729 = vperm.slane %v686, 0
    %v731 = vmul.f32 %v726, %v729
    %v732 = vmul.f32 %v727, %v729
    %v734 = vperm.slane %v687, 0
    %v736 = vadd.f32 %v731, %v734
    %v737 = vadd.f32 %v732, %v734
    %v738 = vld [vmem:[#allocation5] sm:$0xff]
    %v739 = vld [vmem:[#allocation5 + $0x8] sm:$0xff]
    %v740 = vld [vmem:[#allocation5 + $0x10] sm:$0xff]
    %v741 = vld [vmem:[#allocation5 + $0x18] sm:$0xff]
    %v742 = vld [vmem:[#allocation5 + $0x20] sm:$0xff]
    %v743 = vld [vmem:[#allocation5 + $0x28] sm:$0xff]
    %v744 = vld [vmem:[#allocation5 + $0x30] sm:$0xff]
    %v745 = vld [vmem:[#allocation5 + $0x38] sm:$0xff]
    %v746 = vld [vmem:[#allocation5 + $0x40] sm:$0xff]
    %v747 = vld [vmem:[#allocation5 + $0x48] sm:$0xff]
    %v748 = vld [vmem:[#allocation5 + $0x50] sm:$0xff]
    %v749 = vld [vmem:[#allocation5 + $0x58] sm:$0xff]
    %v750 = vld [vmem:[#allocation5 + $0x60] sm:$0xff]
    %v751 = vld [vmem:[#allocation5 + $0x68] sm:$0xff]
    %v752 = vld [vmem:[#allocation5 + $0x70] sm:$0xff]
    %v753 = vld [vmem:[#allocation5 + $0x78] sm:$0xff]
    %v754 = vpack.c.bf16 %v737, %v736
    %v755 = vld [vmem:[%s11] sm:$0x3]
    %v757 = vperm.slane %v755, 0
    %v758 = vperm.slane %v755, 1
    %v777 = vunpack.c.l.b16 %v738
    %v778 = vunpack.c.h.b16 %v738
    %v779 = vunpack.c.l.b16 %v739
    %v780 = vunpack.c.h.b16 %v739
    %v781 = vunpack.c.l.b16 %v740
    %v782 = vunpack.c.h.b16 %v740
    %v783 = vunpack.c.l.b16 %v741
    %v784 = vunpack.c.h.b16 %v741
    %v785 = vunpack.c.l.b16 %v742
    %v786 = vunpack.c.h.b16 %v742
    %v787 = vunpack.c.l.b16 %v743
    %v788 = vunpack.c.h.b16 %v743
    %v789 = vunpack.c.l.b16 %v744
    %v790 = vunpack.c.h.b16 %v744
    %v791 = vunpack.c.l.b16 %v745
    %v792 = vunpack.c.h.b16 %v745
    %v793 = vunpack.c.l.b16 %v746
    %v794 = vunpack.c.h.b16 %v746
    %v795 = vunpack.c.l.b16 %v747
    %v796 = vunpack.c.h.b16 %v747
    %v797 = vunpack.c.l.b16 %v748
    %v798 = vunpack.c.h.b16 %v748
    %v799 = vunpack.c.l.b16 %v749
    %v800 = vunpack.c.h.b16 %v749
    %v801 = vunpack.c.l.b16 %v750
    %v802 = vunpack.c.h.b16 %v750
    %v803 = vunpack.c.l.b16 %v751
    %v804 = vunpack.c.h.b16 %v751
    %v805 = vunpack.c.l.b16 %v752
    %v806 = vunpack.c.h.b16 %v752
    %v807 = vunpack.c.l.b16 %v753
    %v808 = vunpack.c.h.b16 %v753
    %v809 = vpack.c.b16 %v779, %v777
    %v810 = vpack.c.b16 %v780, %v778
    %v811 = vpack.c.b16 %v783, %v781
    %v812 = vpack.c.b16 %v784, %v782
    %v813 = vpack.c.b16 %v787, %v785
    %v814 = vpack.c.b16 %v788, %v786
    %v815 = vpack.c.b16 %v791, %v789
    %v816 = vpack.c.b16 %v792, %v790
    %v817 = vpack.c.b16 %v795, %v793
    %v818 = vpack.c.b16 %v796, %v794
    %v819 = vpack.c.b16 %v799, %v797
    %v820 = vpack.c.b16 %v800, %v798
    %v821 = vpack.c.b16 %v803, %v801
    %v822 = vpack.c.b16 %v804, %v802
    %v823 = vpack.c.b16 %v807, %v805
    %v824 = vpack.c.b16 %v808, %v806
    %841 = vmatpush.bf16.msra.mxu0 %v823
    %842 = vmatpush.bf16.msra.mxu0 %v821
    %843 = vmatpush.bf16.msra.mxu0 %v819
    %844 = vmatpush.bf16.msra.mxu0 %v817
    %845 = vmatpush.bf16.msra.mxu0 %v815
    %846 = vmatpush.bf16.msra.mxu0 %v813
    %847 = vmatpush.bf16.msra.mxu0 %v811
    %848 = vmatpush.bf16.msra.mxu0 %v809
    %849 = vmatmul.bf16.gmra.mxu0 %v754
    %v850 = vpop.f32.mrf.mxu0
    %v851 = vadd.f32 %v757, %v850
    %v852 = vpop.f32.mrf.mxu0
    %v853 = vadd.f32 %v757, %v852
    %854 = vdwg.mxu0
    %855 = vmatpush.bf16.msra.mxu0 %v824
    %856 = vmatpush.bf16.msra.mxu0 %v822
    %857 = vmatpush.bf16.msra.mxu0 %v820
    %858 = vmatpush.bf16.msra.mxu0 %v818
    %859 = vmatpush.bf16.msra.mxu0 %v816
    %860 = vmatpush.bf16.msra.mxu0 %v814
    %861 = vmatpush.bf16.msra.mxu0 %v812
    %862 = vmatpush.bf16.msra.mxu0 %v810
    %863 = vmatmul.bf16.gmra.mxu0 %v754
    %v864 = vpop.f32.mrf.mxu0
    %v865 = vadd.f32 %v758, %v864
    %v866 = vpop.f32.mrf.mxu0
    %v867 = vadd.f32 %v758, %v866
    %868 = vdwg.mxu0
    %v869 = vmul.f32 %v851, 0.5
    %v870 = vmul.f32 %v865, 0.5
    %v871 = vmul.f32 %v853, 0.5
    %v872 = vmul.f32 %v867, 0.5
    %v873 = vmul.f32 %v851, 0.044715
    %v874 = vmul.f32 %v865, 0.044715
    %v875 = vmul.f32 %v853, 0.044715
    %v876 = vmul.f32 %v867, 0.044715
    %v877 = vmul.f32 %v873, %v851
    %v878 = vmul.f32 %v874, %v865
    %v879 = vmul.f32 %v875, %v853
    %v880 = vmul.f32 %v876, %v867
    %v881 = vmul.f32 %v877, %v851
    %v882 = vmul.f32 %v878, %v865
    %v883 = vmul.f32 %v879, %v853
    %v884 = vmul.f32 %v880, %v867
    %v885 = vadd.f32 %v851, %v881
    %v886 = vadd.f32 %v865, %v882
    %v887 = vadd.f32 %v853, %v883
    %v888 = vadd.f32 %v867, %v884
    %v889 = vmul.f32 %v885, 0.7978846
    %v890 = vmul.f32 %v886, 0.7978846
    %v891 = vmul.f32 %v887, 0.7978846
    %v892 = vmul.f32 %v888, 0.7978846
    %v893 = vtanh.pop %v889
    %v894 = vtanh.pop %v890
    %v895 = vtanh.pop %v891
    %v896 = vtanh.pop %v892
    %v897 = vadd.f32 %v893, 1.0
    %v898 = vadd.f32 %v894, 1.0
    %v899 = vadd.f32 %v895, 1.0
    %v900 = vadd.f32 %v896, 1.0
    %v901 = vmul.f32 %v869, %v897
    %v902 = vmul.f32 %v870, %v898
    %v903 = vmul.f32 %v871, %v899
    %v904 = vmul.f32 %v872, %v900
    %v905 = vld [vmem:[#allocation7] sm:$0xf]
    %v906 = vld [vmem:[#allocation7 + $0x4] sm:$0xf]
    %v907 = vld [vmem:[#allocation7 + $0x8] sm:$0xf]
    %v908 = vld [vmem:[#allocation7 + $0xc] sm:$0xf]
    %v909 = vld [vmem:[#allocation7 + $0x10] sm:$0xf]
    %v910 = vld [vmem:[#allocation7 + $0x14] sm:$0xf]
    %v911 = vld [vmem:[#allocation7 + $0x18] sm:$0xf]
    %v912 = vld [vmem:[#allocation7 + $0x1c] sm:$0xf]
    %v913 = vld [vmem:[#allocation7 + $0x20] sm:$0xf]
    %v914 = vld [vmem:[#allocation7 + $0x24] sm:$0xf]
    %v915 = vld [vmem:[#allocation7 + $0x28] sm:$0xf]
    %v916 = vld [vmem:[#allocation7 + $0x2c] sm:$0xf]
    %v917 = vld [vmem:[#allocation7 + $0x30] sm:$0xf]
    %v918 = vld [vmem:[#allocation7 + $0x34] sm:$0xf]
    %v919 = vld [vmem:[#allocation7 + $0x38] sm:$0xf]
    %v920 = vld [vmem:[#allocation7 + $0x3c] sm:$0xf]
    %v921 = vld [vmem:[#allocation7 + $0x40] sm:$0xf]
    %v922 = vld [vmem:[#allocation7 + $0x44] sm:$0xf]
    %v923 = vld [vmem:[#allocation7 + $0x48] sm:$0xf]
    %v924 = vld [vmem:[#allocation7 + $0x4c] sm:$0xf]
    %v925 = vld [vmem:[#allocation7 + $0x50] sm:$0xf]
    %v926 = vld [vmem:[#allocation7 + $0x54] sm:$0xf]
    %v927 = vld [vmem:[#allocation7 + $0x58] sm:$0xf]
    %v928 = vld [vmem:[#allocation7 + $0x5c] sm:$0xf]
    %v929 = vld [vmem:[#allocation7 + $0x60] sm:$0xf]
    %v930 = vld [vmem:[#allocation7 + $0x64] sm:$0xf]
    %v931 = vld [vmem:[#allocation7 + $0x68] sm:$0xf]
    %v932 = vld [vmem:[#allocation7 + $0x6c] sm:$0xf]
    %v933 = vld [vmem:[#allocation7 + $0x70] sm:$0xf]
    %v934 = vld [vmem:[#allocation7 + $0x74] sm:$0xf]
    %v935 = vld [vmem:[#allocation7 + $0x78] sm:$0xf]
    %v936 = vld [vmem:[#allocation7 + $0x7c] sm:$0xf]
    %v937 = vpack.c.bf16 %v903, %v901
    %v938 = vpack.c.bf16 %v904, %v902
    %v939 = vld [vmem:[%s13] sm:$0x1]
    %v941 = vperm.slane %v939, 0
    %v975 = vunpack.c.l.b16 %v905
    %v976 = vunpack.c.l.b16 %v906
    %v977 = vunpack.c.l.b16 %v907
    %v978 = vunpack.c.l.b16 %v908
    %v979 = vunpack.c.l.b16 %v909
    %v980 = vunpack.c.l.b16 %v910
    %v981 = vunpack.c.l.b16 %v911
    %v982 = vunpack.c.l.b16 %v912
    %v983 = vunpack.c.l.b16 %v913
    %v984 = vunpack.c.l.b16 %v914
    %v985 = vunpack.c.l.b16 %v915
    %v986 = vunpack.c.l.b16 %v916
    %v987 = vunpack.c.l.b16 %v917
    %v988 = vunpack.c.l.b16 %v918
    %v989 = vunpack.c.l.b16 %v919
    %v990 = vunpack.c.l.b16 %v920
    %v991 = vunpack.c.l.b16 %v921
    %v992 = vunpack.c.l.b16 %v922
    %v993 = vunpack.c.l.b16 %v923
    %v994 = vunpack.c.l.b16 %v924
    %v995 = vunpack.c.l.b16 %v925
    %v996 = vunpack.c.l.b16 %v926
    %v997 = vunpack.c.l.b16 %v927
    %v998 = vunpack.c.l.b16 %v928
    %v999 = vunpack.c.l.b16 %v929
    %v1000 = vunpack.c.l.b16 %v930
    %v1001 = vunpack.c.l.b16 %v931
    %v1002 = vunpack.c.l.b16 %v932
    %v1003 = vunpack.c.l.b16 %v933
    %v1004 = vunpack.c.l.b16 %v934
    %v1005 = vunpack.c.l.b16 %v935
    %v1006 = vunpack.c.l.b16 %v936
    %v1007 = vpack.c.b16 %v976, %v975
    %v1008 = vpack.c.b16 %v978, %v977
    %v1009 = vpack.c.b16 %v980, %v979
    %v1010 = vpack.c.b16 %v982, %v981
    %v1011 = vpack.c.b16 %v984, %v983
    %v1012 = vpack.c.b16 %v986, %v985
    %v1013 = vpack.c.b16 %v988, %v987
    %v1014 = vpack.c.b16 %v990, %v989
    %v1015 = vpack.c.b16 %v992, %v991
    %v1016 = vpack.c.b16 %v994, %v993
    %v1017 = vpack.c.b16 %v996, %v995
    %v1018 = vpack.c.b16 %v998, %v997
    %v1019 = vpack.c.b16 %v1000, %v999
    %v1020 = vpack.c.b16 %v1002, %v1001
    %v1021 = vpack.c.b16 %v1004, %v1003
    %v1022 = vpack.c.b16 %v1006, %v1005
    %1039 = vmatpush.bf16.msra.mxu0 %v1014
    %1040 = vmatpush.bf16.msra.mxu0 %v1013
    %1041 = vmatpush.bf16.msra.mxu0 %v1012
    %1042 = vmatpush.bf16.msra.mxu0 %v1011
    %1043 = vmatpush.bf16.msra.mxu0 %v1010
    %1044 = vmatpush.bf16.msra.mxu0 %v1009
    %1045 = vmatpush.bf16.msra.mxu0 %v1008
    %1046 = vmatpush.bf16.msra.mxu0 %v1007
    %1047 = vmatmul.bf16.gmra.mxu0 %v937
    %v1048 = vpop.f32.mrf.mxu0
    %v1049 = vadd.f32 %v941, %v1048
    %v1050 = vpop.f32.mrf.mxu0
    %v1051 = vadd.f32 %v941, %v1050
    %1052 = vdwg.mxu0
    %1053 = vmatpush.bf16.msra.mxu0 %v1022
    %1054 = vmatpush.bf16.msra.mxu0 %v1021
    %1055 = vmatpush.bf16.msra.mxu0 %v1020
    %1056 = vmatpush.bf16.msra.mxu0 %v1019
    %1057 = vmatpush.bf16.msra.mxu0 %v1018
    %1058 = vmatpush.bf16.msra.mxu0 %v1017
    %1059 = vmatpush.bf16.msra.mxu0 %v1016
    %1060 = vmatpush.bf16.msra.mxu0 %v1015
    %1061 = vmatmul.bf16.gmra.mxu0 %v938
    %v1062 = vpop.f32.mrf.mxu0
    %v1063 = vadd.f32 %v1049, %v1062
    %v1064 = vpop.f32.mrf.mxu0
    %v1065 = vadd.f32 %v1051, %v1064
    %1066 = vdwg.mxu0
    %v1067 = vadd.f32 %v1063, %v736
    %v1068 = vadd.f32 %v1065, %v737
    %v1069 = vld [vmem:[%s14] sm:$0x1]
    %v1070 = vld [vmem:[%s15] sm:$0x1]
    %1071 = vadd.xlane.f32.xlu0 %v1067
    %v1072 = vpop.xlane.xlu0 %1071
    %1073 = vadd.xlane.f32.xlu0 %v1068
    %v1074 = vpop.xlane.xlu0 %1073
    %v1075 = vmul.f32 %v1072, %v130
    %v1076 = vmul.f32 %v1074, %v130
    %v1077 = vsub.f32 %v1067, %v1075
    %v1078 = vsub.f32 %v1068, %v1076
    %v1079 = vmul.f32 %v1077, %v1077
    %v1080 = vmul.f32 %v1078, %v1078
    %1081 = vadd.xlane.f32.xlu0 %v1079
    %v1082 = vpop.xlane.xlu0 %1081
    %1083 = vadd.xlane.f32.xlu0 %v1080
    %v1084 = vpop.xlane.xlu0 %1083
    %v1085 = vmul.f32 %v1082, %v130
    %v1086 = vmul.f32 %v1084, %v130
    %v1087 = vadd.f32 %v1085, 1e-12
    %v1088 = vadd.f32 %v1086, 1e-12
    %v1089 = vrsqrt.pop %v1087
    %v1090 = vmul.f32 %v1089, %v1087
    %v1091 = vmul.f32 %v1090, %v1089
    %v1092 = vmul.f32 0.5, %v1091
    %v1093 = vsub.f32 1.5, %v1092
    %v1094 = vmul.f32 %v1089, %v1093
    %vm1095 = vweird.f32 %v1087
    %vm1096 = vweird.f32 %v1089
    %vm1097 = vmor %vm1095, %vm1096
    %v1098 = vsel %vm1097, %v1089, %v1094
    %v1099 = vrsqrt.pop %v1088
    %v1100 = vmul.f32 %v1099, %v1088
    %v1101 = vmul.f32 %v1100, %v1099
    %v1102 = vmul.f32 0.5, %v1101
    %v1103 = vsub.f32 1.5, %v1102
    %v1104 = vmul.f32 %v1099, %v1103
    %vm1105 = vweird.f32 %v1088
    %vm1106 = vweird.f32 %v1099
    %vm1107 = vmor %vm1105, %vm1106
    %v1108 = vsel %vm1107, %v1099, %v1104
    %v1109 = vmul.f32 %v1077, %v1098
    %v1110 = vmul.f32 %v1078, %v1108
    %v1112 = vperm.slane %v1069, 0
    %v1114 = vmul.f32 %v1109, %v1112
    %v1115 = vmul.f32 %v1110, %v1112
    %v1117 = vperm.slane %v1070, 0
    %v1119 = vadd.f32 %v1114, %v1117
    %v1120 = vadd.f32 %v1115, %v1117
    %s1121 = scalar_lea.vmem [#allocation2], 192
    %v1122 = vld [vmem:[%s1121] sm:$0xff]
    %v1123 = vld [vmem:[%s1121 + $0x8] sm:$0xf]
    %v1124 = vld [vmem:[%s1121 + $0xc] sm:$0xff]
    %v1125 = vld [vmem:[%s1121 + $0x14] sm:$0xf]
    %v1126 = vld [vmem:[%s1121 + $0x18] sm:$0xff]
    %v1127 = vld [vmem:[%s1121 + $0x20] sm:$0xf]
    %v1128 = vld [vmem:[%s1121 + $0x24] sm:$0xff]
    %v1129 = vld [vmem:[%s1121 + $0x2c] sm:$0xf]
    %v1130 = vld [vmem:[%s1121 + $0x30] sm:$0xff]
    %v1131 = vld [vmem:[%s1121 + $0x38] sm:$0xf]
    %v1132 = vld [vmem:[%s1121 + $0x3c] sm:$0xff]
    %v1133 = vld [vmem:[%s1121 + $0x44] sm:$0xf]
    %v1134 = vld [vmem:[%s1121 + $0x48] sm:$0xff]
    %v1135 = vld [vmem:[%s1121 + $0x50] sm:$0xf]
    %v1136 = vld [vmem:[%s1121 + $0x54] sm:$0xff]
    %v1137 = vld [vmem:[%s1121 + $0x5c] sm:$0xf]
    %v1138 = vld [vmem:[%s1121 + $0x60] sm:$0xff]
    %v1139 = vld [vmem:[%s1121 + $0x68] sm:$0xf]
    %v1140 = vld [vmem:[%s1121 + $0x6c] sm:$0xff]
    %v1141 = vld [vmem:[%s1121 + $0x74] sm:$0xf]
    %v1142 = vld [vmem:[%s1121 + $0x78] sm:$0xff]
    %v1143 = vld [vmem:[%s1121 + $0x80] sm:$0xf]
    %v1144 = vld [vmem:[%s1121 + $0x84] sm:$0xff]
    %v1145 = vld [vmem:[%s1121 + $0x8c] sm:$0xf]
    %v1146 = vld [vmem:[%s1121 + $0x90] sm:$0xff]
    %v1147 = vld [vmem:[%s1121 + $0x98] sm:$0xf]
    %v1148 = vld [vmem:[%s1121 + $0x9c] sm:$0xff]
    %v1149 = vld [vmem:[%s1121 + $0xa4] sm:$0xf]
    %v1150 = vld [vmem:[%s1121 + $0xa8] sm:$0xff]
    %v1151 = vld [vmem:[%s1121 + $0xb0] sm:$0xf]
    %v1152 = vld [vmem:[%s1121 + $0xb4] sm:$0xff]
    %v1153 = vld [vmem:[%s1121 + $0xbc] sm:$0xf]
    %v1154 = vpack.c.bf16 %v1120, %v1119
    %s1155 = scalar_lea.vmem %s5, 3
    %v1156 = vld [vmem:[%s1155] sm:$0x7]
    %v1158 = vperm.slane %v1156, 0
    %v1159 = vperm.slane %v1156, 1
    %v1160 = vperm.slane %v1156, 2
    %v1196 = vunpack.c.l.b16 %v1122
    %v1197 = vunpack.c.h.b16 %v1122
    %v1198 = vunpack.c.l.b16 %v1123
    %v1199 = vunpack.c.l.b16 %v1124
    %v1200 = vunpack.c.h.b16 %v1124
    %v1201 = vunpack.c.l.b16 %v1125
    %v1202 = vunpack.c.l.b16 %v1126
    %v1203 = vunpack.c.h.b16 %v1126
    %v1204 = vunpack.c.l.b16 %v1127
    %v1205 = vunpack.c.l.b16 %v1128
    %v1206 = vunpack.c.h.b16 %v1128
    %v1207 = vunpack.c.l.b16 %v1129
    %v1208 = vunpack.c.l.b16 %v1130
    %v1209 = vunpack.c.h.b16 %v1130
    %v1210 = vunpack.c.l.b16 %v1131
    %v1211 = vunpack.c.l.b16 %v1132
    %v1212 = vunpack.c.h.b16 %v1132
    %v1213 = vunpack.c.l.b16 %v1133
    %v1214 = vunpack.c.l.b16 %v1134
    %v1215 = vunpack.c.h.b16 %v1134
    %v1216 = vunpack.c.l.b16 %v1135
    %v1217 = vunpack.c.l.b16 %v1136
    %v1218 = vunpack.c.h.b16 %v1136
    %v1219 = vunpack.c.l.b16 %v1137
    %v1220 = vunpack.c.l.b16 %v1138
    %v1221 = vunpack.c.h.b16 %v1138
    %v1222 = vunpack.c.l.b16 %v1139
    %v1223 = vunpack.c.l.b16 %v1140
    %v1224 = vunpack.c.h.b16 %v1140
    %v1225 = vunpack.c.l.b16 %v1141
    %v1226 = vunpack.c.l.b16 %v1142
    %v1227 = vunpack.c.h.b16 %v1142
    %v1228 = vunpack.c.l.b16 %v1143
    %v1229 = vunpack.c.l.b16 %v1144
    %v1230 = vunpack.c.h.b16 %v1144
    %v1231 = vunpack.c.l.b16 %v1145
    %v1232 = vunpack.c.l.b16 %v1146
    %v1233 = vunpack.c.h.b16 %v1146
    %v1234 = vunpack.c.l.b16 %v1147
    %v1235 = vunpack.c.l.b16 %v1148
    %v1236 = vunpack.c.h.b16 %v1148
    %v1237 = vunpack.c.l.b16 %v1149
    %v1238 = vunpack.c.l.b16 %v1150
    %v1239 = vunpack.c.h.b16 %v1150
    %v1240 = vunpack.c.l.b16 %v1151
    %v1241 = vunpack.c.l.b16 %v1152
    %v1242 = vunpack.c.h.b16 %v1152
    %v1243 = vunpack.c.l.b16 %v1153
    %v1244 = vpack.c.b16 %v1199, %v1196
    %v1245 = vpack.c.b16 %v1200, %v1197
    %v1246 = vpack.c.b16 %v1201, %v1198
    %v1247 = vpack.c.b16 %v1205, %v1202
    %v1248 = vpack.c.b16 %v1206, %v1203
    %v1249 = vpack.c.b16 %v1207, %v1204
    %v1250 = vpack.c.b16 %v1211, %v1208
    %v1251 = vpack.c.b16 %v1212, %v1209
    %v1252 = vpack.c.b16 %v1213, %v1210
    %v1253 = vpack.c.b16 %v1217, %v1214
    %v1254 = vpack.c.b16 %v1218, %v1215
    %v1255 = vpack.c.b16 %v1219, %v1216
    %v1256 = vpack.c.b16 %v1223, %v1220
    %v1257 = vpack.c.b16 %v1224, %v1221
    %v1258 = vpack.c.b16 %v1225, %v1222
    %v1259 = vpack.c.b16 %v1229, %v1226
    %v1260 = vpack.c.b16 %v1230, %v1227
    %v1261 = vpack.c.b16 %v1231, %v1228
    %v1262 = vpack.c.b16 %v1235, %v1232
    %v1263 = vpack.c.b16 %v1236, %v1233
    %v1264 = vpack.c.b16 %v1237, %v1234
    %v1265 = vpack.c.b16 %v1241, %v1238
    %v1266 = vpack.c.b16 %v1242, %v1239
    %v1267 = vpack.c.b16 %v1243, %v1240
    %1292 = vmatpush.bf16.msra.mxu0 %v1265
    %1293 = vmatpush.bf16.msra.mxu0 %v1262
    %1294 = vmatpush.bf16.msra.mxu0 %v1259
    %1295 = vmatpush.bf16.msra.mxu0 %v1256
    %1296 = vmatpush.bf16.msra.mxu0 %v1253
    %1297 = vmatpush.bf16.msra.mxu0 %v1250
    %1298 = vmatpush.bf16.msra.mxu0 %v1247
    %1299 = vmatpush.bf16.msra.mxu0 %v1244
    %1300 = vmatmul.bf16.gmra.mxu0 %v1154
    %v1301 = vpop.f32.mrf.mxu0
    %v1302 = vadd.f32 %v1158, %v1301
    %v1303 = vpop.f32.mrf.mxu0
    %v1304 = vadd.f32 %v1158, %v1303
    %1305 = vdwg.mxu0
    %1306 = vmatpush.bf16.msra.mxu0 %v1266
    %1307 = vmatpush.bf16.msra.mxu0 %v1263
    %1308 = vmatpush.bf16.msra.mxu0 %v1260
    %1309 = vmatpush.bf16.msra.mxu0 %v1257
    %1310 = vmatpush.bf16.msra.mxu0 %v1254
    %1311 = vmatpush.bf16.msra.mxu0 %v1251
    %1312 = vmatpush.bf16.msra.mxu0 %v1248
    %1313 = vmatpush.bf16.msra.mxu0 %v1245
    %1314 = vmatmul.bf16.gmra.mxu0 %v1154
    %v1315 = vpop.f32.mrf.mxu0
    %v1316 = vadd.f32 %v1159, %v1315
    %v1317 = vpop.f32.mrf.mxu0
    %v1318 = vadd.f32 %v1159, %v1317
    %1319 = vdwg.mxu0
    %1320 = vmatpush.bf16.msra.mxu0 %v1267
    %1321 = vmatpush.bf16.msra.mxu0 %v1264
    %1322 = vmatpush.bf16.msra.mxu0 %v1261
    %1323 = vmatpush.bf16.msra.mxu0 %v1258
    %1324 = vmatpush.bf16.msra.mxu0 %v1255
    %1325 = vmatpush.bf16.msra.mxu0 %v1252
    %1326 = vmatpush.bf16.msra.mxu0 %v1249
    %1327 = vmatpush.bf16.msra.mxu0 %v1246
    %1328 = vmatmul.bf16.gmra.mxu0 %v1154
    %v1329 = vpop.f32.mrf.mxu0
    %v1330 = vadd.f32 %v1160, %v1329
    %v1331 = vpop.f32.mrf.mxu0
    %v1332 = vadd.f32 %v1160, %v1331
    %1333 = vdwg.mxu0
    %v1334 = vpack.c.bf16 %v1316, %v1316
    %v1335 = vpack.c.bf16 %v1330, %v1330
    %v1336 = vmul.f32 %v1302, %v395
    %v1337 = vpack.c.bf16 %v1336, %v1336
    %1338 = vmatpush.bf16.xpose.msra.mxu0 0
    %1339 = vmatpush.bf16.xpose.msra.mxu0 0
    %1340 = vmatpush.bf16.xpose.msra.mxu0 0
    %1341 = vmatpush.bf16.xpose.msra.mxu0 0
    %1342 = vmatpush.bf16.xpose.msra.mxu0 0
    %1343 = vmatpush.bf16.xpose.msra.mxu0 0
    %1344 = vmatpush.bf16.xpose.msra.mxu0 0
    %1345 = vmatpush.bf16.xpose.msra.mxu0 %v1334
    %1346 = vmatmul.bf16.gmra.mxu0 %v1337
    %v1347 = vpop.f32.mrf.mxu0
    %v1348 = vadd.f32 0.0, %v1347
    %v1349 = vpop.f32.mrf.mxu0
    %1350 = vdwg.mxu0
    %v1351 = vmul.f32 %v1348, 0.125
    %v1352 = vadd.f32 %v1351, %v390
    %v1353 = vsel %vm413, %v1352, -inf
    %1354 = vmax.xlane.f32.xlu0 %v1353
    %v1355 = vpop.xlane.xlu0 %1354
    %v1356 = vsub.f32 %v1352, %v1355
    %v1357 = vmul.f32 %v1356, 1.442695
    %v1358 = vpow.pop %v1357
    %v1359 = vsel %vm413, %v1358, 0.0
    %1360 = vadd.xlane.f32.xlu0 %v1359
    %v1361 = vpop.xlane.xlu0 %1360
    %v1362 = vrcp.pop %v1361
    %v1363 = vmul.f32 %v1358, %v1362
    %v1364 = vpack.c.bf16 %v1363, %v1363
    %v1366 = vsel %vm413, %v1364, 0
    %v1369 = vsel %vm429, %v1335, 0
    %1371 = vmatpush.bf16.msra.mxu0 0
    %1372 = vmatpush.bf16.msra.mxu0 0
    %1373 = vmatpush.bf16.msra.mxu0 0
    %1374 = vmatpush.bf16.msra.mxu0 0
    %1375 = vmatpush.bf16.msra.mxu0 0
    %1376 = vmatpush.bf16.msra.mxu0 0
    %1377 = vmatpush.bf16.msra.mxu0 0
    %1378 = vmatpush.bf16.msra.mxu0 %v1369
    %1379 = vmatmul.bf16.gmra.mxu0 %v1366
    %v1380 = vpop.f32.mrf.mxu0
    %v1381 = vadd.f32 0.0, %v1380
    %v1382 = vpop.f32.mrf.mxu0
    %1383 = vdwg.mxu0
    %v1384 = vmul.f32 %v1381, %v395
    %v1385 = vadd.f32 %v1384, 0.0
    %v1386 = vmul.f32 %v1302, %v452
    %v1387 = vpack.c.bf16 %v1386, %v1386
    %1388 = vmatpush.bf16.xpose.msra.mxu0 0
    %1389 = vmatpush.bf16.xpose.msra.mxu0 0
    %1390 = vmatpush.bf16.xpose.msra.mxu0 0
    %1391 = vmatpush.bf16.xpose.msra.mxu0 0
    %1392 = vmatpush.bf16.xpose.msra.mxu0 0
    %1393 = vmatpush.bf16.xpose.msra.mxu0 0
    %1394 = vmatpush.bf16.xpose.msra.mxu0 0
    %1395 = vmatpush.bf16.xpose.msra.mxu0 %v1334
    %1396 = vmatmul.bf16.gmra.mxu0 %v1387
    %v1397 = vpop.f32.mrf.mxu0
    %v1398 = vadd.f32 0.0, %v1397
    %v1399 = vpop.f32.mrf.mxu0
    %1400 = vdwg.mxu0
    %v1401 = vmul.f32 %v1398, 0.125
    %v1402 = vadd.f32 %v1401, %v390
    %v1403 = vsel %vm413, %v1402, -inf
    %1404 = vmax.xlane.f32.xlu0 %v1403
    %v1405 = vpop.xlane.xlu0 %1404
    %v1406 = vsub.f32 %v1402, %v1405
    %v1407 = vmul.f32 %v1406, 1.442695
    %v1408 = vpow.pop %v1407
    %v1409 = vsel %vm413, %v1408, 0.0
    %1410 = vadd.xlane.f32.xlu0 %v1409
    %v1411 = vpop.xlane.xlu0 %1410
    %v1412 = vrcp.pop %v1411
    %v1413 = vmul.f32 %v1408, %v1412
    %v1414 = vpack.c.bf16 %v1413, %v1413
    %v1416 = vsel %vm413, %v1414, 0
    %1418 = vmatpush.bf16.msra.mxu0 0
    %1419 = vmatpush.bf16.msra.mxu0 0
    %1420 = vmatpush.bf16.msra.mxu0 0
    %1421 = vmatpush.bf16.msra.mxu0 0
    %1422 = vmatpush.bf16.msra.mxu0 0
    %1423 = vmatpush.bf16.msra.mxu0 0
    %1424 = vmatpush.bf16.msra.mxu0 0
    %1425 = vmatpush.bf16.msra.mxu0 %v1369
    %1426 = vmatmul.bf16.gmra.mxu0 %v1416
    %v1427 = vpop.f32.mrf.mxu0
    %v1428 = vadd.f32 0.0, %v1427
    %v1429 = vpop.f32.mrf.mxu0
    %1430 = vdwg.mxu0
    %v1431 = vmul.f32 %v1428, %v452
    %v1432 = vadd.f32 %v1385, %v1431
    %v1433 = vpack.c.bf16 %v1318, %v1318
    %v1434 = vpack.c.bf16 %v1332, %v1332
    %v1435 = vmul.f32 %v1304, %v395
    %v1436 = vpack.c.bf16 %v1435, %v1435
    %1437 = vmatpush.bf16.xpose.msra.mxu0 0
    %1438 = vmatpush.bf16.xpose.msra.mxu0 0
    %1439 = vmatpush.bf16.xpose.msra.mxu0 0
    %1440 = vmatpush.bf16.xpose.msra.mxu0 0
    %1441 = vmatpush.bf16.xpose.msra.mxu0 0
    %1442 = vmatpush.bf16.xpose.msra.mxu0 0
    %1443 = vmatpush.bf16.xpose.msra.mxu0 0
    %1444 = vmatpush.bf16.xpose.msra.mxu0 %v1433
    %1445 = vmatmul.bf16.gmra.mxu0 %v1436
    %v1446 = vpop.f32.mrf.mxu0
    %v1447 = vadd.f32 0.0, %v1446
    %v1448 = vpop.f32.mrf.mxu0
    %1449 = vdwg.mxu0
    %v1450 = vmul.f32 %v1447, 0.125
    %v1451 = vadd.f32 %v1450, %v503
    %v1452 = vsel %vm413, %v1451, -inf
    %1453 = vmax.xlane.f32.xlu0 %v1452
    %v1454 = vpop.xlane.xlu0 %1453
    %v1455 = vsub.f32 %v1451, %v1454
    %v1456 = vmul.f32 %v1455, 1.442695
    %v1457 = vpow.pop %v1456
    %v1458 = vsel %vm413, %v1457, 0.0
    %1459 = vadd.xlane.f32.xlu0 %v1458
    %v1460 = vpop.xlane.xlu0 %1459
    %v1461 = vrcp.pop %v1460
    %v1462 = vmul.f32 %v1457, %v1461
    %v1463 = vpack.c.bf16 %v1462, %v1462
    %v1465 = vsel %vm413, %v1463, 0
    %v1468 = vsel %vm429, %v1434, 0
    %1470 = vmatpush.bf16.msra.mxu0 0
    %1471 = vmatpush.bf16.msra.mxu0 0
    %1472 = vmatpush.bf16.msra.mxu0 0
    %1473 = vmatpush.bf16.msra.mxu0 0
    %1474 = vmatpush.bf16.msra.mxu0 0
    %1475 = vmatpush.bf16.msra.mxu0 0
    %1476 = vmatpush.bf16.msra.mxu0 0
    %1477 = vmatpush.bf16.msra.mxu0 %v1468
    %1478 = vmatmul.bf16.gmra.mxu0 %v1465
    %v1479 = vpop.f32.mrf.mxu0
    %v1480 = vadd.f32 0.0, %v1479
    %v1481 = vpop.f32.mrf.mxu0
    %1482 = vdwg.mxu0
    %v1483 = vmul.f32 %v1480, %v395
    %v1484 = vadd.f32 %v1483, 0.0
    %v1485 = vmul.f32 %v1304, %v452
    %v1486 = vpack.c.bf16 %v1485, %v1485
    %1487 = vmatpush.bf16.xpose.msra.mxu0 0
    %1488 = vmatpush.bf16.xpose.msra.mxu0 0
    %1489 = vmatpush.bf16.xpose.msra.mxu0 0
    %1490 = vmatpush.bf16.xpose.msra.mxu0 0
    %1491 = vmatpush.bf16.xpose.msra.mxu0 0
    %1492 = vmatpush.bf16.xpose.msra.mxu0 0
    %1493 = vmatpush.bf16.xpose.msra.mxu0 0
    %1494 = vmatpush.bf16.xpose.msra.mxu0 %v1433
    %1495 = vmatmul.bf16.gmra.mxu0 %v1486
    %v1496 = vpop.f32.mrf.mxu0
    %v1497 = vadd.f32 0.0, %v1496
    %v1498 = vpop.f32.mrf.mxu0
    %1499 = vdwg.mxu0
    %v1500 = vmul.f32 %v1497, 0.125
    %v1501 = vadd.f32 %v1500, %v503
    %v1502 = vsel %vm413, %v1501, -inf
    %1503 = vmax.xlane.f32.xlu0 %v1502
    %v1504 = vpop.xlane.xlu0 %1503
    %v1505 = vsub.f32 %v1501, %v1504
    %v1506 = vmul.f32 %v1505, 1.442695
    %v1507 = vpow.pop %v1506
    %v1508 = vsel %vm413, %v1507, 0.0
    %1509 = vadd.xlane.f32.xlu0 %v1508
    %v1510 = vpop.xlane.xlu0 %1509
    %v1511 = vrcp.pop %v1510
    %v1512 = vmul.f32 %v1507, %v1511
    %v1513 = vpack.c.bf16 %v1512, %v1512
    %v1515 = vsel %vm413, %v1513, 0
    %1517 = vmatpush.bf16.msra.mxu0 0
    %1518 = vmatpush.bf16.msra.mxu0 0
    %1519 = vmatpush.bf16.msra.mxu0 0
    %1520 = vmatpush.bf16.msra.mxu0 0
    %1521 = vmatpush.bf16.msra.mxu0 0
    %1522 = vmatpush.bf16.msra.mxu0 0
    %1523 = vmatpush.bf16.msra.mxu0 0
    %1524 = vmatpush.bf16.msra.mxu0 %v1468
    %1525 = vmatmul.bf16.gmra.mxu0 %v1515
    %v1526 = vpop.f32.mrf.mxu0
    %v1527 = vadd.f32 0.0, %v1526
    %v1528 = vpop.f32.mrf.mxu0
    %1529 = vdwg.mxu0
    %v1530 = vmul.f32 %v1527, %v452
    %v1531 = vadd.f32 %v1484, %v1530
    %s1532 = scalar_lea.vmem %s6, 64
    %v1533 = vld [vmem:[%s1532] sm:$0xf]
    %v1534 = vld [vmem:[%s1532 + $0x4] sm:$0xf]
    %v1535 = vld [vmem:[%s1532 + $0x8] sm:$0xf]
    %v1536 = vld [vmem:[%s1532 + $0xc] sm:$0xf]
    %v1537 = vld [vmem:[%s1532 + $0x10] sm:$0xf]
    %v1538 = vld [vmem:[%s1532 + $0x14] sm:$0xf]
    %v1539 = vld [vmem:[%s1532 + $0x18] sm:$0xf]
    %v1540 = vld [vmem:[%s1532 + $0x1c] sm:$0xf]
    %v1541 = vld [vmem:[%s1532 + $0x20] sm:$0xf]
    %v1542 = vld [vmem:[%s1532 + $0x24] sm:$0xf]
    %v1543 = vld [vmem:[%s1532 + $0x28] sm:$0xf]
    %v1544 = vld [vmem:[%s1532 + $0x2c] sm:$0xf]
    %v1545 = vld [vmem:[%s1532 + $0x30] sm:$0xf]
    %v1546 = vld [vmem:[%s1532 + $0x34] sm:$0xf]
    %v1547 = vld [vmem:[%s1532 + $0x38] sm:$0xf]
    %v1548 = vld [vmem:[%s1532 + $0x3c] sm:$0xf]
    %v1549 = vpack.c.bf16 %v1531, %v1432
    %s1550 = scalar_lea.vmem %s7, 1
    %v1551 = vld [vmem:[%s1550] sm:$0x1]
    %v1553 = vperm.slane %v1551, 0
    %v1571 = vunpack.c.l.b16 %v1533
    %v1572 = vunpack.c.l.b16 %v1534
    %v1573 = vunpack.c.l.b16 %v1535
    %v1574 = vunpack.c.l.b16 %v1536
    %v1575 = vunpack.c.l.b16 %v1537
    %v1576 = vunpack.c.l.b16 %v1538
    %v1577 = vunpack.c.l.b16 %v1539
    %v1578 = vunpack.c.l.b16 %v1540
    %v1579 = vunpack.c.l.b16 %v1541
    %v1580 = vunpack.c.l.b16 %v1542
    %v1581 = vunpack.c.l.b16 %v1543
    %v1582 = vunpack.c.l.b16 %v1544
    %v1583 = vunpack.c.l.b16 %v1545
    %v1584 = vunpack.c.l.b16 %v1546
    %v1585 = vunpack.c.l.b16 %v1547
    %v1586 = vunpack.c.l.b16 %v1548
    %v1587 = vpack.c.b16 %v1572, %v1571
    %v1588 = vpack.c.b16 %v1574, %v1573
    %v1589 = vpack.c.b16 %v1576, %v1575
    %v1590 = vpack.c.b16 %v1578, %v1577
    %v1591 = vpack.c.b16 %v1580, %v1579
    %v1592 = vpack.c.b16 %v1582, %v1581
    %v1593 = vpack.c.b16 %v1584, %v1583
    %v1594 = vpack.c.b16 %v1586, %v1585
    %1603 = vmatpush.bf16.msra.mxu0 %v1594
    %1604 = vmatpush.bf16.msra.mxu0 %v1593
    %1605 = vmatpush.bf16.msra.mxu0 %v1592
    %1606 = vmatpush.bf16.msra.mxu0 %v1591
    %1607 = vmatpush.bf16.msra.mxu0 %v1590
    %1608 = vmatpush.bf16.msra.mxu0 %v1589
    %1609 = vmatpush.bf16.msra.mxu0 %v1588
    %1610 = vmatpush.bf16.msra.mxu0 %v1587
    %1611 = vmatmul.bf16.gmra.mxu0 %v1549
    %v1612 = vpop.f32.mrf.mxu0
    %v1613 = vadd.f32 %v1553, %v1612
    %v1614 = vpop.f32.mrf.mxu0
    %v1615 = vadd.f32 %v1553, %v1614
    %1616 = vdwg.mxu0
    %v1617 = vadd.f32 %v1613, %v1119
    %v1618 = vadd.f32 %v1615, %v1120
    %s1619 = scalar_lea.vmem %s8, 1
    %v1620 = vld [vmem:[%s1619] sm:$0x1]
    %s1621 = scalar_lea.vmem %s9, 1
    %v1622 = vld [vmem:[%s1621] sm:$0x1]
    %1623 = vadd.xlane.f32.xlu0 %v1617
    %v1624 = vpop.xlane.xlu0 %1623
    %1625 = vadd.xlane.f32.xlu0 %v1618
    %v1626 = vpop.xlane.xlu0 %1625
    %v1627 = vmul.f32 %v1624, %v130
    %v1628 = vmul.f32 %v1626, %v130
    %v1629 = vsub.f32 %v1617, %v1627
    %v1630 = vsub.f32 %v1618, %v1628
    %v1631 = vmul.f32 %v1629, %v1629
    %v1632 = vmul.f32 %v1630, %v1630
    %1633 = vadd.xlane.f32.xlu0 %v1631
    %v1634 = vpop.xlane.xlu0 %1633
    %1635 = vadd.xlane.f32.xlu0 %v1632
    %v1636 = vpop.xlane.xlu0 %1635
    %v1637 = vmul.f32 %v1634, %v130
    %v1638 = vmul.f32 %v1636, %v130
    %v1639 = vadd.f32 %v1637, 1e-12
    %v1640 = vadd.f32 %v1638, 1e-12
    %v1641 = vrsqrt.pop %v1639
    %v1642 = vmul.f32 %v1641, %v1639
    %v1643 = vmul.f32 %v1642, %v1641
    %v1644 = vmul.f32 0.5, %v1643
    %v1645 = vsub.f32 1.5, %v1644
    %v1646 = vmul.f32 %v1641, %v1645
    %vm1647 = vweird.f32 %v1639
    %vm1648 = vweird.f32 %v1641
    %vm1649 = vmor %vm1647, %vm1648
    %v1650 = vsel %vm1649, %v1641, %v1646
    %v1651 = vrsqrt.pop %v1640
    %v1652 = vmul.f32 %v1651, %v1640
    %v1653 = vmul.f32 %v1652, %v1651
    %v1654 = vmul.f32 0.5, %v1653
    %v1655 = vsub.f32 1.5, %v1654
    %v1656 = vmul.f32 %v1651, %v1655
    %vm1657 = vweird.f32 %v1640
    %vm1658 = vweird.f32 %v1651
    %vm1659 = vmor %vm1657, %vm1658
    %v1660 = vsel %vm1659, %v1651, %v1656
    %v1661 = vmul.f32 %v1629, %v1650
    %v1662 = vmul.f32 %v1630, %v1660
    %v1664 = vperm.slane %v1620, 0
    %v1666 = vmul.f32 %v1661, %v1664
    %v1667 = vmul.f32 %v1662, %v1664
    %v1669 = vperm.slane %v1622, 0
    %v1671 = vadd.f32 %v1666, %v1669
    %v1672 = vadd.f32 %v1667, %v1669
    %s1673 = scalar_lea.vmem [#allocation5], 128
    %v1674 = vld [vmem:[%s1673] sm:$0xff]
    %v1675 = vld [vmem:[%s1673 + $0x8] sm:$0xff]
    %v1676 = vld [vmem:[%s1673 + $0x10] sm:$0xff]
    %v1677 = vld [vmem:[%s1673 + $0x18] sm:$0xff]
    %v1678 = vld [vmem:[%s1673 + $0x20] sm:$0xff]
    %v1679 = vld [vmem:[%s1673 + $0x28] sm:$0xff]
    %v1680 = vld [vmem:[%s1673 + $0x30] sm:$0xff]
    %v1681 = vld [vmem:[%s1673 + $0x38] sm:$0xff]
    %v1682 = vld [vmem:[%s1673 + $0x40] sm:$0xff]
    %v1683 = vld [vmem:[%s1673 + $0x48] sm:$0xff]
    %v1684 = vld [vmem:[%s1673 + $0x50] sm:$0xff]
    %v1685 = vld [vmem:[%s1673 + $0x58] sm:$0xff]
    %v1686 = vld [vmem:[%s1673 + $0x60] sm:$0xff]
    %v1687 = vld [vmem:[%s1673 + $0x68] sm:$0xff]
    %v1688 = vld [vmem:[%s1673 + $0x70] sm:$0xff]
    %v1689 = vld [vmem:[%s1673 + $0x78] sm:$0xff]
    %v1690 = vpack.c.bf16 %v1672, %v1671
    %s1691 = scalar_lea.vmem %s11, 2
    %v1692 = vld [vmem:[%s1691] sm:$0x3]
    %v1694 = vperm.slane %v1692, 0
    %v1695 = vperm.slane %v1692, 1
    %v1714 = vunpack.c.l.b16 %v1674
    %v1715 = vunpack.c.h.b16 %v1674
    %v1716 = vunpack.c.l.b16 %v1675
    %v1717 = vunpack.c.h.b16 %v1675
    %v1718 = vunpack.c.l.b16 %v1676
    %v1719 = vunpack.c.h.b16 %v1676
    %v1720 = vunpack.c.l.b16 %v1677
    %v1721 = vunpack.c.h.b16 %v1677
    %v1722 = vunpack.c.l.b16 %v1678
    %v1723 = vunpack.c.h.b16 %v1678
    %v1724 = vunpack.c.l.b16 %v1679
    %v1725 = vunpack.c.h.b16 %v1679
    %v1726 = vunpack.c.l.b16 %v1680
    %v1727 = vunpack.c.h.b16 %v1680
    %v1728 = vunpack.c.l.b16 %v1681
    %v1729 = vunpack.c.h.b16 %v1681
    %v1730 = vunpack.c.l.b16 %v1682
    %v1731 = vunpack.c.h.b16 %v1682
    %v1732 = vunpack.c.l.b16 %v1683
    %v1733 = vunpack.c.h.b16 %v1683
    %v1734 = vunpack.c.l.b16 %v1684
    %v1735 = vunpack.c.h.b16 %v1684
    %v1736 = vunpack.c.l.b16 %v1685
    %v1737 = vunpack.c.h.b16 %v1685
    %v1738 = vunpack.c.l.b16 %v1686
    %v1739 = vunpack.c.h.b16 %v1686
    %v1740 = vunpack.c.l.b16 %v1687
    %v1741 = vunpack.c.h.b16 %v1687
    %v1742 = vunpack.c.l.b16 %v1688
    %v1743 = vunpack.c.h.b16 %v1688
    %v1744 = vunpack.c.l.b16 %v1689
    %v1745 = vunpack.c.h.b16 %v1689
    %v1746 = vpack.c.b16 %v1716, %v1714
    %v1747 = vpack.c.b16 %v1717, %v1715
    %v1748 = vpack.c.b16 %v1720, %v1718
    %v1749 = vpack.c.b16 %v1721, %v1719
    %v1750 = vpack.c.b16 %v1724, %v1722
    %v1751 = vpack.c.b16 %v1725, %v1723
    %v1752 = vpack.c.b16 %v1728, %v1726
    %v1753 = vpack.c.b16 %v1729, %v1727
    %v1754 = vpack.c.b16 %v1732, %v1730
    %v1755 = vpack.c.b16 %v1733, %v1731
    %v1756 = vpack.c.b16 %v1736, %v1734
    %v1757 = vpack.c.b16 %v1737, %v1735
    %v1758 = vpack.c.b16 %v1740, %v1738
    %v1759 = vpack.c.b16 %v1741, %v1739
    %v1760 = vpack.c.b16 %v1744, %v1742
    %v1761 = vpack.c.b16 %v1745, %v1743
    %1778 = vmatpush.bf16.msra.mxu0 %v1760
    %1779 = vmatpush.bf16.msra.mxu0 %v1758
    %1780 = vmatpush.bf16.msra.mxu0 %v1756
    %1781 = vmatpush.bf16.msra.mxu0 %v1754
    %1782 = vmatpush.bf16.msra.mxu0 %v1752
    %1783 = vmatpush.bf16.msra.mxu0 %v1750
    %1784 = vmatpush.bf16.msra.mxu0 %v1748
    %1785 = vmatpush.bf16.msra.mxu0 %v1746
    %1786 = vmatmul.bf16.gmra.mxu0 %v1690
    %v1787 = vpop.f32.mrf.mxu0
    %v1788 = vadd.f32 %v1694, %v1787
    %v1789 = vpop.f32.mrf.mxu0
    %v1790 = vadd.f32 %v1694, %v1789
    %1791 = vdwg.mxu0
    %1792 = vmatpush.bf16.msra.mxu0 %v1761
    %1793 = vmatpush.bf16.msra.mxu0 %v1759
    %1794 = vmatpush.bf16.msra.mxu0 %v1757
    %1795 = vmatpush.bf16.msra.mxu0 %v1755
    %1796 = vmatpush.bf16.msra.mxu0 %v1753
    %1797 = vmatpush.bf16.msra.mxu0 %v1751
    %1798 = vmatpush.bf16.msra.mxu0 %v1749
    %1799 = vmatpush.bf16.msra.mxu0 %v1747
    %1800 = vmatmul.bf16.gmra.mxu0 %v1690
    %v1801 = vpop.f32.mrf.mxu0
    %v1802 = vadd.f32 %v1695, %v1801
    %v1803 = vpop.f32.mrf.mxu0
    %v1804 = vadd.f32 %v1695, %v1803
    %1805 = vdwg.mxu0
    %v1806 = vmul.f32 %v1788, 0.5
    %v1807 = vmul.f32 %v1802, 0.5
    %v1808 = vmul.f32 %v1790, 0.5
    %v1809 = vmul.f32 %v1804, 0.5
    %v1810 = vmul.f32 %v1788, 0.044715
    %v1811 = vmul.f32 %v1802, 0.044715
    %v1812 = vmul.f32 %v1790, 0.044715
    %v1813 = vmul.f32 %v1804, 0.044715
    %v1814 = vmul.f32 %v1810, %v1788
    %v1815 = vmul.f32 %v1811, %v1802
    %v1816 = vmul.f32 %v1812, %v1790
    %v1817 = vmul.f32 %v1813, %v1804
    %v1818 = vmul.f32 %v1814, %v1788
    %v1819 = vmul.f32 %v1815, %v1802
    %v1820 = vmul.f32 %v1816, %v1790
    %v1821 = vmul.f32 %v1817, %v1804
    %v1822 = vadd.f32 %v1788, %v1818
    %v1823 = vadd.f32 %v1802, %v1819
    %v1824 = vadd.f32 %v1790, %v1820
    %v1825 = vadd.f32 %v1804, %v1821
    %v1826 = vmul.f32 %v1822, 0.7978846
    %v1827 = vmul.f32 %v1823, 0.7978846
    %v1828 = vmul.f32 %v1824, 0.7978846
    %v1829 = vmul.f32 %v1825, 0.7978846
    %v1830 = vtanh.pop %v1826
    %v1831 = vtanh.pop %v1827
    %v1832 = vtanh.pop %v1828
    %v1833 = vtanh.pop %v1829
    %v1834 = vadd.f32 %v1830, 1.0
    %v1835 = vadd.f32 %v1831, 1.0
    %v1836 = vadd.f32 %v1832, 1.0
    %v1837 = vadd.f32 %v1833, 1.0
    %v1838 = vmul.f32 %v1806, %v1834
    %v1839 = vmul.f32 %v1807, %v1835
    %v1840 = vmul.f32 %v1808, %v1836
    %v1841 = vmul.f32 %v1809, %v1837
    %s1842 = scalar_lea.vmem [#allocation7], 128
    %v1843 = vld [vmem:[%s1842] sm:$0xf]
    %v1844 = vld [vmem:[%s1842 + $0x4] sm:$0xf]
    %v1845 = vld [vmem:[%s1842 + $0x8] sm:$0xf]
    %v1846 = vld [vmem:[%s1842 + $0xc] sm:$0xf]
    %v1847 = vld [vmem:[%s1842 + $0x10] sm:$0xf]
    %v1848 = vld [vmem:[%s1842 + $0x14] sm:$0xf]
    %v1849 = vld [vmem:[%s1842 + $0x18] sm:$0xf]
    %v1850 = vld [vmem:[%s1842 + $0x1c] sm:$0xf]
    %v1851 = vld [vmem:[%s1842 + $0x20] sm:$0xf]
    %v1852 = vld [vmem:[%s1842 + $0x24] sm:$0xf]
    %v1853 = vld [vmem:[%s1842 + $0x28] sm:$0xf]
    %v1854 = vld [vmem:[%s1842 + $0x2c] sm:$0xf]
    %v1855 = vld [vmem:[%s1842 + $0x30] sm:$0xf]
    %v1856 = vld [vmem:[%s1842 + $0x34] sm:$0xf]
    %v1857 = vld [vmem:[%s1842 + $0x38] sm:$0xf]
    %v1858 = vld [vmem:[%s1842 + $0x3c] sm:$0xf]
    %v1859 = vld [vmem:[%s1842 + $0x40] sm:$0xf]
    %v1860 = vld [vmem:[%s1842 + $0x44] sm:$0xf]
    %v1861 = vld [vmem:[%s1842 + $0x48] sm:$0xf]
    %v1862 = vld [vmem:[%s1842 + $0x4c] sm:$0xf]
    %v1863 = vld [vmem:[%s1842 + $0x50] sm:$0xf]
    %v1864 = vld [vmem:[%s1842 + $0x54] sm:$0xf]
    %v1865 = vld [vmem:[%s1842 + $0x58] sm:$0xf]
    %v1866 = vld [vmem:[%s1842 + $0x5c] sm:$0xf]
    %v1867 = vld [vmem:[%s1842 + $0x60] sm:$0xf]
    %v1868 = vld [vmem:[%s1842 + $0x64] sm:$0xf]
    %v1869 = vld [vmem:[%s1842 + $0x68] sm:$0xf]
    %v1870 = vld [vmem:[%s1842 + $0x6c] sm:$0xf]
    %v1871 = vld [vmem:[%s1842 + $0x70] sm:$0xf]
    %v1872 = vld [vmem:[%s1842 + $0x74] sm:$0xf]
    %v1873 = vld [vmem:[%s1842 + $0x78] sm:$0xf]
    %v1874 = vld [vmem:[%s1842 + $0x7c] sm:$0xf]
    %v1875 = vpack.c.bf16 %v1840, %v1838
    %v1876 = vpack.c.bf16 %v1841, %v1839
    %s1877 = scalar_lea.vmem %s13, 1
    %v1878 = vld [vmem:[%s1877] sm:$0x1]
    %v1880 = vperm.slane %v1878, 0
    %v1914 = vunpack.c.l.b16 %v1843
    %v1915 = vunpack.c.l.b16 %v1844
    %v1916 = vunpack.c.l.b16 %v1845
    %v1917 = vunpack.c.l.b16 %v1846
    %v1918 = vunpack.c.l.b16 %v1847
    %v1919 = vunpack.c.l.b16 %v1848
    %v1920 = vunpack.c.l.b16 %v1849
    %v1921 = vunpack.c.l.b16 %v1850
    %v1922 = vunpack.c.l.b16 %v1851
    %v1923 = vunpack.c.l.b16 %v1852
    %v1924 = vunpack.c.l.b16 %v1853
    %v1925 = vunpack.c.l.b16 %v1854
    %v1926 = vunpack.c.l.b16 %v1855
    %v1927 = vunpack.c.l.b16 %v1856
    %v1928 = vunpack.c.l.b16 %v1857
    %v1929 = vunpack.c.l.b16 %v1858
    %v1930 = vunpack.c.l.b16 %v1859
    %v1931 = vunpack.c.l.b16 %v1860
    %v1932 = vunpack.c.l.b16 %v1861
    %v1933 = vunpack.c.l.b16 %v1862
    %v1934 = vunpack.c.l.b16 %v1863
    %v1935 = vunpack.c.l.b16 %v1864
    %v1936 = vunpack.c.l.b16 %v1865
    %v1937 = vunpack.c.l.b16 %v1866
    %v1938 = vunpack.c.l.b16 %v1867
    %v1939 = vunpack.c.l.b16 %v1868
    %v1940 = vunpack.c.l.b16 %v1869
    %v1941 = vunpack.c.l.b16 %v1870
    %v1942 = vunpack.c.l.b16 %v1871
    %v1943 = vunpack.c.l.b16 %v1872
    %v1944 = vunpack.c.l.b16 %v1873
    %v1945 = vunpack.c.l.b16 %v1874
    %v1946 = vpack.c.b16 %v1915, %v1914
    %v1947 = vpack.c.b16 %v1917, %v1916
    %v1948 = vpack.c.b16 %v1919, %v1918
    %v1949 = vpack.c.b16 %v1921, %v1920
    %v1950 = vpack.c.b16 %v1923, %v1922
    %v1951 = vpack.c.b16 %v1925, %v1924
    %v1952 = vpack.c.b16 %v1927, %v1926
    %v1953 = vpack.c.b16 %v1929, %v1928
    %v1954 = vpack.c.b16 %v1931, %v1930
    %v1955 = vpack.c.b16 %v1933, %v1932
    %v1956 = vpack.c.b16 %v1935, %v1934
    %v1957 = vpack.c.b16 %v1937, %v1936
    %v1958 = vpack.c.b16 %v1939, %v1938
    %v1959 = vpack.c.b16 %v1941, %v1940
    %v1960 = vpack.c.b16 %v1943, %v1942
    %v1961 = vpack.c.b16 %v1945, %v1944
    %1978 = vmatpush.bf16.msra.mxu0 %v1953
    %1979 = vmatpush.bf16.msra.mxu0 %v1952
    %1980 = vmatpush.bf16.msra.mxu0 %v1951
    %1981 = vmatpush.bf16.msra.mxu0 %v1950
    %1982 = vmatpush.bf16.msra.mxu0 %v1949
    %1983 = vmatpush.bf16.msra.mxu0 %v1948
    %1984 = vmatpush.bf16.msra.mxu0 %v1947
    %1985 = vmatpush.bf16.msra.mxu0 %v1946
    %1986 = vmatmul.bf16.gmra.mxu0 %v1875
    %v1987 = vpop.f32.mrf.mxu0
    %v1988 = vadd.f32 %v1880, %v1987
    %v1989 = vpop.f32.mrf.mxu0
    %v1990 = vadd.f32 %v1880, %v1989
    %1991 = vdwg.mxu0
    %1992 = vmatpush.bf16.msra.mxu0 %v1961
    %1993 = vmatpush.bf16.msra.mxu0 %v1960
    %1994 = vmatpush.bf16.msra.mxu0 %v1959
    %1995 = vmatpush.bf16.msra.mxu0 %v1958
    %1996 = vmatpush.bf16.msra.mxu0 %v1957
    %1997 = vmatpush.bf16.msra.mxu0 %v1956
    %1998 = vmatpush.bf16.msra.mxu0 %v1955
    %1999 = vmatpush.bf16.msra.mxu0 %v1954
    %2000 = vmatmul.bf16.gmra.mxu0 %v1876
    %v2001 = vpop.f32.mrf.mxu0
    %v2002 = vadd.f32 %v1988, %v2001
    %v2003 = vpop.f32.mrf.mxu0
    %v2004 = vadd.f32 %v1990, %v2003
    %2005 = vdwg.mxu0
    %v2006 = vadd.f32 %v2002, %v1671
    %v2007 = vadd.f32 %v2004, %v1672
    %s2008 = scalar_lea.vmem %s14, 1
    %v2009 = vld [vmem:[%s2008] sm:$0x1]
    %s2010 = scalar_lea.vmem %s15, 1
    %v2011 = vld [vmem:[%s2010] sm:$0x1]
    %2012 = vadd.xlane.f32.xlu0 %v2006
    %v2013 = vpop.xlane.xlu0 %2012
    %2014 = vadd.xlane.f32.xlu0 %v2007
    %v2015 = vpop.xlane.xlu0 %2014
    %v2016 = vmul.f32 %v2013, %v130
    %v2017 = vmul.f32 %v2015, %v130
    %v2018 = vsub.f32 %v2006, %v2016
    %v2019 = vsub.f32 %v2007, %v2017
    %v2020 = vmul.f32 %v2018, %v2018
    %v2021 = vmul.f32 %v2019, %v2019
    %2022 = vadd.xlane.f32.xlu0 %v2020
    %v2023 = vpop.xlane.xlu0 %2022
    %2024 = vadd.xlane.f32.xlu0 %v2021
    %v2025 = vpop.xlane.xlu0 %2024
    %v2026 = vmul.f32 %v2023, %v130
    %v2027 = vmul.f32 %v2025, %v130
    %v2028 = vadd.f32 %v2026, 1e-12
    %v2029 = vadd.f32 %v2027, 1e-12
    %v2030 = vrsqrt.pop %v2028
    %v2031 = vmul.f32 %v2030, %v2028
    %v2032 = vmul.f32 %v2031, %v2030
    %v2033 = vmul.f32 0.5, %v2032
    %v2034 = vsub.f32 1.5, %v2033
    %v2035 = vmul.f32 %v2030, %v2034
    %vm2036 = vweird.f32 %v2028
    %vm2037 = vweird.f32 %v2030
    %vm2038 = vmor %vm2036, %vm2037
    %v2039 = vsel %vm2038, %v2030, %v2035
    %v2040 = vrsqrt.pop %v2029
    %v2041 = vmul.f32 %v2040, %v2029
    %v2042 = vmul.f32 %v2041, %v2040
    %v2043 = vmul.f32 0.5, %v2042
    %v2044 = vsub.f32 1.5, %v2043
    %v2045 = vmul.f32 %v2040, %v2044
    %vm2046 = vweird.f32 %v2029
    %vm2047 = vweird.f32 %v2040
    %vm2048 = vmor %vm2046, %vm2047
    %v2049 = vsel %vm2048, %v2040, %v2045
    %v2050 = vmul.f32 %v2018, %v2039
    %v2051 = vmul.f32 %v2019, %v2049
    %v2053 = vperm.slane %v2009, 0
    %v2055 = vmul.f32 %v2050, %v2053
    %v2056 = vmul.f32 %v2051, %v2053
    %v2058 = vperm.slane %v2011, 0
    %v2060 = vadd.f32 %v2055, %v2058
    %v2061 = vadd.f32 %v2056, %v2058
    %v2063 = vrot.slane %v2061, 7
    %vm2065 = vcmask 1040384
    %v2066 = vsel %vm2065, %v2060, %v2063
    %v2067 = vld [vmem:[%s16] sm:$0xf]
    %v2068 = vld [vmem:[%s16 + $0x4] sm:$0xf]
    %v2069 = vld [vmem:[%s16 + $0x8] sm:$0xf]
    %v2070 = vld [vmem:[%s16 + $0xc] sm:$0xf]
    %v2071 = vld [vmem:[%s16 + $0x10] sm:$0xf]
    %v2072 = vld [vmem:[%s16 + $0x14] sm:$0xf]
    %v2073 = vld [vmem:[%s16 + $0x18] sm:$0xf]
    %v2074 = vld [vmem:[%s16 + $0x1c] sm:$0xf]
    %v2075 = vld [vmem:[%s16 + $0x20] sm:$0xf]
    %v2076 = vld [vmem:[%s16 + $0x24] sm:$0xf]
    %v2077 = vld [vmem:[%s16 + $0x28] sm:$0xf]
    %v2078 = vld [vmem:[%s16 + $0x2c] sm:$0xf]
    %v2079 = vld [vmem:[%s16 + $0x30] sm:$0xf]
    %v2080 = vld [vmem:[%s16 + $0x34] sm:$0xf]
    %v2081 = vld [vmem:[%s16 + $0x38] sm:$0xf]
    %v2082 = vld [vmem:[%s16 + $0x3c] sm:$0xf]
    %v2083 = vpack.c.bf16 %v2066, %v2066
    %v2084 = vld [vmem:[%s17] sm:$0x1]
    %v2086 = vperm.slane %v2084, 0
    %v2104 = vunpack.c.l.b16 %v2067
    %v2105 = vunpack.c.l.b16 %v2068
    %v2106 = vunpack.c.l.b16 %v2069
    %v2107 = vunpack.c.l.b16 %v2070
    %v2108 = vunpack.c.l.b16 %v2071
    %v2109 = vunpack.c.l.b16 %v2072
    %v2110 = vunpack.c.l.b16 %v2073
    %v2111 = vunpack.c.l.b16 %v2074
    %v2112 = vunpack.c.l.b16 %v2075
    %v2113 = vunpack.c.l.b16 %v2076
    %v2114 = vunpack.c.l.b16 %v2077
    %v2115 = vunpack.c.l.b16 %v2078
    %v2116 = vunpack.c.l.b16 %v2079
    %v2117 = vunpack.c.l.b16 %v2080
    %v2118 = vunpack.c.l.b16 %v2081
    %v2119 = vunpack.c.l.b16 %v2082
    %v2120 = vpack.c.b16 %v2105, %v2104
    %v2121 = vpack.c.b16 %v2107, %v2106
    %v2122 = vpack.c.b16 %v2109, %v2108
    %v2123 = vpack.c.b16 %v2111, %v2110
    %v2124 = vpack.c.b16 %v2113, %v2112
    %v2125 = vpack.c.b16 %v2115, %v2114
    %v2126 = vpack.c.b16 %v2117, %v2116
    %v2127 = vpack.c.b16 %v2119, %v2118
    %2136 = vmatpush.bf16.msra.mxu0 %v2127
    %2137 = vmatpush.bf16.msra.mxu0 %v2126
    %2138 = vmatpush.bf16.msra.mxu0 %v2125
    %2139 = vmatpush.bf16.msra.mxu0 %v2124
    %2140 = vmatpush.bf16.msra.mxu0 %v2123
    %2141 = vmatpush.bf16.msra.mxu0 %v2122
    %2142 = vmatpush.bf16.msra.mxu0 %v2121
    %2143 = vmatpush.bf16.msra.mxu0 %v2120
    %2144 = vmatmul.bf16.gmra.mxu0 %v2083
    %v2145 = vpop.f32.mrf.mxu0
    %v2146 = vadd.f32 %v2086, %v2145
    %v2147 = vpop.f32.mrf.mxu0
    %2148 = vdwg.mxu0
    %v2149 = vtanh.pop %v2146
    %v2150 = vld [vmem:[%s18] sm:$0xf]
    %v2151 = vld [vmem:[%s18 + $0x4] sm:$0xf]
    %v2152 = vld [vmem:[%s18 + $0x8] sm:$0xf]
    %v2153 = vld [vmem:[%s18 + $0xc] sm:$0xf]
    %v2154 = vld [vmem:[%s18 + $0x10] sm:$0xf]
    %v2155 = vld [vmem:[%s18 + $0x14] sm:$0xf]
    %v2156 = vld [vmem:[%s18 + $0x18] sm:$0xf]
    %v2157 = vld [vmem:[%s18 + $0x1c] sm:$0xf]
    %v2158 = vld [vmem:[%s18 + $0x20] sm:$0xf]
    %v2159 = vld [vmem:[%s18 + $0x24] sm:$0xf]
    %v2160 = vld [vmem:[%s18 + $0x28] sm:$0xf]
    %v2161 = vld [vmem:[%s18 + $0x2c] sm:$0xf]
    %v2162 = vld [vmem:[%s18 + $0x30] sm:$0xf]
    %v2163 = vld [vmem:[%s18 + $0x34] sm:$0xf]
    %v2164 = vld [vmem:[%s18 + $0x38] sm:$0xf]
    %v2165 = vld [vmem:[%s18 + $0x3c] sm:$0xf]
    %v2166 = vpack.c.bf16 %v2149, %v2149
    %v2167 = vld [vmem:[%s19] sm:$0x1]
    %v2169 = vperm.slane %v2167, 0
    %v2187 = vunpack.c.l.b16 %v2150
    %v2188 = vunpack.c.l.b16 %v2151
    %v2189 = vunpack.c.l.b16 %v2152
    %v2190 = vunpack.c.l.b16 %v2153
    %v2191 = vunpack.c.l.b16 %v2154
    %v2192 = vunpack.c.l.b16 %v2155
    %v2193 = vunpack.c.l.b16 %v2156
    %v2194 = vunpack.c.l.b16 %v2157
    %v2195 = vunpack.c.l.b16 %v2158
    %v2196 = vunpack.c.l.b16 %v2159
    %v2197 = vunpack.c.l.b16 %v2160
    %v2198 = vunpack.c.l.b16 %v2161
    %v2199 = vunpack.c.l.b16 %v2162
    %v2200 = vunpack.c.l.b16 %v2163
    %v2201 = vunpack.c.l.b16 %v2164
    %v2202 = vunpack.c.l.b16 %v2165
    %v2203 = vpack.c.b16 %v2188, %v2187
    %v2204 = vpack.c.b16 %v2190, %v2189
    %v2205 = vpack.c.b16 %v2192, %v2191
    %v2206 = vpack.c.b16 %v2194, %v2193
    %v2207 = vpack.c.b16 %v2196, %v2195
    %v2208 = vpack.c.b16 %v2198, %v2197
    %v2209 = vpack.c.b16 %v2200, %v2199
    %v2210 = vpack.c.b16 %v2202, %v2201
    %2219 = vmatpush.bf16.msra.mxu0 %v2210
    %2220 = vmatpush.bf16.msra.mxu0 %v2209
    %2221 = vmatpush.bf16.msra.mxu0 %v2208
    %2222 = vmatpush.bf16.msra.mxu0 %v2207
    %2223 = vmatpush.bf16.msra.mxu0 %v2206
    %2224 = vmatpush.bf16.msra.mxu0 %v2205
    %2225 = vmatpush.bf16.msra.mxu0 %v2204
    %2226 = vmatpush.bf16.msra.mxu0 %v2203
    %2227 = vmatmul.bf16.gmra.mxu0 %v2166
    %v2228 = vpop.f32.mrf.mxu0
    %v2229 = vadd.f32 %v2169, %v2228
    %v2230 = vpop.f32.mrf.mxu0
    %2231 = vdwg.mxu0
    %2232 = vst [vmem:[#allocation8] sm:$0x3] %v2229
    // Predicated region
    $region94: #{da_network_forward.1} parent=1 // pred_check
      _
    $region95: #{da_network_forward.1} parent=1 // pred_check_branch
      %2234 = sbr.rel (0) target = $region97
    $region96: #{da_network_forward.1} parent=1 // pred_region
      %2236 = vsyncadd [#allocation4], 0
      %s2238 = sshll.u32 [#allocation8], 4
      %s2239 = int_to_ptr.vmem [resolvable:$true] %s2238
      %s2240 = sshll.u32 %s20, 4
      %s2241 = int_to_ptr.hbm [resolvable:$true] %s2240
      %2243 = dma.vmem_to_hbm [thread:$0]  %s2239, 32, %s2241, [#allocation4]
    $region97: #{da_network_forward.1} parent=1 // pred_fallthru
      _
    // Predicated region
    $region98: #{da_network_forward.1} parent=1 // pred_check
      _
    $region99: #{da_network_forward.1} parent=1 // pred_check_branch
      %2245 = sbr.rel (0) target = $region101
    $region100: #{da_network_forward.1} parent=1 // pred_region
      %2247 = dma.done [#allocation4], 32
    $region101: #{da_network_forward.1} parent=1 // pred_fallthru
      _
    %2248 = vsyncpa [#allocation3], 1
    %2249 = vsyncpa [#allocation6], 1
    %2250 = vsyncpa [#allocation4], 1

</llo_original>
